<compile_context>
chip_gen: v5e
topology: v5e:2x2
jax: 0.10.0
libtpu: 0.0.40
codegen_flags: <defaults>
</compile_context>

<pallas_src>
import functools
import math

import jax
import jax.numpy as jnp
from jax.experimental import pallas as pl
from jax.experimental.pallas import tpu as pltpu


def _rope_tables(S, d_rope):
    """cos/sin tables matching RotaryPositionalEmbedding (scale=40)."""
    half_dim = d_rope // 2
    inv_freq = 1.0 / (10000.0 ** (jnp.arange(0, half_dim, 2,
                                              dtype=jnp.float32) / half_dim))
    t = jnp.arange(S, dtype=jnp.float32) / 40.0
    freqs = jnp.einsum('i,j->ij', t, inv_freq)
    rot = jnp.concatenate([freqs, freqs], axis=-1)          # (S, d_half)
    return jnp.cos(rot), jnp.sin(rot)


def _vmem_capacity_bytes():
    """Physical VMEM per TensorCore; conservative fallback if query fails."""
    try:
        return int(pltpu.get_tpu_info().vmem_capacity_bytes)
    except Exception:
        return 64 << 20        # v7x per-TC size; safe lower bound everywhere


def _pick_tile_s(S, max_tile, mult):
    """Largest divisor of S that is a multiple of `mult` and <= max_tile."""
    max_tile = max(mult, min(max_tile, S))
    best = None
    for t in range(mult, max_tile + 1, mult):
        if S % t == 0:
            best = t
    if best is None:
        # TODO(synk): pad S + masked stores for awkward sequence lengths
        # instead of falling back to the whole sequence.
        best = S
    return best


def mla_kernel(x_ref, w_down_ref, w_ukv_ref, w_uqr_ref, w_out_ref,
               cos_ref, sin_ref, bias_ref,
               out_ref, cache_ref,
               *, n_heads, d_head, d_rope, comp_dim, compute_dtype):
    """One grid step == one (batch, seq-tile) cell.  Refs are 2-D VMEM tiles."""
    f32 = jnp.float32
    cdt = compute_dtype
    TS = x_ref.shape[0]
    C = comp_dim
    d_nope = d_head - d_rope
    up = n_heads * d_nope
    d_half = cos_ref.shape[-1]          # rotary split width (== d_rope // 2)
    d_q = d_half // 2

    x = x_ref[...].astype(cdt)          # (TS, H)

    # ---- fused down projection: [c_kv | c_q | k_r] in one wide MXU matmul ----
    y_down = jnp.dot(x, w_down_ref[...], preferred_element_type=f32)
    c_kv = y_down[:, :C]                # (TS, C)  f32
    c_q = y_down[:, C:2 * C]            # (TS, C)  f32
    k_r = y_down[:, 2 * C:]             # (TS, nh*d_rope) f32

    # ---- fused up projections (q-side columns pre-scaled by 1/sqrt(d_head)) --
    y_kv = jnp.dot(c_kv.astype(cdt), w_ukv_ref[...],
                   preferred_element_type=f32)       # (TS, up + nh*d_head)
    y_q = jnp.dot(c_q.astype(cdt), w_uqr_ref[...],
                  preferred_element_type=f32)        # (TS, up + nh*d_rope)
    k_c = y_kv[:, :up]
    v = y_kv[:, up:]
    q_c = y_q[:, :up]                   # pre-scaled
    q_r = y_q[:, up:]                   # pre-scaled (RoPE is linear)

    # ---- RoPE, vectorized over all heads at once (f32 elementwise) ----
    cos = cos_ref[...][:, None, :]      # (TS, 1, d_half)
    sin = sin_ref[...][:, None, :]

    def rope(xf):                       # xf: (TS, nh, d_rope) f32
        x_rot, x_base = xf[..., :d_half], xf[..., d_half:]
        x1, x2 = x_rot[..., :d_q], x_rot[..., d_q:]
        x_rot = x_rot * cos + jnp.concatenate([-x2, x1], axis=-1) * sin
        return jnp.concatenate([x_rot, x_base], axis=-1)

    k_rope = rope(k_r.reshape(TS, n_heads, d_rope))  # (TS, nh, d_rope) f32
    q_rope = rope(q_r.reshape(TS, n_heads, d_rope))

    # ---- single lane-dense cache store: [c_kv | k_rope] ----
    cache_ref[...] = jnp.concatenate(
        [c_kv, k_rope.reshape(TS, n_heads * d_rope)], axis=-1
    ).astype(cache_ref.dtype)

    # ---- attention over the head axis: one fused score matmul (K = d_head) --
    q_full = jnp.concatenate(
        [q_c.reshape(TS, n_heads, d_nope), q_rope], axis=-1).astype(cdt)
    k_full = jnp.concatenate(
        [k_c.reshape(TS, n_heads, d_nope), k_rope], axis=-1).astype(cdt)
    vv = v.astype(cdt).reshape(TS, n_heads, d_head)

    s = jnp.einsum('snd,smd->snm', q_full, k_full,
                   preferred_element_type=f32)        # (TS, nh, nh) f32
    s = s + bias_ref[...][None, :, :]                 # additive causal bias

    m = jnp.max(s, axis=-1, keepdims=True)
    e = jnp.exp(s - m)
    attn = e * pl.reciprocal(jnp.sum(e, axis=-1, keepdims=True), approx=True)

    o = jnp.einsum('snm,smd->snd', attn.astype(cdt), vv,
                   preferred_element_type=f32)        # (TS, nh, d_head)
    o_flat = o.reshape(TS, n_heads * d_head).astype(cdt)
    out_ref[...] = jnp.dot(o_flat, w_out_ref[...],
                           preferred_element_type=f32).astype(out_ref.dtype)


def mla_forward(x, params, n_heads, d_head, d_rope, *,
                compute_dtype=jnp.bfloat16, tile_s=None):
    B, S, H = x.shape
    C = params['W_dkv'].shape[1]
    assert d_rope % 4 == 0, "rotate_half needs an even rotary half (d_rope % 4 == 0)"
    cdt = jnp.dtype(compute_dtype)
    out_dtype = x.dtype                 # main output keeps the input dtype
    cache_dtype = cdt                   # caches in compute dtype (bf16 fast path)
    inv_scale = 1.0 / math.sqrt(d_head)

    # Merge / re-lay-out weights offline (4 wide lane-dense matmuls in-kernel);
    # fold the attention score scale into the q-side weights; cast once to the
    # compute dtype (halves weight DMA + VMEM residency when bf16).
    w_down = jnp.concatenate(
        [params['W_dkv'], params['W_dq'], params['W_kr']], axis=1).astype(cdt)
    w_ukv = jnp.concatenate([params['W_uk'], params['W_uv']], axis=1).astype(cdt)
    w_uqr = jnp.concatenate([params['W_uq'] * inv_scale,
                             params['W_qr'] * inv_scale], axis=1).astype(cdt)
    w_out = params['W_out'].astype(cdt)

    cos, sin = _rope_tables(S, d_rope)                # (S, d_half) f32
    d_half = cos.shape[1]

    # Precomputed additive causal bias over (query head, key head).
    causal = jnp.tril(jnp.ones((n_heads, n_heads), dtype=bool))
    bias = jnp.where(causal, 0.0, -1e30).astype(jnp.float32)

    cache_w = C + n_heads * d_rope

    # ---- VMEM-budgeted tile selection + explicit vmem limit ----
    vmem_cap = _vmem_capacity_bytes()
    w_bytes = ((w_down.size + w_ukv.size + w_uqr.size + w_out.size)
               * cdt.itemsize + bias.size * 4)
    io_per_row = (2 * H * cdt.itemsize                      # x (double-buffered)
                  + 2 * 2 * d_half * 4                      # cos + sin
                  + 2 * H * jnp.dtype(out_dtype).itemsize   # out
                  + 2 * cache_w * jnp.dtype(cache_dtype).itemsize)
    f32_inter_per_row = 4 * (w_down.shape[1] + w_ukv.shape[1] + w_uqr.shape[1]
                             + 3 * n_heads * d_head + 2 * n_heads * n_heads
                             + 2 * n_heads * d_rope + H)
    per_row = io_per_row + 2 * f32_inter_per_row             # 2x live-range fudge

    if tile_s is None:
        budget = max(int(0.6 * vmem_cap) - 2 * w_bytes, per_row * 8)
        mult = 16 if (cdt.itemsize == 2 and S % 16 == 0) else 8
        max_tile = max(mult, min(512, budget // per_row))
        if B == 1:
            # keep >=2 cells along a parallel axis so v7x's 2 TCs both work
            max_tile = min(max_tile, max(mult, S // 2))
        TILE_S = _pick_tile_s(S, max_tile, mult)
    else:
        TILE_S = tile_s
    assert S % TILE_S == 0
    grid = (B, S // TILE_S)

    vmem_limit = min(int(0.85 * vmem_cap),
                     max(32 << 20, 2 * w_bytes + TILE_S * per_row + (4 << 20)))

    kernel = functools.partial(mla_kernel, n_heads=n_heads, d_head=d_head,
                               d_rope=d_rope, comp_dim=C, compute_dtype=cdt)

    flops = 2 * B * S * (H * w_down.shape[1] + C * w_ukv.shape[1]
                         + C * w_uqr.shape[1] + n_heads * d_head * H
                         + 2 * n_heads * n_heads * d_head)
    cost = pl.CostEstimate(
        flops=int(flops),
        transcendentals=int(B * S * n_heads * (n_heads + 1)),
        bytes_accessed=int(
            B * S * H * (cdt.itemsize + jnp.dtype(out_dtype).itemsize)
            + (w_down.size + w_ukv.size + w_uqr.size + w_out.size) * cdt.itemsize
            + (cos.size + sin.size + bias.size) * 4
            + B * S * cache_w * jnp.dtype(cache_dtype).itemsize),
    )

    out_shapes = (jax.ShapeDtypeStruct((B, S, H), out_dtype),
                  jax.ShapeDtypeStruct((B, S, cache_w), cache_dtype))
    out_specs = (pl.BlockSpec((None, TILE_S, H), lambda b, s: (b, s, 0)),
                 pl.BlockSpec((None, TILE_S, cache_w), lambda b, s: (b, s, 0)))

    args = (x.astype(cdt), w_down, w_ukv, w_uqr, w_out, cos, sin, bias)

    def _call(single_buffer_weights):
        def rep(arr):                   # whole-array, grid-invariant input
            nd = arr.ndim
            if single_buffer_weights:
                # constant index_map -> no point double-buffering; halve VMEM
                return pl.BlockSpec(arr.shape, lambda b, s: (0,) * nd,
                                    pipeline_mode=pl.Buffered(1))
            return pl.BlockSpec(arr.shape, lambda b, s: (0,) * nd)

        in_specs = [
            pl.BlockSpec((None, TILE_S, H), lambda b, s: (b, s, 0)),   # x
            rep(w_down), rep(w_ukv), rep(w_uqr), rep(w_out),
            pl.BlockSpec((TILE_S, d_half), lambda b, s: (s, 0)),       # cos
            pl.BlockSpec((TILE_S, d_half), lambda b, s: (s, 0)),       # sin
            rep(bias),
        ]
        res = pl.pallas_call(
            kernel,
            out_shape=out_shapes,
            grid=grid,
            in_specs=in_specs,
            out_specs=out_specs,
            compiler_params=pltpu.CompilerParams(
                dimension_semantics=("parallel", "parallel"),
                vmem_limit_bytes=int(vmem_limit)),
            cost_estimate=cost,
        )(*args)
        return jax.block_until_ready(res)

    try:
        out, cache = _call(True)
    except Exception:
        # Fallback for jax versions where pipeline_mode=pl.Buffered(1) is not
        # supported on the top-level pallas_call pipeline.
        out, cache = _call(False)

    c_kv = cache[..., :C]
    k_rope = cache[..., C:].reshape(B, S, n_heads, d_rope)
    return out, (c_kv, k_rope)


def mla_ref(x, params, n_heads, d_head, d_rope, compute_dtype=jnp.float32):
    """Pure-JAX reference mirroring the PyTorch forward (matmul inputs in
    `compute_dtype`, f32 accumulation & f32 elementwise, like the kernel)."""
    B, S, H = x.shape
    d_nope = d_head - d_rope
    f32 = jnp.float32
    cdt = compute_dtype

    def mm(a, w):
        return jnp.dot(a.astype(cdt), w.astype(cdt), preferred_element_type=f32)

    c_kv = mm(x, params['W_dkv'])
    c_q = mm(x, params['W_dq'])
    q_c = mm(c_q, params['W_uq']).reshape(B, S, n_heads, d_nope)
    k_c = mm(c_kv, params['W_uk']).reshape(B, S, n_heads, d_nope)
    v = mm(c_kv, params['W_uv']).reshape(B, S, n_heads, d_head)
    k_r = mm(x, params['W_kr']).reshape(B, S, n_heads, d_rope)
    q_r = mm(c_q, params['W_qr']).reshape(B, S, n_heads, d_rope)

    cos, sin = _rope_tables(S, d_rope)
    cos = cos[None, :, None, :]
    sin = sin[None, :, None, :]

    def apply_rot(xx):
        d_half = cos.shape[-1]
        xr, xb = xx[..., :d_half], xx[..., d_half:]
        x1, x2 = jnp.split(xr, 2, axis=-1)
        xr = xr * cos + jnp.concatenate([-x2, x1], axis=-1) * sin
        return jnp.concatenate([xr, xb], axis=-1)

    k_rope = apply_rot(k_r)
    q_rope = apply_rot(q_r)
    k = jnp.concatenate([k_c, k_rope], axis=-1)
    q = jnp.concatenate([q_c, q_rope], axis=-1)

    scale = 1.0 / math.sqrt(d_head)
    scores = jnp.einsum('bsid,bsjd->bsij', q.astype(cdt), k.astype(cdt),
                        preferred_element_type=f32) * scale
    mask = jnp.tril(jnp.ones((n_heads, n_heads), dtype=bool))
    scores = jnp.where(mask, scores, -jnp.inf)
    attn = jax.nn.softmax(scores, axis=-1)
    out1 = jnp.einsum('bsij,bsjd->bsid', attn.astype(cdt), v.astype(cdt),
                      preferred_element_type=f32)
    output = mm(out1.reshape(B, S, n_heads * d_head), params['W_out'])
    return output, (c_kv, k_rope)


if __name__ == "__main__":
    key = jax.random.PRNGKey(0)
    B, S, H = 2, 8, 32
    n_heads, C = 4, 16
    d_head = H // n_heads          # 8
    d_rope = d_head // 2           # 4
    d_nope = d_head - d_rope       # 4
    up = d_nope * n_heads          # 16

    keys = jax.random.split(key, 9)

    def init(k, shape):
        return (jax.random.normal(k, shape, jnp.float32)
                / jnp.sqrt(jnp.float32(shape[0])))

    params = {
        'W_dkv': init(keys[0], (H, C)),
        'W_dq':  init(keys[1], (H, C)),
        'W_uk':  init(keys[2], (C, up)),
        'W_uv':  init(keys[3], (C, n_heads * d_head)),
        'W_uq':  init(keys[4], (C, up)),
        'W_kr':  init(keys[5], (H, n_heads * d_rope)),
        'W_qr':  init(keys[6], (C, n_heads * d_rope)),
        'W_out': init(keys[7], (n_heads * d_head, H)),
    }
    x = jax.random.normal(keys[8], (B, S, H), jnp.float32)

    # --- f32 compute path: tight check against the pure-f32 spec reference ---
    out32, (ckv32, kr32) = mla_forward(x, params, n_heads, d_head, d_rope,
                                       compute_dtype=jnp.float32)
    jax.block_until_ready((out32, ckv32, kr32))
    ref_out, (ref_ckv, ref_kr) = mla_ref(x, params, n_heads, d_head, d_rope,
                                         compute_dtype=jnp.float32)
    assert out32.shape == (B, S, H)
    assert ckv32.shape == (B, S, C)
    assert kr32.shape == (B, S, n_heads, d_rope)
    assert jnp.allclose(out32, ref_out, rtol=1e-2, atol=1e-2)
    assert jnp.allclose(ckv32, ref_ckv, rtol=1e-3, atol=1e-3)
    assert jnp.allclose(kr32, ref_kr, rtol=1e-3, atol=1e-3)

    # --- bf16 compute path (default fast path): check vs precision-matched ref ---
    out16, (ckv16, kr16) = mla_forward(x, params, n_heads, d_head, d_rope)
    jax.block_until_ready((out16, ckv16, kr16))
    r16_out, (r16_ckv, r16_kr) = mla_ref(x, params, n_heads, d_head, d_rope,
                                         compute_dtype=jnp.bfloat16)
    assert jnp.allclose(out16.astype(jnp.float32), r16_out, rtol=2e-2, atol=2e-2)
    assert jnp.allclose(ckv16.astype(jnp.float32), r16_ckv, rtol=2e-2, atol=2e-2)
    assert jnp.allclose(kr16.astype(jnp.float32), r16_kr, rtol=2e-2, atol=2e-2)

    print("KERNEL_OK")
</pallas_src>

<mosaic_0001>
module attributes {stable_mosaic.version = 11 : i64} {
  func.func @mla_kernel(%arg0: i32, %arg1: i32, %arg2: memref<1x8x32xf32, #tpu.memory_space<vmem>>, %arg3: memref<32x48xf32, #tpu.memory_space<vmem>>, %arg4: memref<16x48xf32, #tpu.memory_space<vmem>>, %arg5: memref<16x32xf32, #tpu.memory_space<vmem>>, %arg6: memref<32x32xf32, #tpu.memory_space<vmem>>, %arg7: memref<8x2xf32, #tpu.memory_space<vmem>>, %arg8: memref<8x2xf32, #tpu.memory_space<vmem>>, %arg9: memref<4x4xf32, #tpu.memory_space<vmem>>, %arg10: memref<1x8x32xf32, #tpu.memory_space<vmem>>, %arg11: memref<1x8x32xf32, #tpu.memory_space<vmem>>) attributes {dimension_semantics = [#tpu.dimension_semantics<parallel>, #tpu.dimension_semantics<parallel>], iteration_bounds = array<i64: 2, 1>, scalar_prefetch = 0 : i64, scratch_operands = 0 : i64, tpu.core_type = #tpu.core_type<tc>, window_params = [{transform_indices = @transform_0, window_bounds = array<i64: 1, 8, 32>}, {pipeline_mode = #tpu.pipeline_mode<synchronous>, transform_indices = @transform_1, window_bounds = array<i64: 32, 48>}, {pipeline_mode = #tpu.pipeline_mode<synchronous>, transform_indices = @transform_2, window_bounds = array<i64: 16, 48>}, {pipeline_mode = #tpu.pipeline_mode<synchronous>, transform_indices = @transform_3, window_bounds = array<i64: 16, 32>}, {pipeline_mode = #tpu.pipeline_mode<synchronous>, transform_indices = @transform_4, window_bounds = array<i64: 32, 32>}, {transform_indices = @transform_5, window_bounds = array<i64: 8, 2>}, {transform_indices = @transform_6, window_bounds = array<i64: 8, 2>}, {pipeline_mode = #tpu.pipeline_mode<synchronous>, transform_indices = @transform_7, window_bounds = array<i64: 4, 4>}, {transform_indices = @transform_8, window_bounds = array<i64: 1, 8, 32>}, {transform_indices = @transform_9, window_bounds = array<i64: 1, 8, 32>}]} {
    %c0 = arith.constant 0 : index
    %c0_0 = arith.constant 0 : index
    %c0_1 = arith.constant 0 : index
    %0 = vector.load %arg2[%c0, %c0_0, %c0_1] : memref<1x8x32xf32, #tpu.memory_space<vmem>>, vector<1x8x32xf32>
    %1 = vector.shape_cast %0 : vector<1x8x32xf32> to vector<8x32xf32>
    %c0_2 = arith.constant 0 : index
    %c0_3 = arith.constant 0 : index
    %2 = vector.load %arg3[%c0_2, %c0_3] : memref<32x48xf32, #tpu.memory_space<vmem>>, vector<32x48xf32>
    %cst = arith.constant dense<0.000000e+00> : vector<8x48xf32>
    %3 = tpu.matmul %1, %2, %cst {dimension_numbers = #tpu.dot_dimension_numbers<[1], [0], [0], [1], [0, 0, 1, 1], [], []>} : vector<8x32xf32>, vector<32x48xf32>, vector<8x48xf32> -> vector<8x48xf32>
    %4 = vector.extract_strided_slice %3 {offsets = [0, 0], sizes = [8, 16], strides = [1, 1]} : vector<8x48xf32> to vector<8x16xf32>
    %5 = vector.extract_strided_slice %3 {offsets = [0, 16], sizes = [8, 16], strides = [1, 1]} : vector<8x48xf32> to vector<8x16xf32>
    %6 = vector.extract_strided_slice %3 {offsets = [0, 32], sizes = [8, 16], strides = [1, 1]} : vector<8x48xf32> to vector<8x16xf32>
    %c0_4 = arith.constant 0 : index
    %c0_5 = arith.constant 0 : index
    %7 = vector.load %arg4[%c0_4, %c0_5] : memref<16x48xf32, #tpu.memory_space<vmem>>, vector<16x48xf32>
    %cst_6 = arith.constant dense<0.000000e+00> : vector<8x48xf32>
    %8 = tpu.matmul %4, %7, %cst_6 {dimension_numbers = #tpu.dot_dimension_numbers<[1], [0], [0], [1], [0, 0, 1, 1], [], []>} : vector<8x16xf32>, vector<16x48xf32>, vector<8x48xf32> -> vector<8x48xf32>
    %c0_7 = arith.constant 0 : index
    %c0_8 = arith.constant 0 : index
    %9 = vector.load %arg5[%c0_7, %c0_8] : memref<16x32xf32, #tpu.memory_space<vmem>>, vector<16x32xf32>
    %cst_9 = arith.constant dense<0.000000e+00> : vector<8x32xf32>
    %10 = tpu.matmul %5, %9, %cst_9 {dimension_numbers = #tpu.dot_dimension_numbers<[1], [0], [0], [1], [0, 0, 1, 1], [], []>} : vector<8x16xf32>, vector<16x32xf32>, vector<8x32xf32> -> vector<8x32xf32>
    %11 = vector.extract_strided_slice %8 {offsets = [0, 0], sizes = [8, 16], strides = [1, 1]} : vector<8x48xf32> to vector<8x16xf32>
    %12 = vector.extract_strided_slice %8 {offsets = [0, 16], sizes = [8, 32], strides = [1, 1]} : vector<8x48xf32> to vector<8x32xf32>
    %13 = vector.extract_strided_slice %10 {offsets = [0, 0], sizes = [8, 16], strides = [1, 1]} : vector<8x32xf32> to vector<8x16xf32>
    %14 = vector.extract_strided_slice %10 {offsets = [0, 16], sizes = [8, 16], strides = [1, 1]} : vector<8x32xf32> to vector<8x16xf32>
    %c0_10 = arith.constant 0 : index
    %c0_11 = arith.constant 0 : index
    %15 = vector.load %arg7[%c0_10, %c0_11] : memref<8x2xf32, #tpu.memory_space<vmem>>, vector<8x2xf32>
    %16 = vector.shape_cast %15 : vector<8x2xf32> to vector<8x1x2xf32>
    %c0_12 = arith.constant 0 : index
    %c0_13 = arith.constant 0 : index
    %17 = vector.load %arg8[%c0_12, %c0_13] : memref<8x2xf32, #tpu.memory_space<vmem>>, vector<8x2xf32>
    %18 = vector.shape_cast %17 : vector<8x2xf32> to vector<8x1x2xf32>
    %19 = vector.shape_cast %6 : vector<8x16xf32> to vector<8x4x4xf32>
    %20 = vector.extract_strided_slice %19 {offsets = [0, 0, 0], sizes = [8, 4, 2], strides = [1, 1, 1]} : vector<8x4x4xf32> to vector<8x4x2xf32>
    %21 = vector.extract_strided_slice %19 {offsets = [0, 0, 2], sizes = [8, 4, 2], strides = [1, 1, 1]} : vector<8x4x4xf32> to vector<8x4x2xf32>
    %22 = vector.extract_strided_slice %20 {offsets = [0, 0, 0], sizes = [8, 4, 1], strides = [1, 1, 1]} : vector<8x4x2xf32> to vector<8x4x1xf32>
    %23 = vector.extract_strided_slice %20 {offsets = [0, 0, 1], sizes = [8, 4, 1], strides = [1, 1, 1]} : vector<8x4x2xf32> to vector<8x4x1xf32>
    %24 = vector.broadcast %16 : vector<8x1x2xf32> to vector<8x4x2xf32>
    %25 = arith.mulf %20, %24 : vector<8x4x2xf32>
    %cst_14 = arith.constant 0.000000e+00 : f32
    %26 = vector.broadcast %cst_14 : f32 to vector<8x4x1xf32>
    %27 = arith.subf %26, %23 : vector<8x4x1xf32>
    %28 = tpu.concatenate %27, %22 in 2 : vector<8x4x1xf32>, vector<8x4x1xf32> -> vector<8x4x2xf32>
    %29 = vector.broadcast %18 : vector<8x1x2xf32> to vector<8x4x2xf32>
    %30 = arith.mulf %28, %29 : vector<8x4x2xf32>
    %31 = arith.addf %25, %30 : vector<8x4x2xf32>
    %32 = tpu.concatenate %31, %21 in 2 : vector<8x4x2xf32>, vector<8x4x2xf32> -> vector<8x4x4xf32>
    %33 = vector.shape_cast %14 : vector<8x16xf32> to vector<8x4x4xf32>
    %34 = vector.extract_strided_slice %33 {offsets = [0, 0, 0], sizes = [8, 4, 2], strides = [1, 1, 1]} : vector<8x4x4xf32> to vector<8x4x2xf32>
    %35 = vector.extract_strided_slice %33 {offsets = [0, 0, 2], sizes = [8, 4, 2], strides = [1, 1, 1]} : vector<8x4x4xf32> to vector<8x4x2xf32>
    %36 = vector.extract_strided_slice %34 {offsets = [0, 0, 0], sizes = [8, 4, 1], strides = [1, 1, 1]} : vector<8x4x2xf32> to vector<8x4x1xf32>
    %37 = vector.extract_strided_slice %34 {offsets = [0, 0, 1], sizes = [8, 4, 1], strides = [1, 1, 1]} : vector<8x4x2xf32> to vector<8x4x1xf32>
    %38 = vector.broadcast %16 : vector<8x1x2xf32> to vector<8x4x2xf32>
    %39 = arith.mulf %34, %38 : vector<8x4x2xf32>
    %cst_15 = arith.constant 0.000000e+00 : f32
    %40 = vector.broadcast %cst_15 : f32 to vector<8x4x1xf32>
    %41 = arith.subf %40, %37 : vector<8x4x1xf32>
    %42 = tpu.concatenate %41, %36 in 2 : vector<8x4x1xf32>, vector<8x4x1xf32> -> vector<8x4x2xf32>
    %43 = vector.broadcast %18 : vector<8x1x2xf32> to vector<8x4x2xf32>
    %44 = arith.mulf %42, %43 : vector<8x4x2xf32>
    %45 = arith.addf %39, %44 : vector<8x4x2xf32>
    %46 = tpu.concatenate %45, %35 in 2 : vector<8x4x2xf32>, vector<8x4x2xf32> -> vector<8x4x4xf32>
    %47 = vector.shape_cast %32 : vector<8x4x4xf32> to vector<8x16xf32>
    %48 = tpu.concatenate %4, %47 in 1 : vector<8x16xf32>, vector<8x16xf32> -> vector<8x32xf32>
    %c0_16 = arith.constant 0 : index
    %c0_17 = arith.constant 0 : index
    %c0_18 = arith.constant 0 : index
    %49 = vector.load %arg11[%c0_16, %c0_17, %c0_18] : memref<1x8x32xf32, #tpu.memory_space<vmem>>, vector<1x8x32xf32>
    %50 = vector.shape_cast %49 : vector<1x8x32xf32> to vector<8x32xf32>
    %51 = vector.shape_cast %48 : vector<8x32xf32> to vector<1x8x32xf32>
    tpu.vector_store %arg11[%c0_16, %c0_17, %c0_18], %51 {strides = array<i32>} : memref<1x8x32xf32, #tpu.memory_space<vmem>>, vector<1x8x32xf32>,
    %52 = vector.shape_cast %13 : vector<8x16xf32> to vector<8x4x4xf32>
    %53 = tpu.concatenate %52, %46 in 2 : vector<8x4x4xf32>, vector<8x4x4xf32> -> vector<8x4x8xf32>
    %54 = vector.shape_cast %11 : vector<8x16xf32> to vector<8x4x4xf32>
    %55 = tpu.concatenate %54, %32 in 2 : vector<8x4x4xf32>, vector<8x4x4xf32> -> vector<8x4x8xf32>
    %56 = vector.shape_cast %12 : vector<8x32xf32> to vector<8x4x8xf32>
    "tpu.trace_start"() <{level = 10 : i32, message = "snd,smd->snm"}> : () -> ()
    %cst_19 = arith.constant dense<0.000000e+00> : vector<8x4x4xf32>
    %57 = tpu.matmul %53, %55, %cst_19 {dimension_numbers = #tpu.dot_dimension_numbers<[2], [2], [1], [1], [0, 0, 0, 1, 1, 1], [0], [0]>} : vector<8x4x8xf32>, vector<8x4x8xf32>, vector<8x4x4xf32> -> vector<8x4x4xf32>
    "tpu.trace_stop"() : () -> ()
    %c0_20 = arith.constant 0 : index
    %c0_21 = arith.constant 0 : index
    %58 = vector.load %arg9[%c0_20, %c0_21] : memref<4x4xf32, #tpu.memory_space<vmem>>, vector<4x4xf32>
    %59 = vector.shape_cast %58 : vector<4x4xf32> to vector<1x4x4xf32>
    %60 = vector.broadcast %59 : vector<1x4x4xf32> to vector<8x4x4xf32>
    %61 = arith.addf %57, %60 : vector<8x4x4xf32>
    %cst_22 = arith.constant dense<0xFF800000> : vector<8x4xf32>
    %62 = vector.multi_reduction <maximumf>, %61, %cst_22 [2] : vector<8x4x4xf32> to vector<8x4xf32>
    %63 = vector.shape_cast %62 : vector<8x4xf32> to vector<8x4x1xf32>
    %64 = vector.broadcast %63 : vector<8x4x1xf32> to vector<8x4x4xf32>
    %65 = arith.subf %61, %64 : vector<8x4x4xf32>
    %66 = math.exp %65 : vector<8x4x4xf32>
    %cst_23 = arith.constant dense<0.000000e+00> : vector<8x4xf32>
    %67 = vector.multi_reduction <add>, %66, %cst_23 [2] : vector<8x4x4xf32> to vector<8x4xf32>
    %68 = vector.shape_cast %67 : vector<8x4xf32> to vector<8x4x1xf32>
    %69 = tpu.reciprocal %68 {approx = true} : vector<8x4x1xf32> -> vector<8x4x1xf32>
    %70 = vector.broadcast %69 : vector<8x4x1xf32> to vector<8x4x4xf32>
    %71 = arith.mulf %66, %70 : vector<8x4x4xf32>
    "tpu.trace_start"() <{level = 10 : i32, message = "snm,smd->snd"}> : () -> ()
    %cst_24 = arith.constant dense<0.000000e+00> : vector<8x4x8xf32>
    %72 = tpu.matmul %71, %56, %cst_24 {dimension_numbers = #tpu.dot_dimension_numbers<[2], [1], [1], [2], [0, 0, 0, 1, 1, 2], [0], [0]>} : vector<8x4x4xf32>, vector<8x4x8xf32>, vector<8x4x8xf32> -> vector<8x4x8xf32>
    "tpu.trace_stop"() : () -> ()
    %73 = vector.shape_cast %72 : vector<8x4x8xf32> to vector<8x32xf32>
    %c0_25 = arith.constant 0 : index
    %c0_26 = arith.constant 0 : index
    %74 = vector.load %arg6[%c0_25, %c0_26] : memref<32x32xf32, #tpu.memory_space<vmem>>, vector<32x32xf32>
    %cst_27 = arith.constant dense<0.000000e+00> : vector<8x32xf32>
    %75 = tpu.matmul %73, %74, %cst_27 {dimension_numbers = #tpu.dot_dimension_numbers<[1], [0], [0], [1], [0, 0, 1, 1], [], []>} : vector<8x32xf32>, vector<32x32xf32>, vector<8x32xf32> -> vector<8x32xf32>
    %c0_28 = arith.constant 0 : index
    %c0_29 = arith.constant 0 : index
    %c0_30 = arith.constant 0 : index
    %76 = vector.load %arg10[%c0_28, %c0_29, %c0_30] : memref<1x8x32xf32, #tpu.memory_space<vmem>>, vector<1x8x32xf32>
    %77 = vector.shape_cast %76 : vector<1x8x32xf32> to vector<8x32xf32>
    %78 = vector.shape_cast %75 : vector<8x32xf32> to vector<1x8x32xf32>
    tpu.vector_store %arg10[%c0_28, %c0_29, %c0_30], %78 {strides = array<i32>} : memref<1x8x32xf32, #tpu.memory_space<vmem>>, vector<1x8x32xf32>,
    return
  }
  func.func @transform_0(%arg0: i32, %arg1: i32) -> (i32, i32, i32) {
    %c0_i32 = arith.constant 0 : i32
    %c0_i32_0 = arith.constant 0 : i32
    return %arg0, %arg1, %c0_i32 : i32, i32, i32
  }
  func.func @transform_1(%arg0: i32, %arg1: i32) -> (i32, i32) {
    %c0_i32 = arith.constant 0 : i32
    %c0_i32_0 = arith.constant 0 : i32
    %c0_i32_1 = arith.constant 0 : i32
    return %c0_i32, %c0_i32_0 : i32, i32
  }
  func.func @transform_2(%arg0: i32, %arg1: i32) -> (i32, i32) {
    %c0_i32 = arith.constant 0 : i32
    %c0_i32_0 = arith.constant 0 : i32
    %c0_i32_1 = arith.constant 0 : i32
    return %c0_i32, %c0_i32_0 : i32, i32
  }
  func.func @transform_3(%arg0: i32, %arg1: i32) -> (i32, i32) {
    %c0_i32 = arith.constant 0 : i32
    %c0_i32_0 = arith.constant 0 : i32
    %c0_i32_1 = arith.constant 0 : i32
    return %c0_i32, %c0_i32_0 : i32, i32
  }
  func.func @transform_4(%arg0: i32, %arg1: i32) -> (i32, i32) {
    %c0_i32 = arith.constant 0 : i32
    %c0_i32_0 = arith.constant 0 : i32
    %c0_i32_1 = arith.constant 0 : i32
    return %c0_i32, %c0_i32_0 : i32, i32
  }
  func.func @transform_5(%arg0: i32, %arg1: i32) -> (i32, i32) {
    %c0_i32 = arith.constant 0 : i32
    %c0_i32_0 = arith.constant 0 : i32
    return %arg1, %c0_i32 : i32, i32
  }
  func.func @transform_6(%arg0: i32, %arg1: i32) -> (i32, i32) {
    %c0_i32 = arith.constant 0 : i32
    %c0_i32_0 = arith.constant 0 : i32
    return %arg1, %c0_i32 : i32, i32
  }
  func.func @transform_7(%arg0: i32, %arg1: i32) -> (i32, i32) {
    %c0_i32 = arith.constant 0 : i32
    %c0_i32_0 = arith.constant 0 : i32
    %c0_i32_1 = arith.constant 0 : i32
    return %c0_i32, %c0_i32_0 : i32, i32
  }
  func.func @transform_8(%arg0: i32, %arg1: i32) -> (i32, i32, i32) {
    %c0_i32 = arith.constant 0 : i32
    %c0_i32_0 = arith.constant 0 : i32
    return %arg0, %arg1, %c0_i32 : i32, i32, i32
  }
  func.func @transform_9(%arg0: i32, %arg1: i32) -> (i32, i32, i32) {
    %c0_i32 = arith.constant 0 : i32
    %c0_i32_0 = arith.constant 0 : i32
    return %arg0, %arg1, %c0_i32 : i32, i32, i32
  }
}

module attributes {stable_mosaic.version = 11 : i64} {
  func.func @mla_kernel(%arg0: i32, %arg1: i32, %arg2: memref<1x8x32xf32, #tpu.memory_space<vmem>>, %arg3: memref<32x48xf32, #tpu.memory_space<vmem>>, %arg4: memref<16x48xf32, #tpu.memory_space<vmem>>, %arg5: memref<16x32xf32, #tpu.memory_space<vmem>>, %arg6: memref<32x32xf32, #tpu.memory_space<vmem>>, %arg7: memref<8x2xf32, #tpu.memory_space<vmem>>, %arg8: memref<8x2xf32, #tpu.memory_space<vmem>>, %arg9: memref<4x4xf32, #tpu.memory_space<vmem>>, %arg10: memref<1x8x32xf32, #tpu.memory_space<vmem>>, %arg11: memref<1x8x32xf32, #tpu.memory_space<vmem>>) attributes {dimension_semantics = [#tpu.dimension_semantics<parallel>, #tpu.dimension_semantics<parallel>], iteration_bounds = array<i64: 2, 1>, scalar_prefetch = 0 : i64, scratch_operands = 0 : i64, tpu.core_type = #tpu.core_type<tc>, window_params = [{transform_indices = @transform_0, window_bounds = array<i64: 1, 8, 32>}, {pipeline_mode = #tpu.pipeline_mode<synchronous>, transform_indices = @transform_1, window_bounds = array<i64: 32, 48>}, {pipeline_mode = #tpu.pipeline_mode<synchronous>, transform_indices = @transform_2, window_bounds = array<i64: 16, 48>}, {pipeline_mode = #tpu.pipeline_mode<synchronous>, transform_indices = @transform_3, window_bounds = array<i64: 16, 32>}, {pipeline_mode = #tpu.pipeline_mode<synchronous>, transform_indices = @transform_4, window_bounds = array<i64: 32, 32>}, {transform_indices = @transform_5, window_bounds = array<i64: 8, 2>}, {transform_indices = @transform_6, window_bounds = array<i64: 8, 2>}, {pipeline_mode = #tpu.pipeline_mode<synchronous>, transform_indices = @transform_7, window_bounds = array<i64: 4, 4>}, {transform_indices = @transform_8, window_bounds = array<i64: 1, 8, 32>}, {transform_indices = @transform_9, window_bounds = array<i64: 1, 8, 32>}]} {
    %c0 = arith.constant 0 : index
    %c0_0 = arith.constant 0 : index
    %c0_1 = arith.constant 0 : index
    %0 = vector.load %arg2[%c0, %c0_0, %c0_1] : memref<1x8x32xf32, #tpu.memory_space<vmem>>, vector<1x8x32xf32>
    %1 = vector.shape_cast %0 : vector<1x8x32xf32> to vector<8x32xf32>
    %c0_2 = arith.constant 0 : index
    %c0_3 = arith.constant 0 : index
    %2 = vector.load %arg3[%c0_2, %c0_3] : memref<32x48xf32, #tpu.memory_space<vmem>>, vector<32x48xf32>
    %cst = arith.constant dense<0.000000e+00> : vector<8x48xf32>
    %3 = tpu.matmul %1, %2, %cst {dimension_numbers = #tpu.dot_dimension_numbers<[1], [0], [0], [1], [0, 0, 1, 1], [], []>} : vector<8x32xf32>, vector<32x48xf32>, vector<8x48xf32> -> vector<8x48xf32>
    %4 = vector.extract_strided_slice %3 {offsets = [0, 0], sizes = [8, 16], strides = [1, 1]} : vector<8x48xf32> to vector<8x16xf32>
    %5 = vector.extract_strided_slice %3 {offsets = [0, 16], sizes = [8, 16], strides = [1, 1]} : vector<8x48xf32> to vector<8x16xf32>
    %6 = vector.extract_strided_slice %3 {offsets = [0, 32], sizes = [8, 16], strides = [1, 1]} : vector<8x48xf32> to vector<8x16xf32>
    %c0_4 = arith.constant 0 : index
    %c0_5 = arith.constant 0 : index
    %7 = vector.load %arg4[%c0_4, %c0_5] : memref<16x48xf32, #tpu.memory_space<vmem>>, vector<16x48xf32>
    %cst_6 = arith.constant dense<0.000000e+00> : vector<8x48xf32>
    %8 = tpu.matmul %4, %7, %cst_6 {dimension_numbers = #tpu.dot_dimension_numbers<[1], [0], [0], [1], [0, 0, 1, 1], [], []>} : vector<8x16xf32>, vector<16x48xf32>, vector<8x48xf32> -> vector<8x48xf32>
    %c0_7 = arith.constant 0 : index
    %c0_8 = arith.constant 0 : index
    %9 = vector.load %arg5[%c0_7, %c0_8] : memref<16x32xf32, #tpu.memory_space<vmem>>, vector<16x32xf32>
    %cst_9 = arith.constant dense<0.000000e+00> : vector<8x32xf32>
    %10 = tpu.matmul %5, %9, %cst_9 {dimension_numbers = #tpu.dot_dimension_numbers<[1], [0], [0], [1], [0, 0, 1, 1], [], []>} : vector<8x16xf32>, vector<16x32xf32>, vector<8x32xf32> -> vector<8x32xf32>
    %11 = vector.extract_strided_slice %8 {offsets = [0, 0], sizes = [8, 16], strides = [1, 1]} : vector<8x48xf32> to vector<8x16xf32>
    %12 = vector.extract_strided_slice %8 {offsets = [0, 16], sizes = [8, 32], strides = [1, 1]} : vector<8x48xf32> to vector<8x32xf32>
    %13 = vector.extract_strided_slice %10 {offsets = [0, 0], sizes = [8, 16], strides = [1, 1]} : vector<8x32xf32> to vector<8x16xf32>
    %14 = vector.extract_strided_slice %10 {offsets = [0, 16], sizes = [8, 16], strides = [1, 1]} : vector<8x32xf32> to vector<8x16xf32>
    %c0_10 = arith.constant 0 : index
    %c0_11 = arith.constant 0 : index
    %15 = vector.load %arg7[%c0_10, %c0_11] : memref<8x2xf32, #tpu.memory_space<vmem>>, vector<8x2xf32>
    %16 = vector.shape_cast %15 : vector<8x2xf32> to vector<8x1x2xf32>
    %c0_12 = arith.constant 0 : index
    %c0_13 = arith.constant 0 : index
    %17 = vector.load %arg8[%c0_12, %c0_13] : memref<8x2xf32, #tpu.memory_space<vmem>>, vector<8x2xf32>
    %18 = vector.shape_cast %17 : vector<8x2xf32> to vector<8x1x2xf32>
    %19 = vector.shape_cast %6 : vector<8x16xf32> to vector<8x4x4xf32>
    %20 = vector.extract_strided_slice %19 {offsets = [0, 0, 0], sizes = [8, 4, 2], strides = [1, 1, 1]} : vector<8x4x4xf32> to vector<8x4x2xf32>
    %21 = vector.extract_strided_slice %19 {offsets = [0, 0, 2], sizes = [8, 4, 2], strides = [1, 1, 1]} : vector<8x4x4xf32> to vector<8x4x2xf32>
    %22 = vector.extract_strided_slice %20 {offsets = [0, 0, 0], sizes = [8, 4, 1], strides = [1, 1, 1]} : vector<8x4x2xf32> to vector<8x4x1xf32>
    %23 = vector.extract_strided_slice %20 {offsets = [0, 0, 1], sizes = [8, 4, 1], strides = [1, 1, 1]} : vector<8x4x2xf32> to vector<8x4x1xf32>
    %24 = vector.broadcast %16 : vector<8x1x2xf32> to vector<8x4x2xf32>
    %25 = arith.mulf %20, %24 : vector<8x4x2xf32>
    %cst_14 = arith.constant 0.000000e+00 : f32
    %26 = vector.broadcast %cst_14 : f32 to vector<8x4x1xf32>
    %27 = arith.subf %26, %23 : vector<8x4x1xf32>
    %28 = tpu.concatenate %27, %22 in 2 : vector<8x4x1xf32>, vector<8x4x1xf32> -> vector<8x4x2xf32>
    %29 = vector.broadcast %18 : vector<8x1x2xf32> to vector<8x4x2xf32>
    %30 = arith.mulf %28, %29 : vector<8x4x2xf32>
    %31 = arith.addf %25, %30 : vector<8x4x2xf32>
    %32 = tpu.concatenate %31, %21 in 2 : vector<8x4x2xf32>, vector<8x4x2xf32> -> vector<8x4x4xf32>
    %33 = vector.shape_cast %14 : vector<8x16xf32> to vector<8x4x4xf32>
    %34 = vector.extract_strided_slice %33 {offsets = [0, 0, 0], sizes = [8, 4, 2], strides = [1, 1, 1]} : vector<8x4x4xf32> to vector<8x4x2xf32>
    %35 = vector.extract_strided_slice %33 {offsets = [0, 0, 2], sizes = [8, 4, 2], strides = [1, 1, 1]} : vector<8x4x4xf32> to vector<8x4x2xf32>
    %36 = vector.extract_strided_slice %34 {offsets = [0, 0, 0], sizes = [8, 4, 1], strides = [1, 1, 1]} : vector<8x4x2xf32> to vector<8x4x1xf32>
    %37 = vector.extract_strided_slice %34 {offsets = [0, 0, 1], sizes = [8, 4, 1], strides = [1, 1, 1]} : vector<8x4x2xf32> to vector<8x4x1xf32>
    %38 = vector.broadcast %16 : vector<8x1x2xf32> to vector<8x4x2xf32>
    %39 = arith.mulf %34, %38 : vector<8x4x2xf32>
    %cst_15 = arith.constant 0.000000e+00 : f32
    %40 = vector.broadcast %cst_15 : f32 to vector<8x4x1xf32>
    %41 = arith.subf %40, %37 : vector<8x4x1xf32>
    %42 = tpu.concatenate %41, %36 in 2 : vector<8x4x1xf32>, vector<8x4x1xf32> -> vector<8x4x2xf32>
    %43 = vector.broadcast %18 : vector<8x1x2xf32> to vector<8x4x2xf32>
    %44 = arith.mulf %42, %43 : vector<8x4x2xf32>
    %45 = arith.addf %39, %44 : vector<8x4x2xf32>
    %46 = tpu.concatenate %45, %35 in 2 : vector<8x4x2xf32>, vector<8x4x2xf32> -> vector<8x4x4xf32>
    %47 = vector.shape_cast %32 : vector<8x4x4xf32> to vector<8x16xf32>
    %48 = tpu.concatenate %4, %47 in 1 : vector<8x16xf32>, vector<8x16xf32> -> vector<8x32xf32>
    %c0_16 = arith.constant 0 : index
    %c0_17 = arith.constant 0 : index
    %c0_18 = arith.constant 0 : index
    %49 = vector.load %arg11[%c0_16, %c0_17, %c0_18] : memref<1x8x32xf32, #tpu.memory_space<vmem>>, vector<1x8x32xf32>
    %50 = vector.shape_cast %49 : vector<1x8x32xf32> to vector<8x32xf32>
    %51 = vector.shape_cast %48 : vector<8x32xf32> to vector<1x8x32xf32>
    tpu.vector_store %arg11[%c0_16, %c0_17, %c0_18], %51 {strides = array<i32>} : memref<1x8x32xf32, #tpu.memory_space<vmem>>, vector<1x8x32xf32>,
    %52 = vector.shape_cast %13 : vector<8x16xf32> to vector<8x4x4xf32>
    %53 = tpu.concatenate %52, %46 in 2 : vector<8x4x4xf32>, vector<8x4x4xf32> -> vector<8x4x8xf32>
    %54 = vector.shape_cast %11 : vector<8x16xf32> to vector<8x4x4xf32>
    %55 = tpu.concatenate %54, %32 in 2 : vector<8x4x4xf32>, vector<8x4x4xf32> -> vector<8x4x8xf32>
    %56 = vector.shape_cast %12 : vector<8x32xf32> to vector<8x4x8xf32>
    "tpu.trace_start"() <{level = 10 : i32, message = "snd,smd->snm"}> : () -> ()
    %cst_19 = arith.constant dense<0.000000e+00> : vector<8x4x4xf32>
    %57 = tpu.matmul %53, %55, %cst_19 {dimension_numbers = #tpu.dot_dimension_numbers<[2], [2], [1], [1], [0, 0, 0, 1, 1, 1], [0], [0]>} : vector<8x4x8xf32>, vector<8x4x8xf32>, vector<8x4x4xf32> -> vector<8x4x4xf32>
    "tpu.trace_stop"() : () -> ()
    %c0_20 = arith.constant 0 : index
    %c0_21 = arith.constant 0 : index
    %58 = vector.load %arg9[%c0_20, %c0_21] : memref<4x4xf32, #tpu.memory_space<vmem>>, vector<4x4xf32>
    %59 = vector.shape_cast %58 : vector<4x4xf32> to vector<1x4x4xf32>
    %60 = vector.broadcast %59 : vector<1x4x4xf32> to vector<8x4x4xf32>
    %61 = arith.addf %57, %60 : vector<8x4x4xf32>
    %cst_22 = arith.constant dense<0xFF800000> : vector<8x4xf32>
    %62 = vector.multi_reduction <maximumf>, %61, %cst_22 [2] : vector<8x4x4xf32> to vector<8x4xf32>
    %63 = vector.shape_cast %62 : vector<8x4xf32> to vector<8x4x1xf32>
    %64 = vector.broadcast %63 : vector<8x4x1xf32> to vector<8x4x4xf32>
    %65 = arith.subf %61, %64 : vector<8x4x4xf32>
    %66 = math.exp %65 : vector<8x4x4xf32>
    %cst_23 = arith.constant dense<0.000000e+00> : vector<8x4xf32>
    %67 = vector.multi_reduction <add>, %66, %cst_23 [2] : vector<8x4x4xf32> to vector<8x4xf32>
    %68 = vector.shape_cast %67 : vector<8x4xf32> to vector<8x4x1xf32>
    %69 = tpu.reciprocal %68 {approx = true} : vector<8x4x1xf32> -> vector<8x4x1xf32>
    %70 = vector.broadcast %69 : vector<8x4x1xf32> to vector<8x4x4xf32>
    %71 = arith.mulf %66, %70 : vector<8x4x4xf32>
    "tpu.trace_start"() <{level = 10 : i32, message = "snm,smd->snd"}> : () -> ()
    %cst_24 = arith.constant dense<0.000000e+00> : vector<8x4x8xf32>
    %72 = tpu.matmul %71, %56, %cst_24 {dimension_numbers = #tpu.dot_dimension_numbers<[2], [1], [1], [2], [0, 0, 0, 1, 1, 2], [0], [0]>} : vector<8x4x4xf32>, vector<8x4x8xf32>, vector<8x4x8xf32> -> vector<8x4x8xf32>
    "tpu.trace_stop"() : () -> ()
    %73 = vector.shape_cast %72 : vector<8x4x8xf32> to vector<8x32xf32>
    %c0_25 = arith.constant 0 : index
    %c0_26 = arith.constant 0 : index
    %74 = vector.load %arg6[%c0_25, %c0_26] : memref<32x32xf32, #tpu.memory_space<vmem>>, vector<32x32xf32>
    %cst_27 = arith.constant dense<0.000000e+00> : vector<8x32xf32>
    %75 = tpu.matmul %73, %74, %cst_27 {dimension_numbers = #tpu.dot_dimension_numbers<[1], [0], [0], [1], [0, 0, 1, 1], [], []>} : vector<8x32xf32>, vector<32x32xf32>, vector<8x32xf32> -> vector<8x32xf32>
    %c0_28 = arith.constant 0 : index
    %c0_29 = arith.constant 0 : index
    %c0_30 = arith.constant 0 : index
    %76 = vector.load %arg10[%c0_28, %c0_29, %c0_30] : memref<1x8x32xf32, #tpu.memory_space<vmem>>, vector<1x8x32xf32>
    %77 = vector.shape_cast %76 : vector<1x8x32xf32> to vector<8x32xf32>
    %78 = vector.shape_cast %75 : vector<8x32xf32> to vector<1x8x32xf32>
    tpu.vector_store %arg10[%c0_28, %c0_29, %c0_30], %78 {strides = array<i32>} : memref<1x8x32xf32, #tpu.memory_space<vmem>>, vector<1x8x32xf32>,
    return
  }
  func.func @transform_0(%arg0: i32, %arg1: i32) -> (i32, i32, i32) {
    %c0_i32 = arith.constant 0 : i32
    %c0_i32_0 = arith.constant 0 : i32
    return %arg0, %arg1, %c0_i32 : i32, i32, i32
  }
  func.func @transform_1(%arg0: i32, %arg1: i32) -> (i32, i32) {
    %c0_i32 = arith.constant 0 : i32
    %c0_i32_0 = arith.constant 0 : i32
    %c0_i32_1 = arith.constant 0 : i32
    return %c0_i32, %c0_i32_0 : i32, i32
  }
  func.func @transform_2(%arg0: i32, %arg1: i32) -> (i32, i32) {
    %c0_i32 = arith.constant 0 : i32
    %c0_i32_0 = arith.constant 0 : i32
    %c0_i32_1 = arith.constant 0 : i32
    return %c0_i32, %c0_i32_0 : i32, i32
  }
  func.func @transform_3(%arg0: i32, %arg1: i32) -> (i32, i32) {
    %c0_i32 = arith.constant 0 : i32
    %c0_i32_0 = arith.constant 0 : i32
    %c0_i32_1 = arith.constant 0 : i32
    return %c0_i32, %c0_i32_0 : i32, i32
  }
  func.func @transform_4(%arg0: i32, %arg1: i32) -> (i32, i32) {
    %c0_i32 = arith.constant 0 : i32
    %c0_i32_0 = arith.constant 0 : i32
    %c0_i32_1 = arith.constant 0 : i32
    return %c0_i32, %c0_i32_0 : i32, i32
  }
  func.func @transform_5(%arg0: i32, %arg1: i32) -> (i32, i32) {
    %c0_i32 = arith.constant 0 : i32
    %c0_i32_0 = arith.constant 0 : i32
    return %arg1, %c0_i32 : i32, i32
  }
  func.func @transform_6(%arg0: i32, %arg1: i32) -> (i32, i32) {
    %c0_i32 = arith.constant 0 : i32
    %c0_i32_0 = arith.constant 0 : i32
    return %arg1, %c0_i32 : i32, i32
  }
  func.func @transform_7(%arg0: i32, %arg1: i32) -> (i32, i32) {
    %c0_i32 = arith.constant 0 : i32
    %c0_i32_0 = arith.constant 0 : i32
    %c0_i32_1 = arith.constant 0 : i32
    return %c0_i32, %c0_i32_0 : i32, i32
  }
  func.func @transform_8(%arg0: i32, %arg1: i32) -> (i32, i32, i32) {
    %c0_i32 = arith.constant 0 : i32
    %c0_i32_0 = arith.constant 0 : i32
    return %arg0, %arg1, %c0_i32 : i32, i32, i32
  }
  func.func @transform_9(%arg0: i32, %arg1: i32) -> (i32, i32, i32) {
    %c0_i32 = arith.constant 0 : i32
    %c0_i32_0 = arith.constant 0 : i32
    return %arg0, %arg1, %c0_i32 : i32, i32, i32
  }
}

</mosaic_0001>

<llo_original>
// kernel: tpu_custom_call.1
$region0: #{tpu_custom_call.1}
  #allocation0 [shape = 'u32[]', space=smem, size = 0x4, offset = 0x4, fixed_abs, tag = 'smem constant byte address 0x4 - core index']
  #allocation1 [shape = 'u32[72,128]{1,0:T(1,128)}', space=vmem, size = 0x9000, scoped, tag = 'internal scratch']
  %s0 = inlined_call_operand.vmem [shape: f32[2,8,32], index: 0, kind: input, shape index: {}]
  %s1 = inlined_call_operand.hbm [shape: f32[32,48], index: 1, kind: input, shape index: {}]
  %s2 = inlined_call_operand.hbm [shape: f32[16,48], index: 2, kind: input, shape index: {}]
  %s3 = inlined_call_operand.hbm [shape: f32[16,32], index: 3, kind: input, shape index: {}]
  %s4 = inlined_call_operand.hbm [shape: f32[32,32], index: 4, kind: input, shape index: {}]
  %s5 = inlined_call_operand.vmem [shape: f32[8,2], index: 5, kind: input, shape index: {}]
  %s6 = inlined_call_operand.vmem [shape: f32[8,2], index: 6, kind: input, shape index: {}]
  %s7 = inlined_call_operand.vmem [shape: f32[4,4], index: 7, kind: input, shape index: {}]
  %s8 = inlined_call_operand.hbm [shape: f32[2,8,32], index: 8, kind: output, shape index: {0}]
  %s9 = inlined_call_operand.hbm [shape: f32[2,8,32], index: 9, kind: output, shape index: {1}]
  %10 = xla_tuple %s8, %s9
  %s11 = sld [smem:[#allocation0]]
  $region89: #{tpu_custom_call.1} parent=0
    _
  %s13 = ssub.s32 1, %s11
  %s14 = scalar_select 0, %s13, %s11
  $region1: #{tpu_custom_call.1} parent=0
    #allocation2 [shape = 'u8[16384]{0}', space=vmem, size = 0x4000, scoped, tag = 'input window, operand 1, single buffered']
    #allocation3 [shape = 's32[2]{0}', space=sflag, size = 0x8, scoped, tag = 'scoped memory for tpu_custom_call.1']
    #allocation4 [shape = 's32[2]{0}', space=sflag, size = 0x8, scoped, tag = 'scoped memory for tpu_custom_call.1']
    #allocation5 [shape = 'u8[8192]{0}', space=vmem, size = 0x2000, scoped, tag = 'input window, operand 2, single buffered']
    #allocation6 [shape = 's32[1]{0}', space=sflag, size = 0x4, scoped, tag = 'scoped memory for tpu_custom_call.1']
    #allocation7 [shape = 'u8[8192]{0}', space=vmem, size = 0x2000, scoped, tag = 'input window, operand 3, single buffered']
    #allocation8 [shape = 'u8[16384]{0}', space=vmem, size = 0x4000, scoped, tag = 'input window, operand 4, single buffered']
    #allocation9 [shape = 's32[1]{0}', space=sflag, size = 0x4, scoped, tag = 'scoped memory for tpu_custom_call.1']
    #allocation10 [shape = 'u8[8192]{0}', space=vmem, size = 0x2000, scoped, tag = 'output window, operand 0']
    #allocation11 [shape = 'u8[8192]{0}', space=vmem, size = 0x2000, scoped, tag = 'output window, operand 1']
    #allocation12 [shape = 's32[2]{0}', space=sflag, size = 0x8, scoped, tag = 'scoped memory for tpu_custom_call.1']
    %15 = vsyncpa [#allocation3], 0
    %16 = vsyncpa [#allocation6], 0
    %17 = vsyncpa [#allocation9], 0
    %18 = vsyncpa [#allocation4], 0
    %s19 = scalar_lea.sflag [#allocation4], 1
    %20 = vsyncpa %s19, 0
    %21 = vsyncpa [#allocation12], 0
    %s22 = scalar_lea.sflag [#allocation12], 1
    %23 = vsyncpa %s22, 0
    loop: start=0, step=1, limit=4
    $region2: #{tpu_custom_call.1} parent=1 // loop_pre_header
      _
    $region3: #{tpu_custom_call.1} parent=1 // loop_header
      %s25 = sphi 0, %s29
      %p26 = scmp.ge.s32.totalorder %s25, 4
      %s32 = sphi 0, %s44
      %s33 = sphi 0, %s40
      %s34 = sphi 0, %s32
      %s35 = sphi 0, %s33
      %s36 = sphi 0, %s34
      %s37 = sphi 0, %s35
      %s49 = sphi 0, %s51
      %s52 = sphi 0, %s49
      %s53 = sphi 0, %s52
      %s69 = sphi 0, %s53
      %s73 = sphi 0, %s73
      %s75 = sphi 0, %s73
      %s76 = sphi 0, %s75
      %s90 = sphi 0, %s76
      %s94 = sphi 0, %s94
      %s96 = sphi 0, %s94
      %s97 = sphi 0, %s96
      %s111 = sphi 0, %s97
      %s115 = sphi 0, %s115
      %s117 = sphi 0, %s115
      %s118 = sphi 0, %s117
      %s132 = sphi 0, %s118
      %s136 = sphi 0, %s136
      %s138 = sphi 0, %s136
      %s139 = sphi 0, %s138
      %s153 = sphi 0, %s139
      %s159 = sphi 0, %s161
      %s162 = sphi 0, %s159
      %s163 = sphi 0, %s162
      %s179 = sphi 0, %s163
      %s185 = sphi 0, %s187
      %s188 = sphi 0, %s185
      %s189 = sphi 0, %s188
      %s205 = sphi 0, %s189
      %s209 = sphi 0, %s209
      %s211 = sphi 0, %s209
      %s212 = sphi 0, %s211
      %s226 = sphi 0, %s212
      %s234 = sphi 0, %s236
      %s237 = sphi 0, %s234
      %s238 = sphi 0, %s237
      %s254 = sphi 0, %s238
      %s262 = sphi 0, %s264
      %s265 = sphi 0, %s262
      %s266 = sphi 0, %s265
      %s282 = sphi 0, %s266
    $region4: #{tpu_custom_call.1} parent=1 // loop_header_branch
      %28 = sbr.rel (%p26) target = $region8
    $region5: #{tpu_custom_call.1} parent=1 // loop_body
      %s30 = ssub.s32 %s25, 1
      %s31 = ssub.s32 %s25, 2
      %s38 = sadd.s32 1, %s33
      %p39 = scmp.ge.s32.totalorder %s38, 1
      %s40 = scalar_select %p39, 0, %s38
      %s41 = sadd.s32 1, %s32
      %s42 = scalar_select %p39, %s41, %s32
      %p43 = scmp.ge.s32.totalorder %s42, 2
      %s44 = scalar_select %p43, 0, %s42
      %s45 = ssub.s32 %s32, %s44
      %s46 = ssub.s32 %s33, %s40
      %s47 = sor.u32 %s45, %s46
      %p48 = scmp.eq.s32.totalorder %s47, 0
      %s50 = sadd.s32 %s49, 1
      %s51 = scalar_select %p48, %s49, %s50
      %p54 = pneg %p48
      %p55 = scmp.eq.s32.totalorder %s25, 1
      %p56 = por %p54, %p55
      %p57 = scmp.ne.s32.totalorder %s49, %s52
      %p58 = scmp.eq.s32.totalorder %s25, 0
      %p59 = por %p57, %p58
      %p60 = scmp.ne.s32.totalorder %s49, %s52
      %p61 = scmp.eq.s32.totalorder %s30, 1
      %p62 = por %p60, %p61
      %p63 = scmp.ne.s32.totalorder %s52, %s53
      %p64 = scmp.eq.s32.totalorder %s30, 0
      %p65 = por %p63, %p64
      %p66 = scmp.ne.s32.totalorder %s52, %s53
      %p67 = scmp.eq.s32.totalorder %s31, 1
      %p68 = por %p66, %p67
      %p70 = scmp.ne.s32.totalorder %s53, %s69
      %p71 = scmp.eq.s32.totalorder %s31, 0
      %p72 = por %p70, %p71
      %s74 = sadd.s32 %s73, 1
      %p77 = scmp.eq.s32.totalorder %s25, 1
      %p78 = scmp.ne.s32.totalorder %s73, %s75
      %p79 = scmp.eq.s32.totalorder %s25, 0
      %p80 = por %p78, %p79
      %p81 = scmp.ne.s32.totalorder %s73, %s75
      %p82 = scmp.eq.s32.totalorder %s30, 1
      %p83 = por %p81, %p82
      %p84 = scmp.ne.s32.totalorder %s75, %s76
      %p85 = scmp.eq.s32.totalorder %s30, 0
      %p86 = por %p84, %p85
      %p87 = scmp.ne.s32.totalorder %s75, %s76
      %p88 = scmp.eq.s32.totalorder %s31, 1
      %p89 = por %p87, %p88
      %p91 = scmp.ne.s32.totalorder %s76, %s90
      %p92 = scmp.eq.s32.totalorder %s31, 0
      %p93 = por %p91, %p92
      %s95 = sadd.s32 %s94, 1
      %p98 = scmp.eq.s32.totalorder %s25, 1
      %p99 = scmp.ne.s32.totalorder %s94, %s96
      %p100 = scmp.eq.s32.totalorder %s25, 0
      %p101 = por %p99, %p100
      %p102 = scmp.ne.s32.totalorder %s94, %s96
      %p103 = scmp.eq.s32.totalorder %s30, 1
      %p104 = por %p102, %p103
      %p105 = scmp.ne.s32.totalorder %s96, %s97
      %p106 = scmp.eq.s32.totalorder %s30, 0
      %p107 = por %p105, %p106
      %p108 = scmp.ne.s32.totalorder %s96, %s97
      %p109 = scmp.eq.s32.totalorder %s31, 1
      %p110 = por %p108, %p109
      %p112 = scmp.ne.s32.totalorder %s97, %s111
      %p113 = scmp.eq.s32.totalorder %s31, 0
      %p114 = por %p112, %p113
      %s116 = sadd.s32 %s115, 1
      %p119 = scmp.eq.s32.totalorder %s25, 1
      %p120 = scmp.ne.s32.totalorder %s115, %s117
      %p121 = scmp.eq.s32.totalorder %s25, 0
      %p122 = por %p120, %p121
      %p123 = scmp.ne.s32.totalorder %s115, %s117
      %p124 = scmp.eq.s32.totalorder %s30, 1
      %p125 = por %p123, %p124
      %p126 = scmp.ne.s32.totalorder %s117, %s118
      %p127 = scmp.eq.s32.totalorder %s30, 0
      %p128 = por %p126, %p127
      %p129 = scmp.ne.s32.totalorder %s117, %s118
      %p130 = scmp.eq.s32.totalorder %s31, 1
      %p131 = por %p129, %p130
      %p133 = scmp.ne.s32.totalorder %s118, %s132
      %p134 = scmp.eq.s32.totalorder %s31, 0
      %p135 = por %p133, %p134
      %s137 = sadd.s32 %s136, 1
      %p140 = scmp.eq.s32.totalorder %s25, 1
      %p141 = scmp.ne.s32.totalorder %s136, %s138
      %p142 = scmp.eq.s32.totalorder %s25, 0
      %p143 = por %p141, %p142
      %p144 = scmp.ne.s32.totalorder %s136, %s138
      %p145 = scmp.eq.s32.totalorder %s30, 1
      %p146 = por %p144, %p145
      %p147 = scmp.ne.s32.totalorder %s138, %s139
      %p148 = scmp.eq.s32.totalorder %s30, 0
      %p149 = por %p147, %p148
      %p150 = scmp.ne.s32.totalorder %s138, %s139
      %p151 = scmp.eq.s32.totalorder %s31, 1
      %p152 = por %p150, %p151
      %p154 = scmp.ne.s32.totalorder %s139, %s153
      %p155 = scmp.eq.s32.totalorder %s31, 0
      %p156 = por %p154, %p155
      %s157 = ssub.s32 %s33, %s40
      %p158 = scmp.eq.s32.totalorder %s157, 0
      %s160 = sadd.s32 %s159, 1
      %s161 = scalar_select %p158, %s159, %s160
      %p164 = pneg %p158
      %p165 = scmp.eq.s32.totalorder %s25, 1
      %p166 = por %p164, %p165
      %p167 = scmp.ne.s32.totalorder %s159, %s162
      %p168 = scmp.eq.s32.totalorder %s25, 0
      %p169 = por %p167, %p168
      %p170 = scmp.ne.s32.totalorder %s159, %s162
      %p171 = scmp.eq.s32.totalorder %s30, 1
      %p172 = por %p170, %p171
      %p173 = scmp.ne.s32.totalorder %s162, %s163
      %p174 = scmp.eq.s32.totalorder %s30, 0
      %p175 = por %p173, %p174
      %p176 = scmp.ne.s32.totalorder %s162, %s163
      %p177 = scmp.eq.s32.totalorder %s31, 1
      %p178 = por %p176, %p177
      %p180 = scmp.ne.s32.totalorder %s163, %s179
      %p181 = scmp.eq.s32.totalorder %s31, 0
      %p182 = por %p180, %p181
      %s183 = ssub.s32 %s33, %s40
      %p184 = scmp.eq.s32.totalorder %s183, 0
      %s186 = sadd.s32 %s185, 1
      %s187 = scalar_select %p184, %s185, %s186
      %p190 = pneg %p184
      %p191 = scmp.eq.s32.totalorder %s25, 1
      %p192 = por %p190, %p191
      %p193 = scmp.ne.s32.totalorder %s185, %s188
      %p194 = scmp.eq.s32.totalorder %s25, 0
      %p195 = por %p193, %p194
      %p196 = scmp.ne.s32.totalorder %s185, %s188
      %p197 = scmp.eq.s32.totalorder %s30, 1
      %p198 = por %p196, %p197
      %p199 = scmp.ne.s32.totalorder %s188, %s189
      %p200 = scmp.eq.s32.totalorder %s30, 0
      %p201 = por %p199, %p200
      %p202 = scmp.ne.s32.totalorder %s188, %s189
      %p203 = scmp.eq.s32.totalorder %s31, 1
      %p204 = por %p202, %p203
      %p206 = scmp.ne.s32.totalorder %s189, %s205
      %p207 = scmp.eq.s32.totalorder %s31, 0
      %p208 = por %p206, %p207
      %s210 = sadd.s32 %s209, 1
      %p213 = scmp.eq.s32.totalorder %s25, 1
      %p214 = scmp.ne.s32.totalorder %s209, %s211
      %p215 = scmp.eq.s32.totalorder %s25, 0
      %p216 = por %p214, %p215
      %p217 = scmp.ne.s32.totalorder %s209, %s211
      %p218 = scmp.eq.s32.totalorder %s30, 1
      %p219 = por %p217, %p218
      %p220 = scmp.ne.s32.totalorder %s211, %s212
      %p221 = scmp.eq.s32.totalorder %s30, 0
      %p222 = por %p220, %p221
      %p223 = scmp.ne.s32.totalorder %s211, %s212
      %p224 = scmp.eq.s32.totalorder %s31, 1
      %p225 = por %p223, %p224
      %p227 = scmp.ne.s32.totalorder %s212, %s226
      %p228 = scmp.eq.s32.totalorder %s31, 0
      %p229 = por %p227, %p228
      %s230 = ssub.s32 %s32, %s44
      %s231 = ssub.s32 %s33, %s40
      %s232 = sor.u32 %s230, %s231
      %p233 = scmp.eq.s32.totalorder %s232, 0
      %s235 = sadd.s32 %s234, 1
      %s236 = scalar_select %p233, %s234, %s235
      %p239 = pneg %p233
      %p240 = scmp.eq.s32.totalorder %s25, 1
      %p241 = por %p239, %p240
      %p242 = scmp.ne.s32.totalorder %s234, %s237
      %p243 = scmp.eq.s32.totalorder %s25, 0
      %p244 = por %p242, %p243
      %p245 = scmp.ne.s32.totalorder %s234, %s237
      %p246 = scmp.eq.s32.totalorder %s30, 1
      %p247 = por %p245, %p246
      %p248 = scmp.ne.s32.totalorder %s237, %s238
      %p249 = scmp.eq.s32.totalorder %s30, 0
      %p250 = por %p248, %p249
      %p251 = scmp.ne.s32.totalorder %s237, %s238
      %p252 = scmp.eq.s32.totalorder %s31, 1
      %p253 = por %p251, %p252
      %p255 = scmp.ne.s32.totalorder %s238, %s254
      %p256 = scmp.eq.s32.totalorder %s31, 0
      %p257 = por %p255, %p256
      %s258 = ssub.s32 %s32, %s44
      %s259 = ssub.s32 %s33, %s40
      %s260 = sor.u32 %s258, %s259
      %p261 = scmp.eq.s32.totalorder %s260, 0
      %s263 = sadd.s32 %s262, 1
      %s264 = scalar_select %p261, %s262, %s263
      %p267 = pneg %p261
      %p268 = scmp.eq.s32.totalorder %s25, 1
      %p269 = por %p267, %p268
      %p270 = scmp.ne.s32.totalorder %s262, %s265
      %p271 = scmp.eq.s32.totalorder %s25, 0
      %p272 = por %p270, %p271
      %p273 = scmp.ne.s32.totalorder %s262, %s265
      %p274 = scmp.eq.s32.totalorder %s30, 1
      %p275 = por %p273, %p274
      %p276 = scmp.ne.s32.totalorder %s265, %s266
      %p277 = scmp.eq.s32.totalorder %s30, 0
      %p278 = por %p276, %p277
      %p279 = scmp.ne.s32.totalorder %s265, %s266
      %p280 = scmp.eq.s32.totalorder %s31, 1
      %p281 = por %p279, %p280
      %p283 = scmp.ne.s32.totalorder %s266, %s282
      %p284 = scmp.eq.s32.totalorder %s31, 0
      %p285 = por %p283, %p284
      %p286 = scmp.le.s32.totalorder 1, %s25
      %p287 = scmp.lt.s32.totalorder %s25, 3
      %p288 = pnand %p286, %p287
      %p289 = pneg %p288
      // Predicated region
      $region9: #{tpu_custom_call.1} parent=5 // pred_check
        _
      $region10: #{tpu_custom_call.1} parent=5 // pred_check_branch
        %291 = sbr.rel (%p288) target = $region12
      $region11: #{tpu_custom_call.1} parent=5 // pred_region
        %s292 = ssub.s32 %s25, 1
        // Predicated region
        $region13: #{tpu_custom_call.1} parent=11 // pred_check
          %p293 = pneg %p86
        $region14: #{tpu_custom_call.1} parent=11 // pred_check_branch
          %295 = sbr.rel (%p293) target = $region16
        $region15: #{tpu_custom_call.1} parent=11 // pred_region
          %297 = vsyncadd [#allocation3], 0
          %s298 = sshll.u32 %s1, 4
          %s299 = int_to_ptr.hbm [resolvable:$true] %s298
          %s300 = sshll.u32 [#allocation2], 4
          %s301 = int_to_ptr.vmem [resolvable:$true] %s300
          %306 = dma.hbm_to_vmem [thread:$0]  %s299, 512, %s301, [#allocation3], 128, 128, 8
        $region16: #{tpu_custom_call.1} parent=11 // pred_fallthru
          _
        // Predicated region
        $region17: #{tpu_custom_call.1} parent=11 // pred_check
          %p307 = pneg %p107
        $region18: #{tpu_custom_call.1} parent=11 // pred_check_branch
          %309 = sbr.rel (%p307) target = $region20
        $region19: #{tpu_custom_call.1} parent=11 // pred_region
          %311 = vsyncadd [#allocation6], 0
          %s312 = sshll.u32 %s2, 4
          %s313 = int_to_ptr.hbm [resolvable:$true] %s312
          %s314 = sshll.u32 [#allocation5], 4
          %s315 = int_to_ptr.vmem [resolvable:$true] %s314
          %320 = dma.hbm_to_vmem [thread:$0]  %s313, 256, %s315, [#allocation6], 128, 128, 8
        $region20: #{tpu_custom_call.1} parent=11 // pred_fallthru
          _
        // Predicated region
        $region21: #{tpu_custom_call.1} parent=11 // pred_check
          %p321 = pneg %p128
        $region22: #{tpu_custom_call.1} parent=11 // pred_check_branch
          %323 = sbr.rel (%p321) target = $region24
        $region23: #{tpu_custom_call.1} parent=11 // pred_region
          %325 = vsyncadd [#allocation6], 0
          %s326 = sshll.u32 %s3, 4
          %s327 = int_to_ptr.hbm [resolvable:$true] %s326
          %s328 = sshll.u32 [#allocation7], 4
          %s329 = int_to_ptr.vmem [resolvable:$true] %s328
          %334 = dma.hbm_to_vmem [thread:$0]  %s327, 256, %s329, [#allocation6], 128, 128, 8
        $region24: #{tpu_custom_call.1} parent=11 // pred_fallthru
          _
        // Predicated region
        $region25: #{tpu_custom_call.1} parent=11 // pred_check
          %p335 = pneg %p149
        $region26: #{tpu_custom_call.1} parent=11 // pred_check_branch
          %337 = sbr.rel (%p335) target = $region28
        $region27: #{tpu_custom_call.1} parent=11 // pred_region
          %339 = vsyncadd [#allocation9], 0
          %s340 = sshll.u32 %s4, 4
          %s341 = int_to_ptr.hbm [resolvable:$true] %s340
          %s342 = sshll.u32 [#allocation8], 4
          %s343 = int_to_ptr.vmem [resolvable:$true] %s342
          %348 = dma.hbm_to_vmem [thread:$0]  %s341, 512, %s343, [#allocation9], 128, 128, 8
        $region28: #{tpu_custom_call.1} parent=11 // pred_fallthru
          _
        // Predicated region
        $region29: #{tpu_custom_call.1} parent=11 // pred_check
          %p349 = pneg %p175
        $region30: #{tpu_custom_call.1} parent=11 // pred_check_branch
          %351 = sbr.rel (%p349) target = $region32
        $region31: #{tpu_custom_call.1} parent=11 // pred_region
          %p352 = scmp.lt.s32.totalorder %s35, 0
          %s353 = scalar_select %p352, %s35, 0
          %s354 = smul.addr %s353, 8
          %s355 = scalar_lea.vmem %s5, %s354
        $region32: #{tpu_custom_call.1} parent=11 // pred_fallthru
          _
        // Predicated region
        $region33: #{tpu_custom_call.1} parent=11 // pred_check
          %p356 = pneg %p201
        $region34: #{tpu_custom_call.1} parent=11 // pred_check_branch
          %358 = sbr.rel (%p356) target = $region36
        $region35: #{tpu_custom_call.1} parent=11 // pred_region
          %p359 = scmp.lt.s32.totalorder %s35, 0
          %s360 = scalar_select %p359, %s35, 0
          %s361 = smul.addr %s360, 8
          %s362 = scalar_lea.vmem %s6, %s361
        $region36: #{tpu_custom_call.1} parent=11 // pred_fallthru
          _
        // Predicated region
        $region37: #{tpu_custom_call.1} parent=11 // pred_check
          %p363 = pneg %p222
        $region38: #{tpu_custom_call.1} parent=11 // pred_check_branch
          %365 = sbr.rel (%p363) target = $region40
        $region39: #{tpu_custom_call.1} parent=11 // pred_region
          _
        $region40: #{tpu_custom_call.1} parent=11 // pred_fallthru
          _
      $region12: #{tpu_custom_call.1} parent=5 // pred_fallthru
        _
      %p366 = scmp.lt.s32.totalorder %s25, 2
      // Predicated region
      $region41: #{tpu_custom_call.1} parent=5 // pred_check
        %p367 = pneg %p366
      $region42: #{tpu_custom_call.1} parent=5 // pred_check_branch
        %369 = sbr.rel (%p367) target = $region44
      $region43: #{tpu_custom_call.1} parent=5 // pred_region
        // Predicated region
        $region45: #{tpu_custom_call.1} parent=43 // pred_check
          %p370 = pneg %p59
        $region46: #{tpu_custom_call.1} parent=43 // pred_check_branch
          %372 = sbr.rel (%p370) target = $region48
        $region47: #{tpu_custom_call.1} parent=43 // pred_region
          %p373 = scmp.lt.s32.totalorder %s32, 1
          %s374 = scalar_select %p373, %s32, 1
          %p375 = scmp.lt.s32.totalorder %s33, 0
          %s376 = scalar_select %p375, %s33, 0
          %s377 = sadd.s32 %s376, %s374
          %s378 = smul.addr %s377, 8
          %s379 = scalar_lea.vmem %s0, %s378
        $region48: #{tpu_custom_call.1} parent=43 // pred_fallthru
          _
      $region44: #{tpu_custom_call.1} parent=5 // pred_fallthru
        _
      %p380 = scmp.le.s32.totalorder 1, %s25
      %p381 = scmp.lt.s32.totalorder %s25, 3
      %p382 = pnand %p380, %p381
      %p383 = pneg %p382
      // Predicated region
      $region49: #{tpu_custom_call.1} parent=5 // pred_check
        _
      $region50: #{tpu_custom_call.1} parent=5 // pred_check_branch
        %385 = sbr.rel (%p382) target = $region52
      $region51: #{tpu_custom_call.1} parent=5 // pred_region
        %s386 = ssub.s32 %s25, 1
        // Predicated region
        $region53: #{tpu_custom_call.1} parent=51 // pred_check
          %p387 = pneg %p86
        $region54: #{tpu_custom_call.1} parent=51 // pred_check_branch
          %389 = sbr.rel (%p387) target = $region56
        $region55: #{tpu_custom_call.1} parent=51 // pred_region
          %391 = dma.done [#allocation3], 512
        $region56: #{tpu_custom_call.1} parent=51 // pred_fallthru
          _
        // Predicated region
        $region57: #{tpu_custom_call.1} parent=51 // pred_check
          %p392 = pneg %p107
        $region58: #{tpu_custom_call.1} parent=51 // pred_check_branch
          %394 = sbr.rel (%p392) target = $region60
        $region59: #{tpu_custom_call.1} parent=51 // pred_region
          %396 = dma.done [#allocation6], 256
        $region60: #{tpu_custom_call.1} parent=51 // pred_fallthru
          _
        // Predicated region
        $region61: #{tpu_custom_call.1} parent=51 // pred_check
          %p397 = pneg %p128
        $region62: #{tpu_custom_call.1} parent=51 // pred_check_branch
          %399 = sbr.rel (%p397) target = $region64
        $region63: #{tpu_custom_call.1} parent=51 // pred_region
          %401 = dma.done [#allocation6], 256
        $region64: #{tpu_custom_call.1} parent=51 // pred_fallthru
          _
        // Predicated region
        $region65: #{tpu_custom_call.1} parent=51 // pred_check
          %p402 = pneg %p149
        $region66: #{tpu_custom_call.1} parent=51 // pred_check_branch
          %404 = sbr.rel (%p402) target = $region68
        $region67: #{tpu_custom_call.1} parent=51 // pred_region
          %406 = dma.done [#allocation9], 512
        $region68: #{tpu_custom_call.1} parent=51 // pred_fallthru
          _
        %p407 = scmp.lt.s32.totalorder %s34, 1
        %s408 = scalar_select %p407, %s34, 1
        %p409 = scmp.lt.s32.totalorder %s35, 0
        %s410 = scalar_select %p409, %s35, 0
        %s411 = sadd.s32 %s410, %s408
        %s412 = smul.addr %s411, 8
        %s413 = scalar_lea.vmem %s0, %s412
        %p414 = pneg %p65
        %p415 = pneg %p62
        %p416 = pneg %p86
        %p417 = pneg %p83
        %p418 = pneg %p107
        %p419 = pneg %p104
        %p420 = pneg %p128
        %p421 = pneg %p125
        %p422 = pneg %p149
        %p423 = pneg %p146
        %p424 = scmp.lt.s32.totalorder %s35, 0
        %s425 = scalar_select %p424, %s35, 0
        %s426 = smul.addr %s425, 8
        %s427 = scalar_lea.vmem %s5, %s426
        %p428 = pneg %p175
        %p429 = pneg %p172
        %p430 = scmp.lt.s32.totalorder %s35, 0
        %s431 = scalar_select %p430, %s35, 0
        %s432 = smul.addr %s431, 8
        %s433 = scalar_lea.vmem %s6, %s432
        %p434 = pneg %p201
        %p435 = pneg %p198
        %p436 = pneg %p222
        %p437 = pneg %p219
        %p438 = pneg %p250
        %p439 = pneg %p247
        %s440 = sand.u32 %s237, 1
        %s441 = scalar_lea.sflag [#allocation4], %s440
        %s442 = sand.u32 %s237, 1
        %s443 = smul.addr %s442, 8
        %s444 = scalar_lea.vmem [#allocation10], %s443
        %p445 = pneg %p278
        %p446 = pneg %p275
        %s447 = sand.u32 %s265, 1
        %s448 = scalar_lea.sflag [#allocation12], %s447
        %s449 = sand.u32 %s265, 1
        %s450 = smul.addr %s449, 8
        %s451 = scalar_lea.vmem [#allocation11], %s450
        %p452 = scmp.lt.s32.totalorder %s34, 1
        %s453 = scalar_select %p452, %s34, 1
        %p454 = scmp.lt.s32.totalorder %s35, 0
        %s455 = scalar_select %p454, %s35, 0
        %s456 = sadd.s32 %s455, %s453
        %s457 = smul.addr %s456, 8
        %s458 = scalar_lea.vmem %s0, %s457
        %p459 = scmp.lt.s32.totalorder %s35, 0
        %s460 = scalar_select %p459, %s35, 0
        %s461 = smul.addr %s460, 8
        %s462 = scalar_lea.vmem %s5, %s461
        %p463 = scmp.lt.s32.totalorder %s35, 0
        %s464 = scalar_select %p463, %s35, 0
        %s465 = smul.addr %s464, 8
        %s466 = scalar_lea.vmem %s6, %s465
        %v467 = vld [vmem:[%s458] sm:$0xff]
        %v468 = vld [vmem:[#allocation2] sm:$0xff]
        %v469 = vld [vmem:[#allocation2 + $0x8] sm:$0xff]
        %v470 = vld [vmem:[#allocation2 + $0x10] sm:$0xff]
        %v471 = vld [vmem:[#allocation2 + $0x18] sm:$0xff]
        %vm472 = vcmask 261120
        %v474 = vsel %vm472, %v467, 0
        %476 = vmatpush.msra.mxu0 0.0
        %477 = vmatpush.msra.mxu0 0.0
        %478 = vmatpush.msra.mxu0 0.0
        %479 = vmatpush.msra.mxu0 0.0
        %480 = vmatpush.msra.mxu0 0.0
        %481 = vmatpush.msra.mxu0 0.0
        %482 = vmatpush.msra.mxu0 0.0
        %483 = vmatpush.msra.mxu0 0.0
        %484 = vmatpush.msra.mxu0 0.0
        %485 = vmatpush.msra.mxu0 0.0
        %486 = vmatpush.msra.mxu0 0.0
        %487 = vmatpush.msra.mxu0 0.0
        %488 = vmatpush.msra.mxu0 %v471
        %489 = vmatpush.msra.mxu0 %v470
        %490 = vmatpush.msra.mxu0 %v469
        %491 = vmatpush.msra.mxu0 %v468
        %492 = vmatmul.f32.gmra.mxu0 %v474
        %v493 = vpop.f32.mrf.mxu0
        %v494 = vadd.f32 0.0, %v493
        %495 = vdwg.mxu0
        %v496 = vld [vmem:[#allocation5] sm:$0xff]
        %v497 = vld [vmem:[#allocation5 + $0x8] sm:$0xff]
        %vm498 = vcmask 130048
        %v500 = vsel %vm498, %v494, 0
        %502 = vmatpush.msra.mxu0 0.0
        %503 = vmatpush.msra.mxu0 0.0
        %504 = vmatpush.msra.mxu0 0.0
        %505 = vmatpush.msra.mxu0 0.0
        %506 = vmatpush.msra.mxu0 0.0
        %507 = vmatpush.msra.mxu0 0.0
        %508 = vmatpush.msra.mxu0 0.0
        %509 = vmatpush.msra.mxu0 0.0
        %510 = vmatpush.msra.mxu0 0.0
        %511 = vmatpush.msra.mxu0 0.0
        %512 = vmatpush.msra.mxu0 0.0
        %513 = vmatpush.msra.mxu0 0.0
        %514 = vmatpush.msra.mxu0 0.0
        %515 = vmatpush.msra.mxu0 0.0
        %516 = vmatpush.msra.mxu0 %v497
        %517 = vmatpush.msra.mxu0 %v496
        %518 = vmatmul.f32.gmra.mxu0 %v500
        %v519 = vpop.f32.mrf.mxu0
        %v520 = vadd.f32 0.0, %v519
        %521 = vdwg.mxu0
        %v522 = vld [vmem:[#allocation7] sm:$0xff]
        %v523 = vld [vmem:[#allocation7 + $0x8] sm:$0xff]
        %524 = vrot.lane.b32.xlu0 %v494, 112
        %v525 = vpop.permute.xlu0 %524
        %v526 = vsel %vm498, %v525, 0
        %528 = vmatpush.msra.mxu0 0.0
        %529 = vmatpush.msra.mxu0 0.0
        %530 = vmatpush.msra.mxu0 0.0
        %531 = vmatpush.msra.mxu0 0.0
        %532 = vmatpush.msra.mxu0 0.0
        %533 = vmatpush.msra.mxu0 0.0
        %534 = vmatpush.msra.mxu0 0.0
        %535 = vmatpush.msra.mxu0 0.0
        %536 = vmatpush.msra.mxu0 0.0
        %537 = vmatpush.msra.mxu0 0.0
        %538 = vmatpush.msra.mxu0 0.0
        %539 = vmatpush.msra.mxu0 0.0
        %540 = vmatpush.msra.mxu0 0.0
        %541 = vmatpush.msra.mxu0 0.0
        %542 = vmatpush.msra.mxu0 %v523
        %543 = vmatpush.msra.mxu0 %v522
        %544 = vmatmul.f32.gmra.mxu0 %v526
        %v545 = vpop.f32.mrf.mxu0
        %v546 = vadd.f32 0.0, %v545
        %547 = vdwg.mxu0
        %v548 = vld [vmem:[%s462] sm:$0xff]
        %v550 = vrot.slane %v548, 1
        %v551 = vrot.slane %v548, 2
        %v552 = vrot.slane %v548, 3
        %v553 = vrot.slane %v548, 4
        %v554 = vrot.slane %v548, 5
        %v555 = vrot.slane %v548, 6
        %v556 = vrot.slane %v548, 7
        %v557 = vld [vmem:[%s466] sm:$0xff]
        %v559 = vrot.slane %v557, 1
        %v560 = vrot.slane %v557, 2
        %v561 = vrot.slane %v557, 3
        %v562 = vrot.slane %v557, 4
        %v563 = vrot.slane %v557, 5
        %v564 = vrot.slane %v557, 6
        %v565 = vrot.slane %v557, 7
        %566 = vrot.lane.b32.xlu0 %v494, 124
        %v567 = vpop.permute.xlu0 %566
        %568 = vrot.lane.b32.xlu0 %v494, 120
        %v569 = vpop.permute.xlu0 %568
        %570 = vrot.lane.b32.xlu0 %v494, 116
        %v571 = vpop.permute.xlu0 %570
        %572 = vrot.lane.b32.xlu0 %v494, 96
        %v573 = vpop.permute.xlu0 %572
        %574 = vrot.lane.b32.xlu0 %v567, 96
        %v575 = vpop.permute.xlu0 %574
        %576 = vrot.lane.b32.xlu0 %v569, 96
        %v577 = vpop.permute.xlu0 %576
        %578 = vrot.lane.b32.xlu0 %v571, 96
        %v579 = vpop.permute.xlu0 %578
        %v584 = vrot.slane %v577, 4
        %vm585 = vcmask 1047556
        %v586 = vsel %vm585, %v584, %v573
        %v587 = vrot.slane %v573, 4
        %v588 = vsel %vm585, %v577, %v587
        %v590 = vunpack.c.l.s4 1983009808
        %v591 = vunpack.c.0.s8 %v590
        %v592 = vperm.slane %v586, %v591
        %v594 = vunpack.c.l.s4 1983009808
        %v595 = vunpack.c.0.s8 %v594
        %v596 = vperm.slane %v588, %v595
        %v597 = vrot.slane %v579, 4
        %v598 = vsel %vm585, %v597, %v575
        %v599 = vrot.slane %v575, 4
        %v600 = vsel %vm585, %v579, %v599
        %v602 = vunpack.c.l.s4 1983009808
        %v603 = vunpack.c.0.s8 %v602
        %v604 = vperm.slane %v598, %v603
        %v606 = vunpack.c.l.s4 1983009808
        %v607 = vunpack.c.0.s8 %v606
        %v608 = vperm.slane %v600, %v607
        %v609 = vrot.slane %v604, 4
        %v610 = vsel %vm585, %v609, %v592
        %v611 = vrot.slane %v592, 4
        %v612 = vsel %vm585, %v604, %v611
        %v614 = vunpack.c.l.s4 1934713408
        %v615 = vunpack.c.0.s8 %v614
        %v616 = vperm.slane %v610, %v615
        %v618 = vunpack.c.l.s4 1934713408
        %v619 = vunpack.c.0.s8 %v618
        %v620 = vperm.slane %v612, %v619
        %v621 = vrot.slane %v608, 4
        %v622 = vsel %vm585, %v621, %v596
        %v623 = vrot.slane %v596, 4
        %v624 = vsel %vm585, %v608, %v623
        %v626 = vunpack.c.l.s4 1934713408
        %v627 = vunpack.c.0.s8 %v626
        %v628 = vperm.slane %v622, %v627
        %v630 = vunpack.c.l.s4 1934713408
        %v631 = vunpack.c.0.s8 %v630
        %v632 = vperm.slane %v624, %v631
        %v633 = vrot.slane %v616, 4
        %v634 = vsel %vm585, 0.0, %v633
        %v635 = vrot.slane %v620, 4
        %v636 = vsel %vm585, 0.0, %v635
        %v637 = vrot.slane %v628, 4
        %v638 = vsel %vm585, 0.0, %v637
        %v639 = vrot.slane %v632, 4
        %v640 = vsel %vm585, 0.0, %v639
        %v641 = vperm.slane %v548, 0
        %v642 = vperm.slane %v550, 0
        %v643 = vperm.slane %v551, 0
        %v644 = vperm.slane %v552, 0
        %v645 = vperm.slane %v553, 0
        %v646 = vperm.slane %v554, 0
        %v647 = vperm.slane %v555, 0
        %v648 = vperm.slane %v556, 0
        %v657 = vmul.f32 %v616, %v641
        %v658 = vmul.f32 %v634, %v642
        %v659 = vmul.f32 %v620, %v643
        %v660 = vmul.f32 %v636, %v644
        %v661 = vmul.f32 %v628, %v645
        %v662 = vmul.f32 %v638, %v646
        %v663 = vmul.f32 %v632, %v647
        %v664 = vmul.f32 %v640, %v648
        %v665 = vsub.f32 0.0, %v616
        %v666 = vsub.f32 0.0, %v634
        %v667 = vsub.f32 0.0, %v620
        %v668 = vsub.f32 0.0, %v636
        %v669 = vsub.f32 0.0, %v628
        %v670 = vsub.f32 0.0, %v638
        %v671 = vsub.f32 0.0, %v632
        %v672 = vsub.f32 0.0, %v640
        %681 = vrot.lane.b32.xlu0 %v665, 127
        %v682 = vpop.permute.xlu0 %681
        %683 = vrot.lane.b32.xlu0 %v666, 127
        %v684 = vpop.permute.xlu0 %683
        %685 = vrot.lane.b32.xlu0 %v667, 127
        %v686 = vpop.permute.xlu0 %685
        %687 = vrot.lane.b32.xlu0 %v668, 127
        %v688 = vpop.permute.xlu0 %687
        %689 = vrot.lane.b32.xlu0 %v669, 127
        %v690 = vpop.permute.xlu0 %689
        %691 = vrot.lane.b32.xlu0 %v670, 127
        %v692 = vpop.permute.xlu0 %691
        %693 = vrot.lane.b32.xlu0 %v671, 127
        %v694 = vpop.permute.xlu0 %693
        %695 = vrot.lane.b32.xlu0 %v672, 127
        %v696 = vpop.permute.xlu0 %695
        %713 = vrot.lane.b32.xlu0 %v616, 1
        %v714 = vpop.permute.xlu0 %713
        %715 = vrot.lane.b32.xlu0 %v634, 1
        %v716 = vpop.permute.xlu0 %715
        %717 = vrot.lane.b32.xlu0 %v620, 1
        %v718 = vpop.permute.xlu0 %717
        %719 = vrot.lane.b32.xlu0 %v636, 1
        %v720 = vpop.permute.xlu0 %719
        %721 = vrot.lane.b32.xlu0 %v628, 1
        %v722 = vpop.permute.xlu0 %721
        %723 = vrot.lane.b32.xlu0 %v638, 1
        %v724 = vpop.permute.xlu0 %723
        %725 = vrot.lane.b32.xlu0 %v632, 1
        %v726 = vpop.permute.xlu0 %725
        %727 = vrot.lane.b32.xlu0 %v640, 1
        %v728 = vpop.permute.xlu0 %727
        %vm737 = vcmask 7168
        %v738 = vsel %vm737, %v682, %v714
        %v739 = vsel %vm737, %v684, %v716
        %v740 = vsel %vm737, %v686, %v718
        %v741 = vsel %vm737, %v688, %v720
        %v742 = vsel %vm737, %v690, %v722
        %v743 = vsel %vm737, %v692, %v724
        %v744 = vsel %vm737, %v694, %v726
        %v745 = vsel %vm737, %v696, %v728
        %v746 = vperm.slane %v557, 0
        %v747 = vperm.slane %v559, 0
        %v748 = vperm.slane %v560, 0
        %v749 = vperm.slane %v561, 0
        %v750 = vperm.slane %v562, 0
        %v751 = vperm.slane %v563, 0
        %v752 = vperm.slane %v564, 0
        %v753 = vperm.slane %v565, 0
        %v762 = vmul.f32 %v738, %v746
        %v763 = vmul.f32 %v739, %v747
        %v764 = vmul.f32 %v740, %v748
        %v765 = vmul.f32 %v741, %v749
        %v766 = vmul.f32 %v742, %v750
        %v767 = vmul.f32 %v743, %v751
        %v768 = vmul.f32 %v744, %v752
        %v769 = vmul.f32 %v745, %v753
        %v770 = vadd.f32 %v657, %v762
        %v771 = vadd.f32 %v658, %v763
        %v772 = vadd.f32 %v659, %v764
        %v773 = vadd.f32 %v660, %v765
        %v774 = vadd.f32 %v661, %v766
        %v775 = vadd.f32 %v662, %v767
        %v776 = vadd.f32 %v663, %v768
        %v777 = vadd.f32 %v664, %v769
        %vm778 = vcmask 15360
        %v779 = vsel %vm778, %v770, %v616
        %v780 = vsel %vm778, %v771, %v634
        %v781 = vsel %vm778, %v772, %v620
        %v782 = vsel %vm778, %v773, %v636
        %v783 = vsel %vm778, %v774, %v628
        %v784 = vsel %vm778, %v775, %v638
        %v785 = vsel %vm778, %v776, %v632
        %v786 = vsel %vm778, %v777, %v640
        %788 = vrot.lane.b32.xlu0 %v546, 124
        %v789 = vpop.permute.xlu0 %788
        %790 = vrot.lane.b32.xlu0 %v546, 120
        %v791 = vpop.permute.xlu0 %790
        %792 = vrot.lane.b32.xlu0 %v546, 116
        %v793 = vpop.permute.xlu0 %792
        %794 = vrot.lane.b32.xlu0 %v546, 112
        %v795 = vpop.permute.xlu0 %794
        %796 = vrot.lane.b32.xlu0 %v789, 112
        %v797 = vpop.permute.xlu0 %796
        %798 = vrot.lane.b32.xlu0 %v791, 112
        %v799 = vpop.permute.xlu0 %798
        %800 = vrot.lane.b32.xlu0 %v793, 112
        %v801 = vpop.permute.xlu0 %800
        %v806 = vrot.slane %v799, 4
        %v807 = vsel %vm585, %v806, %v795
        %v808 = vrot.slane %v795, 4
        %v809 = vsel %vm585, %v799, %v808
        %v811 = vunpack.c.l.s4 1983009808
        %v812 = vunpack.c.0.s8 %v811
        %v813 = vperm.slane %v807, %v812
        %v815 = vunpack.c.l.s4 1983009808
        %v816 = vunpack.c.0.s8 %v815
        %v817 = vperm.slane %v809, %v816
        %v818 = vrot.slane %v801, 4
        %v819 = vsel %vm585, %v818, %v797
        %v820 = vrot.slane %v797, 4
        %v821 = vsel %vm585, %v801, %v820
        %v823 = vunpack.c.l.s4 1983009808
        %v824 = vunpack.c.0.s8 %v823
        %v825 = vperm.slane %v819, %v824
        %v827 = vunpack.c.l.s4 1983009808
        %v828 = vunpack.c.0.s8 %v827
        %v829 = vperm.slane %v821, %v828
        %v830 = vrot.slane %v825, 4
        %v831 = vsel %vm585, %v830, %v813
        %v832 = vrot.slane %v813, 4
        %v833 = vsel %vm585, %v825, %v832
        %v835 = vunpack.c.l.s4 1934713408
        %v836 = vunpack.c.0.s8 %v835
        %v837 = vperm.slane %v831, %v836
        %v839 = vunpack.c.l.s4 1934713408
        %v840 = vunpack.c.0.s8 %v839
        %v841 = vperm.slane %v833, %v840
        %v842 = vrot.slane %v829, 4
        %v843 = vsel %vm585, %v842, %v817
        %v844 = vrot.slane %v817, 4
        %v845 = vsel %vm585, %v829, %v844
        %v847 = vunpack.c.l.s4 1934713408
        %v848 = vunpack.c.0.s8 %v847
        %v849 = vperm.slane %v843, %v848
        %v851 = vunpack.c.l.s4 1934713408
        %v852 = vunpack.c.0.s8 %v851
        %v853 = vperm.slane %v845, %v852
        %v854 = vrot.slane %v837, 4
        %v855 = vsel %vm585, 0.0, %v854
        %v856 = vrot.slane %v841, 4
        %v857 = vsel %vm585, 0.0, %v856
        %v858 = vrot.slane %v849, 4
        %v859 = vsel %vm585, 0.0, %v858
        %v860 = vrot.slane %v853, 4
        %v861 = vsel %vm585, 0.0, %v860
        %v862 = vmul.f32 %v837, %v641
        %v863 = vmul.f32 %v855, %v642
        %v864 = vmul.f32 %v841, %v643
        %v865 = vmul.f32 %v857, %v644
        %v866 = vmul.f32 %v849, %v645
        %v867 = vmul.f32 %v859, %v646
        %v868 = vmul.f32 %v853, %v647
        %v869 = vmul.f32 %v861, %v648
        %v870 = vsub.f32 0.0, %v837
        %v871 = vsub.f32 0.0, %v855
        %v872 = vsub.f32 0.0, %v841
        %v873 = vsub.f32 0.0, %v857
        %v874 = vsub.f32 0.0, %v849
        %v875 = vsub.f32 0.0, %v859
        %v876 = vsub.f32 0.0, %v853
        %v877 = vsub.f32 0.0, %v861
        %886 = vrot.lane.b32.xlu0 %v870, 127
        %v887 = vpop.permute.xlu0 %886
        %888 = vrot.lane.b32.xlu0 %v871, 127
        %v889 = vpop.permute.xlu0 %888
        %890 = vrot.lane.b32.xlu0 %v872, 127
        %v891 = vpop.permute.xlu0 %890
        %892 = vrot.lane.b32.xlu0 %v873, 127
        %v893 = vpop.permute.xlu0 %892
        %894 = vrot.lane.b32.xlu0 %v874, 127
        %v895 = vpop.permute.xlu0 %894
        %896 = vrot.lane.b32.xlu0 %v875, 127
        %v897 = vpop.permute.xlu0 %896
        %898 = vrot.lane.b32.xlu0 %v876, 127
        %v899 = vpop.permute.xlu0 %898
        %900 = vrot.lane.b32.xlu0 %v877, 127
        %v901 = vpop.permute.xlu0 %900
        %918 = vrot.lane.b32.xlu0 %v837, 1
        %v919 = vpop.permute.xlu0 %918
        %920 = vrot.lane.b32.xlu0 %v855, 1
        %v921 = vpop.permute.xlu0 %920
        %922 = vrot.lane.b32.xlu0 %v841, 1
        %v923 = vpop.permute.xlu0 %922
        %924 = vrot.lane.b32.xlu0 %v857, 1
        %v925 = vpop.permute.xlu0 %924
        %926 = vrot.lane.b32.xlu0 %v849, 1
        %v927 = vpop.permute.xlu0 %926
        %928 = vrot.lane.b32.xlu0 %v859, 1
        %v929 = vpop.permute.xlu0 %928
        %930 = vrot.lane.b32.xlu0 %v853, 1
        %v931 = vpop.permute.xlu0 %930
        %932 = vrot.lane.b32.xlu0 %v861, 1
        %v933 = vpop.permute.xlu0 %932
        %v942 = vsel %vm737, %v887, %v919
        %v943 = vsel %vm737, %v889, %v921
        %v944 = vsel %vm737, %v891, %v923
        %v945 = vsel %vm737, %v893, %v925
        %v946 = vsel %vm737, %v895, %v927
        %v947 = vsel %vm737, %v897, %v929
        %v948 = vsel %vm737, %v899, %v931
        %v949 = vsel %vm737, %v901, %v933
        %v950 = vmul.f32 %v942, %v746
        %v951 = vmul.f32 %v943, %v747
        %v952 = vmul.f32 %v944, %v748
        %v953 = vmul.f32 %v945, %v749
        %v954 = vmul.f32 %v946, %v750
        %v955 = vmul.f32 %v947, %v751
        %v956 = vmul.f32 %v948, %v752
        %v957 = vmul.f32 %v949, %v753
        %v958 = vadd.f32 %v862, %v950
        %v959 = vadd.f32 %v863, %v951
        %v960 = vadd.f32 %v864, %v952
        %v961 = vadd.f32 %v865, %v953
        %v962 = vadd.f32 %v866, %v954
        %v963 = vadd.f32 %v867, %v955
        %v964 = vadd.f32 %v868, %v956
        %v965 = vadd.f32 %v869, %v957
        %v966 = vsel %vm778, %v958, %v837
        %v967 = vsel %vm778, %v959, %v855
        %v968 = vsel %vm778, %v960, %v841
        %v969 = vsel %vm778, %v961, %v857
        %v970 = vsel %vm778, %v962, %v849
        %v971 = vsel %vm778, %v963, %v859
        %v972 = vsel %vm778, %v964, %v853
        %v973 = vsel %vm778, %v965, %v861
        %v974 = vrot.slane %v781, 4
        %v975 = vsel %vm585, %v974, %v779
        %v977 = vunpack.c.l.s4 1983009808
        %v978 = vunpack.c.0.s8 %v977
        %v979 = vperm.slane %v975, %v978
        %v980 = vrot.slane %v782, 4
        %v981 = vsel %vm585, %v980, %v780
        %v983 = vunpack.c.l.s4 1983009808
        %v984 = vunpack.c.0.s8 %v983
        %v985 = vperm.slane %v981, %v984
        %v986 = vrot.slane %v785, 4
        %v987 = vsel %vm585, %v986, %v783
        %v989 = vunpack.c.l.s4 1983009808
        %v990 = vunpack.c.0.s8 %v989
        %v991 = vperm.slane %v987, %v990
        %v992 = vrot.slane %v786, 4
        %v993 = vsel %vm585, %v992, %v784
        %v995 = vunpack.c.l.s4 1983009808
        %v996 = vunpack.c.0.s8 %v995
        %v997 = vperm.slane %v993, %v996
        %v998 = vrot.slane %v985, 4
        %v999 = vsel %vm585, %v998, %v979
        %v1000 = vrot.slane %v979, 4
        %v1001 = vsel %vm585, %v985, %v1000
        %v1003 = vunpack.c.l.s4 1934713408
        %v1004 = vunpack.c.0.s8 %v1003
        %v1005 = vperm.slane %v999, %v1004
        %v1007 = vunpack.c.l.s4 1934713408
        %v1008 = vunpack.c.0.s8 %v1007
        %v1009 = vperm.slane %v1001, %v1008
        %v1010 = vrot.slane %v997, 4
        %v1011 = vsel %vm585, %v1010, %v991
        %v1012 = vrot.slane %v991, 4
        %v1013 = vsel %vm585, %v997, %v1012
        %v1015 = vunpack.c.l.s4 1934713408
        %v1016 = vunpack.c.0.s8 %v1015
        %v1017 = vperm.slane %v1011, %v1016
        %v1019 = vunpack.c.l.s4 1934713408
        %v1020 = vunpack.c.0.s8 %v1019
        %v1021 = vperm.slane %v1013, %v1020
        %v1022 = vrot.slane %v1017, 4
        %v1023 = vsel %vm585, %v1022, %v1005
        %v1024 = vrot.slane %v1005, 4
        %v1025 = vsel %vm585, %v1017, %v1024
        %v1026 = vrot.slane %v1021, 4
        %v1027 = vsel %vm585, %v1026, %v1009
        %v1028 = vrot.slane %v1009, 4
        %v1029 = vsel %vm585, %v1021, %v1028
        %1031 = vrot.lane.b32.xlu0 %v1025, 4
        %v1032 = vpop.permute.xlu0 %1031
        %1035 = vrot.lane.b32.xlu0 %v1027, 8
        %v1036 = vpop.permute.xlu0 %1035
        %1039 = vrot.lane.b32.xlu0 %v1029, 12
        %v1040 = vpop.permute.xlu0 %1039
        %vm1042 = vcmask 31744
        %v1043 = vsel %vm1042, %v1023, %v1032
        %vm1044 = vcmask 64512
        %v1045 = vsel %vm1044, %v1043, %v1036
        %vm1046 = vcmask 97280
        %v1047 = vsel %vm1046, %v1045, %v1040
        %1049 = vrot.lane.b32.xlu0 %v1047, 16
        %v1050 = vpop.permute.xlu0 %1049
        %v1052 = vsel %vm498, %v494, %v1050
        %1053 = vst.msk [vmem:[%s451] sm:$0xff] %vm472, %v1052
        %v1057 = vrot.slane %v791, 4
        %v1058 = vsel %vm585, %v1057, %v546
        %v1059 = vrot.slane %v546, 4
        %v1060 = vsel %vm585, %v791, %v1059
        %v1062 = vunpack.c.l.s4 1983009808
        %v1063 = vunpack.c.0.s8 %v1062
        %v1064 = vperm.slane %v1058, %v1063
        %v1066 = vunpack.c.l.s4 1983009808
        %v1067 = vunpack.c.0.s8 %v1066
        %v1068 = vperm.slane %v1060, %v1067
        %v1069 = vrot.slane %v793, 4
        %v1070 = vsel %vm585, %v1069, %v789
        %v1071 = vrot.slane %v789, 4
        %v1072 = vsel %vm585, %v793, %v1071
        %v1074 = vunpack.c.l.s4 1983009808
        %v1075 = vunpack.c.0.s8 %v1074
        %v1076 = vperm.slane %v1070, %v1075
        %v1078 = vunpack.c.l.s4 1983009808
        %v1079 = vunpack.c.0.s8 %v1078
        %v1080 = vperm.slane %v1072, %v1079
        %v1081 = vrot.slane %v1076, 4
        %v1082 = vsel %vm585, %v1081, %v1064
        %v1083 = vrot.slane %v1064, 4
        %v1084 = vsel %vm585, %v1076, %v1083
        %v1086 = vunpack.c.l.s4 1934713408
        %v1087 = vunpack.c.0.s8 %v1086
        %v1088 = vperm.slane %v1082, %v1087
        %v1090 = vunpack.c.l.s4 1934713408
        %v1091 = vunpack.c.0.s8 %v1090
        %v1092 = vperm.slane %v1084, %v1091
        %v1093 = vrot.slane %v1080, 4
        %v1094 = vsel %vm585, %v1093, %v1068
        %v1095 = vrot.slane %v1068, 4
        %v1096 = vsel %vm585, %v1080, %v1095
        %v1098 = vunpack.c.l.s4 1934713408
        %v1099 = vunpack.c.0.s8 %v1098
        %v1100 = vperm.slane %v1094, %v1099
        %v1102 = vunpack.c.l.s4 1934713408
        %v1103 = vunpack.c.0.s8 %v1102
        %v1104 = vperm.slane %v1096, %v1103
        %v1105 = vrot.slane %v1088, 4
        %v1106 = vsel %vm585, 0.0, %v1105
        %v1107 = vrot.slane %v1092, 4
        %v1108 = vsel %vm585, 0.0, %v1107
        %v1109 = vrot.slane %v1100, 4
        %v1110 = vsel %vm585, 0.0, %v1109
        %v1111 = vrot.slane %v1104, 4
        %v1112 = vsel %vm585, 0.0, %v1111
        %1121 = vrot.lane.b32.xlu0 %v966, 4
        %v1122 = vpop.permute.xlu0 %1121
        %1123 = vrot.lane.b32.xlu0 %v967, 4
        %v1124 = vpop.permute.xlu0 %1123
        %1125 = vrot.lane.b32.xlu0 %v968, 4
        %v1126 = vpop.permute.xlu0 %1125
        %1127 = vrot.lane.b32.xlu0 %v969, 4
        %v1128 = vpop.permute.xlu0 %1127
        %1129 = vrot.lane.b32.xlu0 %v970, 4
        %v1130 = vpop.permute.xlu0 %1129
        %1131 = vrot.lane.b32.xlu0 %v971, 4
        %v1132 = vpop.permute.xlu0 %1131
        %1133 = vrot.lane.b32.xlu0 %v972, 4
        %v1134 = vpop.permute.xlu0 %1133
        %1135 = vrot.lane.b32.xlu0 %v973, 4
        %v1136 = vpop.permute.xlu0 %1135
        %v1145 = vsel %vm1042, %v1088, %v1122
        %v1146 = vsel %vm1042, %v1106, %v1124
        %v1147 = vsel %vm1042, %v1092, %v1126
        %v1148 = vsel %vm1042, %v1108, %v1128
        %v1149 = vsel %vm1042, %v1100, %v1130
        %v1150 = vsel %vm1042, %v1110, %v1132
        %v1151 = vsel %vm1042, %v1104, %v1134
        %v1152 = vsel %vm1042, %v1112, %v1136
        %1154 = vrot.lane.b32.xlu0 %v520, 124
        %v1155 = vpop.permute.xlu0 %1154
        %1157 = vrot.lane.b32.xlu0 %v520, 120
        %v1158 = vpop.permute.xlu0 %1157
        %1160 = vrot.lane.b32.xlu0 %v520, 116
        %v1161 = vpop.permute.xlu0 %1160
        %v1163 = vrot.slane %v1158, 4
        %v1164 = vsel %vm585, %v1163, %v520
        %v1165 = vrot.slane %v520, 4
        %v1166 = vsel %vm585, %v1158, %v1165
        %v1168 = vunpack.c.l.s4 1983009808
        %v1169 = vunpack.c.0.s8 %v1168
        %v1170 = vperm.slane %v1164, %v1169
        %v1172 = vunpack.c.l.s4 1983009808
        %v1173 = vunpack.c.0.s8 %v1172
        %v1174 = vperm.slane %v1166, %v1173
        %v1175 = vrot.slane %v1161, 4
        %v1176 = vsel %vm585, %v1175, %v1155
        %v1177 = vrot.slane %v1155, 4
        %v1178 = vsel %vm585, %v1161, %v1177
        %v1180 = vunpack.c.l.s4 1983009808
        %v1181 = vunpack.c.0.s8 %v1180
        %v1182 = vperm.slane %v1176, %v1181
        %v1184 = vunpack.c.l.s4 1983009808
        %v1185 = vunpack.c.0.s8 %v1184
        %v1186 = vperm.slane %v1178, %v1185
        %v1187 = vrot.slane %v1182, 4
        %v1188 = vsel %vm585, %v1187, %v1170
        %v1189 = vrot.slane %v1170, 4
        %v1190 = vsel %vm585, %v1182, %v1189
        %v1192 = vunpack.c.l.s4 1934713408
        %v1193 = vunpack.c.0.s8 %v1192
        %v1194 = vperm.slane %v1188, %v1193
        %v1196 = vunpack.c.l.s4 1934713408
        %v1197 = vunpack.c.0.s8 %v1196
        %v1198 = vperm.slane %v1190, %v1197
        %v1199 = vrot.slane %v1186, 4
        %v1200 = vsel %vm585, %v1199, %v1174
        %v1201 = vrot.slane %v1174, 4
        %v1202 = vsel %vm585, %v1186, %v1201
        %v1204 = vunpack.c.l.s4 1934713408
        %v1205 = vunpack.c.0.s8 %v1204
        %v1206 = vperm.slane %v1200, %v1205
        %v1208 = vunpack.c.l.s4 1934713408
        %v1209 = vunpack.c.0.s8 %v1208
        %v1210 = vperm.slane %v1202, %v1209
        %v1211 = vrot.slane %v1194, 4
        %v1212 = vsel %vm585, 0.0, %v1211
        %v1213 = vrot.slane %v1198, 4
        %v1214 = vsel %vm585, 0.0, %v1213
        %v1215 = vrot.slane %v1206, 4
        %v1216 = vsel %vm585, 0.0, %v1215
        %v1217 = vrot.slane %v1210, 4
        %v1218 = vsel %vm585, 0.0, %v1217
        %1227 = vrot.lane.b32.xlu0 %v779, 4
        %v1228 = vpop.permute.xlu0 %1227
        %1229 = vrot.lane.b32.xlu0 %v780, 4
        %v1230 = vpop.permute.xlu0 %1229
        %1231 = vrot.lane.b32.xlu0 %v781, 4
        %v1232 = vpop.permute.xlu0 %1231
        %1233 = vrot.lane.b32.xlu0 %v782, 4
        %v1234 = vpop.permute.xlu0 %1233
        %1235 = vrot.lane.b32.xlu0 %v783, 4
        %v1236 = vpop.permute.xlu0 %1235
        %1237 = vrot.lane.b32.xlu0 %v784, 4
        %v1238 = vpop.permute.xlu0 %1237
        %1239 = vrot.lane.b32.xlu0 %v785, 4
        %v1240 = vpop.permute.xlu0 %1239
        %1241 = vrot.lane.b32.xlu0 %v786, 4
        %v1242 = vpop.permute.xlu0 %1241
        %v1251 = vsel %vm1042, %v1194, %v1228
        %v1252 = vsel %vm1042, %v1212, %v1230
        %v1253 = vsel %vm1042, %v1198, %v1232
        %v1254 = vsel %vm1042, %v1214, %v1234
        %v1255 = vsel %vm1042, %v1206, %v1236
        %v1256 = vsel %vm1042, %v1216, %v1238
        %v1257 = vsel %vm1042, %v1210, %v1240
        %v1258 = vsel %vm1042, %v1218, %v1242
        %1259 = vrot.lane.b32.xlu0 %v520, 112
        %v1260 = vpop.permute.xlu0 %1259
        %1261 = vrot.lane.b32.xlu0 %v520, 104
        %v1262 = vpop.permute.xlu0 %1261
        %1263 = vrot.lane.b32.xlu0 %v1158, 112
        %v1264 = vpop.permute.xlu0 %1263
        %1265 = vrot.lane.b32.xlu0 %v1260, 112
        %v1266 = vpop.permute.xlu0 %1265
        %1267 = vrot.lane.b32.xlu0 %v1262, 112
        %v1268 = vpop.permute.xlu0 %1267
        %v1273 = vrot.slane %v1266, 4
        %v1274 = vsel %vm585, %v1273, %v1260
        %v1275 = vrot.slane %v1260, 4
        %v1276 = vsel %vm585, %v1266, %v1275
        %v1278 = vunpack.c.l.s4 1983009808
        %v1279 = vunpack.c.0.s8 %v1278
        %v1280 = vperm.slane %v1274, %v1279
        %v1282 = vunpack.c.l.s4 1983009808
        %v1283 = vunpack.c.0.s8 %v1282
        %v1284 = vperm.slane %v1276, %v1283
        %v1285 = vrot.slane %v1268, 4
        %v1286 = vsel %vm585, %v1285, %v1264
        %v1287 = vrot.slane %v1264, 4
        %v1288 = vsel %vm585, %v1268, %v1287
        %v1290 = vunpack.c.l.s4 1983009808
        %v1291 = vunpack.c.0.s8 %v1290
        %v1292 = vperm.slane %v1286, %v1291
        %v1294 = vunpack.c.l.s4 1983009808
        %v1295 = vunpack.c.0.s8 %v1294
        %v1296 = vperm.slane %v1288, %v1295
        %v1297 = vrot.slane %v1292, 4
        %v1298 = vsel %vm585, %v1297, %v1280
        %v1299 = vrot.slane %v1280, 4
        %v1300 = vsel %vm585, %v1292, %v1299
        %v1302 = vunpack.c.l.s4 1934713408
        %v1303 = vunpack.c.0.s8 %v1302
        %v1304 = vperm.slane %v1298, %v1303
        %v1306 = vunpack.c.l.s4 1934713408
        %v1307 = vunpack.c.0.s8 %v1306
        %v1308 = vperm.slane %v1300, %v1307
        %v1309 = vrot.slane %v1296, 4
        %v1310 = vsel %vm585, %v1309, %v1284
        %v1311 = vrot.slane %v1284, 4
        %v1312 = vsel %vm585, %v1296, %v1311
        %v1314 = vunpack.c.l.s4 1934713408
        %v1315 = vunpack.c.0.s8 %v1314
        %v1316 = vperm.slane %v1310, %v1315
        %v1318 = vunpack.c.l.s4 1934713408
        %v1319 = vunpack.c.0.s8 %v1318
        %v1320 = vperm.slane %v1312, %v1319
        %v1321 = vrot.slane %v1304, 4
        %v1322 = vsel %vm585, 0.0, %v1321
        %v1323 = vrot.slane %v1308, 4
        %v1324 = vsel %vm585, 0.0, %v1323
        %v1325 = vrot.slane %v1316, 4
        %v1326 = vsel %vm585, 0.0, %v1325
        %v1327 = vrot.slane %v1320, 4
        %v1328 = vsel %vm585, 0.0, %v1327
        %v1329 = vld [vmem:[%s7] sm:$0xf]
        %v1331 = vsel %vm1044, %v1145, 0
        %v1334 = vsel %vm1044, %v1251, 0
        %1336 = vmatpush.xpose.msra.mxu0 0.0
        %1337 = vmatpush.xpose.msra.mxu0 0.0
        %1338 = vmatpush.xpose.msra.mxu0 0.0
        %1339 = vmatpush.xpose.msra.mxu0 0.0
        %1340 = vmatpush.xpose.msra.mxu0 0.0
        %1341 = vmatpush.xpose.msra.mxu0 0.0
        %1342 = vmatpush.xpose.msra.mxu0 0.0
        %1343 = vmatpush.xpose.msra.mxu0 0.0
        %1344 = vmatpush.xpose.msra.mxu0 0.0
        %1345 = vmatpush.xpose.msra.mxu0 0.0
        %1346 = vmatpush.xpose.msra.mxu0 0.0
        %1347 = vmatpush.xpose.msra.mxu0 0.0
        %1348 = vmatpush.xpose.msra.mxu0 0.0
        %1349 = vmatpush.xpose.msra.mxu0 0.0
        %1350 = vmatpush.xpose.msra.mxu0 0.0
        %1351 = vmatpush.xpose.msra.mxu0 %v1334
        %1352 = vmatmul.f32.gmra.mxu0 %v1331
        %v1353 = vpop.f32.mrf.mxu0
        %v1354 = vadd.f32 %v1329, %v1353
        %1355 = vdwg.mxu0
        %v1357 = vsel %vm1044, %v1146, 0
        %v1360 = vsel %vm1044, %v1252, 0
        %1362 = vmatpush.xpose.msra.mxu0 0.0
        %1363 = vmatpush.xpose.msra.mxu0 0.0
        %1364 = vmatpush.xpose.msra.mxu0 0.0
        %1365 = vmatpush.xpose.msra.mxu0 0.0
        %1366 = vmatpush.xpose.msra.mxu0 0.0
        %1367 = vmatpush.xpose.msra.mxu0 0.0
        %1368 = vmatpush.xpose.msra.mxu0 0.0
        %1369 = vmatpush.xpose.msra.mxu0 0.0
        %1370 = vmatpush.xpose.msra.mxu0 0.0
        %1371 = vmatpush.xpose.msra.mxu0 0.0
        %1372 = vmatpush.xpose.msra.mxu0 0.0
        %1373 = vmatpush.xpose.msra.mxu0 0.0
        %1374 = vmatpush.xpose.msra.mxu0 0.0
        %1375 = vmatpush.xpose.msra.mxu0 0.0
        %1376 = vmatpush.xpose.msra.mxu0 0.0
        %1377 = vmatpush.xpose.msra.mxu0 %v1360
        %1378 = vmatmul.f32.gmra.mxu0 %v1357
        %v1379 = vpop.f32.mrf.mxu0
        %v1380 = vadd.f32 %v1329, %v1379
        %1381 = vdwg.mxu0
        %v1383 = vsel %vm1044, %v1147, 0
        %v1386 = vsel %vm1044, %v1253, 0
        %1388 = vmatpush.xpose.msra.mxu0 0.0
        %1389 = vmatpush.xpose.msra.mxu0 0.0
        %1390 = vmatpush.xpose.msra.mxu0 0.0
        %1391 = vmatpush.xpose.msra.mxu0 0.0
        %1392 = vmatpush.xpose.msra.mxu0 0.0
        %1393 = vmatpush.xpose.msra.mxu0 0.0
        %1394 = vmatpush.xpose.msra.mxu0 0.0
        %1395 = vmatpush.xpose.msra.mxu0 0.0
        %1396 = vmatpush.xpose.msra.mxu0 0.0
        %1397 = vmatpush.xpose.msra.mxu0 0.0
        %1398 = vmatpush.xpose.msra.mxu0 0.0
        %1399 = vmatpush.xpose.msra.mxu0 0.0
        %1400 = vmatpush.xpose.msra.mxu0 0.0
        %1401 = vmatpush.xpose.msra.mxu0 0.0
        %1402 = vmatpush.xpose.msra.mxu0 0.0
        %1403 = vmatpush.xpose.msra.mxu0 %v1386
        %1404 = vmatmul.f32.gmra.mxu0 %v1383
        %v1405 = vpop.f32.mrf.mxu0
        %v1406 = vadd.f32 %v1329, %v1405
        %1407 = vdwg.mxu0
        %v1409 = vsel %vm1044, %v1148, 0
        %v1412 = vsel %vm1044, %v1254, 0
        %1414 = vmatpush.xpose.msra.mxu0 0.0
        %1415 = vmatpush.xpose.msra.mxu0 0.0
        %1416 = vmatpush.xpose.msra.mxu0 0.0
        %1417 = vmatpush.xpose.msra.mxu0 0.0
        %1418 = vmatpush.xpose.msra.mxu0 0.0
        %1419 = vmatpush.xpose.msra.mxu0 0.0
        %1420 = vmatpush.xpose.msra.mxu0 0.0
        %1421 = vmatpush.xpose.msra.mxu0 0.0
        %1422 = vmatpush.xpose.msra.mxu0 0.0
        %1423 = vmatpush.xpose.msra.mxu0 0.0
        %1424 = vmatpush.xpose.msra.mxu0 0.0
        %1425 = vmatpush.xpose.msra.mxu0 0.0
        %1426 = vmatpush.xpose.msra.mxu0 0.0
        %1427 = vmatpush.xpose.msra.mxu0 0.0
        %1428 = vmatpush.xpose.msra.mxu0 0.0
        %1429 = vmatpush.xpose.msra.mxu0 %v1412
        %1430 = vmatmul.f32.gmra.mxu0 %v1409
        %v1431 = vpop.f32.mrf.mxu0
        %v1432 = vadd.f32 %v1329, %v1431
        %1433 = vdwg.mxu0
        %v1435 = vsel %vm1044, %v1149, 0
        %v1438 = vsel %vm1044, %v1255, 0
        %1440 = vmatpush.xpose.msra.mxu0 0.0
        %1441 = vmatpush.xpose.msra.mxu0 0.0
        %1442 = vmatpush.xpose.msra.mxu0 0.0
        %1443 = vmatpush.xpose.msra.mxu0 0.0
        %1444 = vmatpush.xpose.msra.mxu0 0.0
        %1445 = vmatpush.xpose.msra.mxu0 0.0
        %1446 = vmatpush.xpose.msra.mxu0 0.0
        %1447 = vmatpush.xpose.msra.mxu0 0.0
        %1448 = vmatpush.xpose.msra.mxu0 0.0
        %1449 = vmatpush.xpose.msra.mxu0 0.0
        %1450 = vmatpush.xpose.msra.mxu0 0.0
        %1451 = vmatpush.xpose.msra.mxu0 0.0
        %1452 = vmatpush.xpose.msra.mxu0 0.0
        %1453 = vmatpush.xpose.msra.mxu0 0.0
        %1454 = vmatpush.xpose.msra.mxu0 0.0
        %1455 = vmatpush.xpose.msra.mxu0 %v1438
        %1456 = vmatmul.f32.gmra.mxu0 %v1435
        %v1457 = vpop.f32.mrf.mxu0
        %v1458 = vadd.f32 %v1329, %v1457
        %1459 = vdwg.mxu0
        %v1461 = vsel %vm1044, %v1150, 0
        %v1464 = vsel %vm1044, %v1256, 0
        %1466 = vmatpush.xpose.msra.mxu0 0.0
        %1467 = vmatpush.xpose.msra.mxu0 0.0
        %1468 = vmatpush.xpose.msra.mxu0 0.0
        %1469 = vmatpush.xpose.msra.mxu0 0.0
        %1470 = vmatpush.xpose.msra.mxu0 0.0
        %1471 = vmatpush.xpose.msra.mxu0 0.0
        %1472 = vmatpush.xpose.msra.mxu0 0.0
        %1473 = vmatpush.xpose.msra.mxu0 0.0
        %1474 = vmatpush.xpose.msra.mxu0 0.0
        %1475 = vmatpush.xpose.msra.mxu0 0.0
        %1476 = vmatpush.xpose.msra.mxu0 0.0
        %1477 = vmatpush.xpose.msra.mxu0 0.0
        %1478 = vmatpush.xpose.msra.mxu0 0.0
        %1479 = vmatpush.xpose.msra.mxu0 0.0
        %1480 = vmatpush.xpose.msra.mxu0 0.0
        %1481 = vmatpush.xpose.msra.mxu0 %v1464
        %1482 = vmatmul.f32.gmra.mxu0 %v1461
        %v1483 = vpop.f32.mrf.mxu0
        %v1484 = vadd.f32 %v1329, %v1483
        %1485 = vdwg.mxu0
        %v1487 = vsel %vm1044, %v1151, 0
        %v1490 = vsel %vm1044, %v1257, 0
        %1492 = vmatpush.xpose.msra.mxu0 0.0
        %1493 = vmatpush.xpose.msra.mxu0 0.0
        %1494 = vmatpush.xpose.msra.mxu0 0.0
        %1495 = vmatpush.xpose.msra.mxu0 0.0
        %1496 = vmatpush.xpose.msra.mxu0 0.0
        %1497 = vmatpush.xpose.msra.mxu0 0.0
        %1498 = vmatpush.xpose.msra.mxu0 0.0
        %1499 = vmatpush.xpose.msra.mxu0 0.0
        %1500 = vmatpush.xpose.msra.mxu0 0.0
        %1501 = vmatpush.xpose.msra.mxu0 0.0
        %1502 = vmatpush.xpose.msra.mxu0 0.0
        %1503 = vmatpush.xpose.msra.mxu0 0.0
        %1504 = vmatpush.xpose.msra.mxu0 0.0
        %1505 = vmatpush.xpose.msra.mxu0 0.0
        %1506 = vmatpush.xpose.msra.mxu0 0.0
        %1507 = vmatpush.xpose.msra.mxu0 %v1490
        %1508 = vmatmul.f32.gmra.mxu0 %v1487
        %v1509 = vpop.f32.mrf.mxu0
        %v1510 = vadd.f32 %v1329, %v1509
        %1511 = vdwg.mxu0
        %v1513 = vsel %vm1044, %v1152, 0
        %v1516 = vsel %vm1044, %v1258, 0
        %1518 = vmatpush.xpose.msra.mxu0 0.0
        %1519 = vmatpush.xpose.msra.mxu0 0.0
        %1520 = vmatpush.xpose.msra.mxu0 0.0
        %1521 = vmatpush.xpose.msra.mxu0 0.0
        %1522 = vmatpush.xpose.msra.mxu0 0.0
        %1523 = vmatpush.xpose.msra.mxu0 0.0
        %1524 = vmatpush.xpose.msra.mxu0 0.0
        %1525 = vmatpush.xpose.msra.mxu0 0.0
        %1526 = vmatpush.xpose.msra.mxu0 0.0
        %1527 = vmatpush.xpose.msra.mxu0 0.0
        %1528 = vmatpush.xpose.msra.mxu0 0.0
        %1529 = vmatpush.xpose.msra.mxu0 0.0
        %1530 = vmatpush.xpose.msra.mxu0 0.0
        %1531 = vmatpush.xpose.msra.mxu0 0.0
        %1532 = vmatpush.xpose.msra.mxu0 0.0
        %1533 = vmatpush.xpose.msra.mxu0 %v1516
        %1534 = vmatmul.f32.gmra.mxu0 %v1513
        %v1535 = vpop.f32.mrf.mxu0
        %v1536 = vadd.f32 %v1329, %v1535
        %1537 = vdwg.mxu0
        %vm1538 = vcmask 27648
        %v1539 = vsel %vm1538, %v1354, -inf
        %1540 = vmax.xlane.f32.xlu0 %v1539
        %v1541 = vpop.xlane.xlu0 %1540
        %v1542 = vsel %vm1538, %v1380, -inf
        %1543 = vmax.xlane.f32.xlu0 %v1542
        %v1544 = vpop.xlane.xlu0 %1543
        %v1545 = vsel %vm1538, %v1406, -inf
        %1546 = vmax.xlane.f32.xlu0 %v1545
        %v1547 = vpop.xlane.xlu0 %1546
        %v1548 = vsel %vm1538, %v1432, -inf
        %1549 = vmax.xlane.f32.xlu0 %v1548
        %v1550 = vpop.xlane.xlu0 %1549
        %v1551 = vsel %vm1538, %v1458, -inf
        %1552 = vmax.xlane.f32.xlu0 %v1551
        %v1553 = vpop.xlane.xlu0 %1552
        %v1554 = vsel %vm1538, %v1484, -inf
        %1555 = vmax.xlane.f32.xlu0 %v1554
        %v1556 = vpop.xlane.xlu0 %1555
        %v1557 = vsel %vm1538, %v1510, -inf
        %1558 = vmax.xlane.f32.xlu0 %v1557
        %v1559 = vpop.xlane.xlu0 %1558
        %v1560 = vsel %vm1538, %v1536, -inf
        %1561 = vmax.xlane.f32.xlu0 %v1560
        %v1562 = vpop.xlane.xlu0 %1561
        %v1563 = vsub.f32 %v1354, %v1541
        %v1564 = vsub.f32 %v1380, %v1544
        %v1565 = vsub.f32 %v1406, %v1547
        %v1566 = vsub.f32 %v1432, %v1550
        %v1567 = vsub.f32 %v1458, %v1553
        %v1568 = vsub.f32 %v1484, %v1556
        %v1569 = vsub.f32 %v1510, %v1559
        %v1570 = vsub.f32 %v1536, %v1562
        %v1571 = vmul.f32 %v1563, 1.442695
        %v1572 = vpow.pop %v1571
        %v1573 = vmul.f32 %v1564, 1.442695
        %v1574 = vpow.pop %v1573
        %v1575 = vmul.f32 %v1565, 1.442695
        %v1576 = vpow.pop %v1575
        %v1577 = vmul.f32 %v1566, 1.442695
        %v1578 = vpow.pop %v1577
        %v1579 = vmul.f32 %v1567, 1.442695
        %v1580 = vpow.pop %v1579
        %v1581 = vmul.f32 %v1568, 1.442695
        %v1582 = vpow.pop %v1581
        %v1583 = vmul.f32 %v1569, 1.442695
        %v1584 = vpow.pop %v1583
        %v1585 = vmul.f32 %v1570, 1.442695
        %v1586 = vpow.pop %v1585
        %v1587 = vsel %vm1538, %v1572, 0.0
        %1588 = vadd.xlane.f32.xlu0 %v1587
        %v1589 = vpop.xlane.xlu0 %1588
        %v1590 = vsel %vm1538, %v1574, 0.0
        %1591 = vadd.xlane.f32.xlu0 %v1590
        %v1592 = vpop.xlane.xlu0 %1591
        %v1593 = vsel %vm1538, %v1576, 0.0
        %1594 = vadd.xlane.f32.xlu0 %v1593
        %v1595 = vpop.xlane.xlu0 %1594
        %v1596 = vsel %vm1538, %v1578, 0.0
        %1597 = vadd.xlane.f32.xlu0 %v1596
        %v1598 = vpop.xlane.xlu0 %1597
        %v1599 = vsel %vm1538, %v1580, 0.0
        %1600 = vadd.xlane.f32.xlu0 %v1599
        %v1601 = vpop.xlane.xlu0 %1600
        %v1602 = vsel %vm1538, %v1582, 0.0
        %1603 = vadd.xlane.f32.xlu0 %v1602
        %v1604 = vpop.xlane.xlu0 %1603
        %v1605 = vsel %vm1538, %v1584, 0.0
        %1606 = vadd.xlane.f32.xlu0 %v1605
        %v1607 = vpop.xlane.xlu0 %1606
        %v1608 = vsel %vm1538, %v1586, 0.0
        %1609 = vadd.xlane.f32.xlu0 %v1608
        %v1610 = vpop.xlane.xlu0 %1609
        %v1611 = vrcp.pop %v1589
        %v1612 = vrcp.pop %v1592
        %v1613 = vrcp.pop %v1595
        %v1614 = vrcp.pop %v1598
        %v1615 = vrcp.pop %v1601
        %v1616 = vrcp.pop %v1604
        %v1617 = vrcp.pop %v1607
        %v1618 = vrcp.pop %v1610
        %v1619 = vmul.f32 %v1572, %v1611
        %v1620 = vmul.f32 %v1574, %v1612
        %v1621 = vmul.f32 %v1576, %v1613
        %v1622 = vmul.f32 %v1578, %v1614
        %v1623 = vmul.f32 %v1580, %v1615
        %v1624 = vmul.f32 %v1582, %v1616
        %v1625 = vmul.f32 %v1584, %v1617
        %v1626 = vmul.f32 %v1586, %v1618
        %v1628 = vsel %vm1042, %v1619, 0
        %vm1630 = vcmask 1043456
        %v1632 = vsel %vm1630, %v1304, 0
        %1634 = vmatpush.msra.mxu0 0.0
        %1635 = vmatpush.msra.mxu0 0.0
        %1636 = vmatpush.msra.mxu0 0.0
        %1637 = vmatpush.msra.mxu0 0.0
        %1638 = vmatpush.msra.mxu0 0.0
        %1639 = vmatpush.msra.mxu0 0.0
        %1640 = vmatpush.msra.mxu0 0.0
        %1641 = vmatpush.msra.mxu0 0.0
        %1642 = vmatpush.msra.mxu0 0.0
        %1643 = vmatpush.msra.mxu0 0.0
        %1644 = vmatpush.msra.mxu0 0.0
        %1645 = vmatpush.msra.mxu0 0.0
        %1646 = vmatpush.msra.mxu0 0.0
        %1647 = vmatpush.msra.mxu0 0.0
        %1648 = vmatpush.msra.mxu0 0.0
        %1649 = vmatpush.msra.mxu0 %v1632
        %1650 = vmatmul.f32.gmra.mxu0 %v1628
        %v1651 = vpop.f32.mrf.mxu0
        %v1652 = vadd.f32 0.0, %v1651
        %1653 = vdwg.mxu0
        %v1655 = vsel %vm1042, %v1620, 0
        %v1658 = vsel %vm1630, %v1322, 0
        %1660 = vmatpush.msra.mxu0 0.0
        %1661 = vmatpush.msra.mxu0 0.0
        %1662 = vmatpush.msra.mxu0 0.0
        %1663 = vmatpush.msra.mxu0 0.0
        %1664 = vmatpush.msra.mxu0 0.0
        %1665 = vmatpush.msra.mxu0 0.0
        %1666 = vmatpush.msra.mxu0 0.0
        %1667 = vmatpush.msra.mxu0 0.0
        %1668 = vmatpush.msra.mxu0 0.0
        %1669 = vmatpush.msra.mxu0 0.0
        %1670 = vmatpush.msra.mxu0 0.0
        %1671 = vmatpush.msra.mxu0 0.0
        %1672 = vmatpush.msra.mxu0 0.0
        %1673 = vmatpush.msra.mxu0 0.0
        %1674 = vmatpush.msra.mxu0 0.0
        %1675 = vmatpush.msra.mxu0 %v1658
        %1676 = vmatmul.f32.gmra.mxu0 %v1655
        %v1677 = vpop.f32.mrf.mxu0
        %v1678 = vadd.f32 0.0, %v1677
        %1679 = vdwg.mxu0
        %v1681 = vsel %vm1042, %v1621, 0
        %v1684 = vsel %vm1630, %v1308, 0
        %1686 = vmatpush.msra.mxu0 0.0
        %1687 = vmatpush.msra.mxu0 0.0
        %1688 = vmatpush.msra.mxu0 0.0
        %1689 = vmatpush.msra.mxu0 0.0
        %1690 = vmatpush.msra.mxu0 0.0
        %1691 = vmatpush.msra.mxu0 0.0
        %1692 = vmatpush.msra.mxu0 0.0
        %1693 = vmatpush.msra.mxu0 0.0
        %1694 = vmatpush.msra.mxu0 0.0
        %1695 = vmatpush.msra.mxu0 0.0
        %1696 = vmatpush.msra.mxu0 0.0
        %1697 = vmatpush.msra.mxu0 0.0
        %1698 = vmatpush.msra.mxu0 0.0
        %1699 = vmatpush.msra.mxu0 0.0
        %1700 = vmatpush.msra.mxu0 0.0
        %1701 = vmatpush.msra.mxu0 %v1684
        %1702 = vmatmul.f32.gmra.mxu0 %v1681
        %v1703 = vpop.f32.mrf.mxu0
        %v1704 = vadd.f32 0.0, %v1703
        %1705 = vdwg.mxu0
        %v1707 = vsel %vm1042, %v1622, 0
        %v1710 = vsel %vm1630, %v1324, 0
        %1712 = vmatpush.msra.mxu0 0.0
        %1713 = vmatpush.msra.mxu0 0.0
        %1714 = vmatpush.msra.mxu0 0.0
        %1715 = vmatpush.msra.mxu0 0.0
        %1716 = vmatpush.msra.mxu0 0.0
        %1717 = vmatpush.msra.mxu0 0.0
        %1718 = vmatpush.msra.mxu0 0.0
        %1719 = vmatpush.msra.mxu0 0.0
        %1720 = vmatpush.msra.mxu0 0.0
        %1721 = vmatpush.msra.mxu0 0.0
        %1722 = vmatpush.msra.mxu0 0.0
        %1723 = vmatpush.msra.mxu0 0.0
        %1724 = vmatpush.msra.mxu0 0.0
        %1725 = vmatpush.msra.mxu0 0.0
        %1726 = vmatpush.msra.mxu0 0.0
        %1727 = vmatpush.msra.mxu0 %v1710
        %1728 = vmatmul.f32.gmra.mxu0 %v1707
        %v1729 = vpop.f32.mrf.mxu0
        %v1730 = vadd.f32 0.0, %v1729
        %1731 = vdwg.mxu0
        %v1733 = vsel %vm1042, %v1623, 0
        %v1736 = vsel %vm1630, %v1316, 0
        %1738 = vmatpush.msra.mxu0 0.0
        %1739 = vmatpush.msra.mxu0 0.0
        %1740 = vmatpush.msra.mxu0 0.0
        %1741 = vmatpush.msra.mxu0 0.0
        %1742 = vmatpush.msra.mxu0 0.0
        %1743 = vmatpush.msra.mxu0 0.0
        %1744 = vmatpush.msra.mxu0 0.0
        %1745 = vmatpush.msra.mxu0 0.0
        %1746 = vmatpush.msra.mxu0 0.0
        %1747 = vmatpush.msra.mxu0 0.0
        %1748 = vmatpush.msra.mxu0 0.0
        %1749 = vmatpush.msra.mxu0 0.0
        %1750 = vmatpush.msra.mxu0 0.0
        %1751 = vmatpush.msra.mxu0 0.0
        %1752 = vmatpush.msra.mxu0 0.0
        %1753 = vmatpush.msra.mxu0 %v1736
        %1754 = vmatmul.f32.gmra.mxu0 %v1733
        %v1755 = vpop.f32.mrf.mxu0
        %v1756 = vadd.f32 0.0, %v1755
        %1757 = vdwg.mxu0
        %v1759 = vsel %vm1042, %v1624, 0
        %v1762 = vsel %vm1630, %v1326, 0
        %1764 = vmatpush.msra.mxu0 0.0
        %1765 = vmatpush.msra.mxu0 0.0
        %1766 = vmatpush.msra.mxu0 0.0
        %1767 = vmatpush.msra.mxu0 0.0
        %1768 = vmatpush.msra.mxu0 0.0
        %1769 = vmatpush.msra.mxu0 0.0
        %1770 = vmatpush.msra.mxu0 0.0
        %1771 = vmatpush.msra.mxu0 0.0
        %1772 = vmatpush.msra.mxu0 0.0
        %1773 = vmatpush.msra.mxu0 0.0
        %1774 = vmatpush.msra.mxu0 0.0
        %1775 = vmatpush.msra.mxu0 0.0
        %1776 = vmatpush.msra.mxu0 0.0
        %1777 = vmatpush.msra.mxu0 0.0
        %1778 = vmatpush.msra.mxu0 0.0
        %1779 = vmatpush.msra.mxu0 %v1762
        %1780 = vmatmul.f32.gmra.mxu0 %v1759
        %v1781 = vpop.f32.mrf.mxu0
        %v1782 = vadd.f32 0.0, %v1781
        %1783 = vdwg.mxu0
        %v1785 = vsel %vm1042, %v1625, 0
        %v1788 = vsel %vm1630, %v1320, 0
        %1790 = vmatpush.msra.mxu0 0.0
        %1791 = vmatpush.msra.mxu0 0.0
        %1792 = vmatpush.msra.mxu0 0.0
        %1793 = vmatpush.msra.mxu0 0.0
        %1794 = vmatpush.msra.mxu0 0.0
        %1795 = vmatpush.msra.mxu0 0.0
        %1796 = vmatpush.msra.mxu0 0.0
        %1797 = vmatpush.msra.mxu0 0.0
        %1798 = vmatpush.msra.mxu0 0.0
        %1799 = vmatpush.msra.mxu0 0.0
        %1800 = vmatpush.msra.mxu0 0.0
        %1801 = vmatpush.msra.mxu0 0.0
        %1802 = vmatpush.msra.mxu0 0.0
        %1803 = vmatpush.msra.mxu0 0.0
        %1804 = vmatpush.msra.mxu0 0.0
        %1805 = vmatpush.msra.mxu0 %v1788
        %1806 = vmatmul.f32.gmra.mxu0 %v1785
        %v1807 = vpop.f32.mrf.mxu0
        %v1808 = vadd.f32 0.0, %v1807
        %1809 = vdwg.mxu0
        %v1811 = vsel %vm1042, %v1626, 0
        %v1814 = vsel %vm1630, %v1328, 0
        %1816 = vmatpush.msra.mxu0 0.0
        %1817 = vmatpush.msra.mxu0 0.0
        %1818 = vmatpush.msra.mxu0 0.0
        %1819 = vmatpush.msra.mxu0 0.0
        %1820 = vmatpush.msra.mxu0 0.0
        %1821 = vmatpush.msra.mxu0 0.0
        %1822 = vmatpush.msra.mxu0 0.0
        %1823 = vmatpush.msra.mxu0 0.0
        %1824 = vmatpush.msra.mxu0 0.0
        %1825 = vmatpush.msra.mxu0 0.0
        %1826 = vmatpush.msra.mxu0 0.0
        %1827 = vmatpush.msra.mxu0 0.0
        %1828 = vmatpush.msra.mxu0 0.0
        %1829 = vmatpush.msra.mxu0 0.0
        %1830 = vmatpush.msra.mxu0 0.0
        %1831 = vmatpush.msra.mxu0 %v1814
        %1832 = vmatmul.f32.gmra.mxu0 %v1811
        %v1833 = vpop.f32.mrf.mxu0
        %v1834 = vadd.f32 0.0, %v1833
        %1835 = vdwg.mxu0
        %v1836 = vrot.slane %v1704, 4
        %v1837 = vsel %vm585, %v1836, %v1652
        %v1839 = vunpack.c.l.s4 1983009808
        %v1840 = vunpack.c.0.s8 %v1839
        %v1841 = vperm.slane %v1837, %v1840
        %v1842 = vrot.slane %v1730, 4
        %v1843 = vsel %vm585, %v1842, %v1678
        %v1845 = vunpack.c.l.s4 1983009808
        %v1846 = vunpack.c.0.s8 %v1845
        %v1847 = vperm.slane %v1843, %v1846
        %v1848 = vrot.slane %v1808, 4
        %v1849 = vsel %vm585, %v1848, %v1756
        %v1851 = vunpack.c.l.s4 1983009808
        %v1852 = vunpack.c.0.s8 %v1851
        %v1853 = vperm.slane %v1849, %v1852
        %v1854 = vrot.slane %v1834, 4
        %v1855 = vsel %vm585, %v1854, %v1782
        %v1857 = vunpack.c.l.s4 1983009808
        %v1858 = vunpack.c.0.s8 %v1857
        %v1859 = vperm.slane %v1855, %v1858
        %v1860 = vrot.slane %v1847, 4
        %v1861 = vsel %vm585, %v1860, %v1841
        %v1862 = vrot.slane %v1841, 4
        %v1863 = vsel %vm585, %v1847, %v1862
        %v1865 = vunpack.c.l.s4 1934713408
        %v1866 = vunpack.c.0.s8 %v1865
        %v1867 = vperm.slane %v1861, %v1866
        %v1869 = vunpack.c.l.s4 1934713408
        %v1870 = vunpack.c.0.s8 %v1869
        %v1871 = vperm.slane %v1863, %v1870
        %v1872 = vrot.slane %v1859, 4
        %v1873 = vsel %vm585, %v1872, %v1853
        %v1874 = vrot.slane %v1853, 4
        %v1875 = vsel %vm585, %v1859, %v1874
        %v1877 = vunpack.c.l.s4 1934713408
        %v1878 = vunpack.c.0.s8 %v1877
        %v1879 = vperm.slane %v1873, %v1878
        %v1881 = vunpack.c.l.s4 1934713408
        %v1882 = vunpack.c.0.s8 %v1881
        %v1883 = vperm.slane %v1875, %v1882
        %v1884 = vrot.slane %v1879, 4
        %v1885 = vsel %vm585, %v1884, %v1867
        %v1886 = vrot.slane %v1867, 4
        %v1887 = vsel %vm585, %v1879, %v1886
        %v1888 = vrot.slane %v1883, 4
        %v1889 = vsel %vm585, %v1888, %v1871
        %v1890 = vrot.slane %v1871, 4
        %v1891 = vsel %vm585, %v1883, %v1890
        %1893 = vrot.lane.b32.xlu0 %v1887, 8
        %v1894 = vpop.permute.xlu0 %1893
        %1897 = vrot.lane.b32.xlu0 %v1889, 16
        %v1898 = vpop.permute.xlu0 %1897
        %1901 = vrot.lane.b32.xlu0 %v1891, 24
        %v1902 = vpop.permute.xlu0 %1901
        %v1904 = vsel %vm1044, %v1885, %v1894
        %v1905 = vsel %vm498, %v1904, %v1898
        %vm1906 = vcmask 195584
        %v1907 = vsel %vm1906, %v1905, %v1902
        %v1908 = vld [vmem:[#allocation8] sm:$0xff]
        %v1909 = vld [vmem:[#allocation8 + $0x8] sm:$0xff]
        %v1910 = vld [vmem:[#allocation8 + $0x10] sm:$0xff]
        %v1911 = vld [vmem:[#allocation8 + $0x18] sm:$0xff]
        %v1913 = vsel %vm472, %v1907, 0
        %1915 = vmatpush.msra.mxu0 0.0
        %1916 = vmatpush.msra.mxu0 0.0
        %1917 = vmatpush.msra.mxu0 0.0
        %1918 = vmatpush.msra.mxu0 0.0
        %1919 = vmatpush.msra.mxu0 0.0
        %1920 = vmatpush.msra.mxu0 0.0
        %1921 = vmatpush.msra.mxu0 0.0
        %1922 = vmatpush.msra.mxu0 0.0
        %1923 = vmatpush.msra.mxu0 0.0
        %1924 = vmatpush.msra.mxu0 0.0
        %1925 = vmatpush.msra.mxu0 0.0
        %1926 = vmatpush.msra.mxu0 0.0
        %1927 = vmatpush.msra.mxu0 %v1911
        %1928 = vmatpush.msra.mxu0 %v1910
        %1929 = vmatpush.msra.mxu0 %v1909
        %1930 = vmatpush.msra.mxu0 %v1908
        %1931 = vmatmul.f32.gmra.mxu0 %v1913
        %v1932 = vpop.f32.mrf.mxu0
        %v1933 = vadd.f32 0.0, %v1932
        %1934 = vdwg.mxu0
        %1935 = vst.msk [vmem:[%s444] sm:$0xff] %vm472, %v1933
        %s1936 = sand.u32 %s237, 1
        %s1937 = scalar_lea.sflag [#allocation4], %s1936
        %s1938 = sand.u32 %s237, 1
        %s1939 = smul.addr %s1938, 8
        %s1940 = scalar_lea.vmem [#allocation10], %s1939
        %s1941 = sand.u32 %s265, 1
        %s1942 = scalar_lea.sflag [#allocation12], %s1941
        %s1943 = sand.u32 %s265, 1
        %s1944 = smul.addr %s1943, 8
        %s1945 = scalar_lea.vmem [#allocation11], %s1944
        // Predicated region
        $region69: #{tpu_custom_call.1} parent=51 // pred_check
          %p1946 = pneg %p247
        $region70: #{tpu_custom_call.1} parent=51 // pred_check_branch
          %1948 = sbr.rel (%p1946) target = $region72
        $region71: #{tpu_custom_call.1} parent=51 // pred_region
          %1950 = vsyncadd %s1937, 0
          %s1951 = sadd.s32 %s35, %s34
          %s1952 = smul.addr %s1951, 8
          %s1953 = scalar_lea.hbm %s8, %s1952
          %s1955 = sshll.u32 %s1940, 4
          %s1956 = int_to_ptr.vmem [resolvable:$true] %s1955
          %s1957 = sshll.u32 %s1953, 4
          %s1958 = int_to_ptr.hbm [resolvable:$true] %s1957
          %1960 = dma.vmem_to_hbm [thread:$0]  %s1956, 128, %s1958, %s1937
        $region72: #{tpu_custom_call.1} parent=51 // pred_fallthru
          _
        // Predicated region
        $region73: #{tpu_custom_call.1} parent=51 // pred_check
          %p1961 = pneg %p275
        $region74: #{tpu_custom_call.1} parent=51 // pred_check_branch
          %1963 = sbr.rel (%p1961) target = $region76
        $region75: #{tpu_custom_call.1} parent=51 // pred_region
          %1965 = vsyncadd %s1942, 0
          %s1966 = sadd.s32 %s35, %s34
          %s1967 = smul.addr %s1966, 8
          %s1968 = scalar_lea.hbm %s9, %s1967
          %s1970 = sshll.u32 %s1945, 4
          %s1971 = int_to_ptr.vmem [resolvable:$true] %s1970
          %s1972 = sshll.u32 %s1968, 4
          %s1973 = int_to_ptr.hbm [resolvable:$true] %s1972
          %1975 = dma.vmem_to_hbm [thread:$0]  %s1971, 128, %s1973, %s1942
        $region76: #{tpu_custom_call.1} parent=51 // pred_fallthru
          _
      $region52: #{tpu_custom_call.1} parent=5 // pred_fallthru
        _
      %p1976 = scmp.le.s32.totalorder 2, %s25
      // Predicated region
      $region77: #{tpu_custom_call.1} parent=5 // pred_check
        %p1977 = pneg %p1976
      $region78: #{tpu_custom_call.1} parent=5 // pred_check_branch
        %1979 = sbr.rel (%p1977) target = $region80
      $region79: #{tpu_custom_call.1} parent=5 // pred_region
        %s1980 = ssub.s32 %s25, 2
        // Predicated region
        $region81: #{tpu_custom_call.1} parent=79 // pred_check
          %p1981 = pneg %p253
        $region82: #{tpu_custom_call.1} parent=79 // pred_check_branch
          %1983 = sbr.rel (%p1981) target = $region84
        $region83: #{tpu_custom_call.1} parent=79 // pred_region
          %s1984 = sand.u32 %s238, 1
          %s1985 = scalar_lea.sflag [#allocation4], %s1984
          %s1986 = sand.u32 %s238, 1
          %s1987 = smul.addr %s1986, 8
          %s1988 = scalar_lea.vmem [#allocation10], %s1987
          %1990 = dma.done %s1985, 128
        $region84: #{tpu_custom_call.1} parent=79 // pred_fallthru
          _
        // Predicated region
        $region85: #{tpu_custom_call.1} parent=79 // pred_check
          %p1991 = pneg %p281
        $region86: #{tpu_custom_call.1} parent=79 // pred_check_branch
          %1993 = sbr.rel (%p1991) target = $region88
        $region87: #{tpu_custom_call.1} parent=79 // pred_region
          %s1994 = sand.u32 %s266, 1
          %s1995 = scalar_lea.sflag [#allocation12], %s1994
          %s1996 = sand.u32 %s266, 1
          %s1997 = smul.addr %s1996, 8
          %s1998 = scalar_lea.vmem [#allocation11], %s1997
          %2000 = dma.done %s1995, 128
        $region88: #{tpu_custom_call.1} parent=79 // pred_fallthru
          _
      $region80: #{tpu_custom_call.1} parent=5 // pred_fallthru
        _
    $region6: #{tpu_custom_call.1} parent=1 // loop_footer
      %s29 = sadd.s32 1, %s25
    $region7: #{tpu_custom_call.1} parent=1 // loop_footer_branch
      %24 = sbr.rel target = $region3
    $region8: #{tpu_custom_call.1} parent=1 // loop_exit
      _
    %2001 = vsyncpa [#allocation3], 1
    %s2002 = scalar_lea.sflag [#allocation3], 1
    %2003 = vsyncpa %s2002, 1
    %2004 = vsyncpa [#allocation6], 1
    %2005 = vsyncpa [#allocation9], 1
    %2006 = vsyncpa [#allocation4], 1
    %s2007 = scalar_lea.sflag [#allocation4], 1
    %2008 = vsyncpa %s2007, 1
    %2009 = vsyncpa [#allocation12], 1
    %s2010 = scalar_lea.sflag [#allocation12], 1
    %2011 = vsyncpa %s2010, 1

// kernel: tpu_custom_call.1
$region0: #{tpu_custom_call.1}
  #allocation0 [shape = 'u32[]', space=smem, size = 0x4, offset = 0x4, fixed_abs, tag = 'smem constant byte address 0x4 - core index']
  #allocation1 [shape = 'u32[72,128]{1,0:T(1,128)}', space=vmem, size = 0x9000, scoped, tag = 'internal scratch']
  %s0 = inlined_call_operand.vmem [shape: f32[2,8,32], index: 0, kind: input, shape index: {}]
  %s1 = inlined_call_operand.hbm [shape: f32[32,48], index: 1, kind: input, shape index: {}]
  %s2 = inlined_call_operand.hbm [shape: f32[16,48], index: 2, kind: input, shape index: {}]
  %s3 = inlined_call_operand.hbm [shape: f32[16,32], index: 3, kind: input, shape index: {}]
  %s4 = inlined_call_operand.hbm [shape: f32[32,32], index: 4, kind: input, shape index: {}]
  %s5 = inlined_call_operand.vmem [shape: f32[8,2], index: 5, kind: input, shape index: {}]
  %s6 = inlined_call_operand.vmem [shape: f32[8,2], index: 6, kind: input, shape index: {}]
  %s7 = inlined_call_operand.vmem [shape: f32[4,4], index: 7, kind: input, shape index: {}]
  %s8 = inlined_call_operand.hbm [shape: f32[2,8,32], index: 8, kind: output, shape index: {0}]
  %s9 = inlined_call_operand.hbm [shape: f32[2,8,32], index: 9, kind: output, shape index: {1}]
  %10 = xla_tuple %s8, %s9
  %s11 = sld [smem:[#allocation0]]
  $region89: #{tpu_custom_call.1} parent=0
    _
  %s13 = ssub.s32 1, %s11
  %s14 = scalar_select 0, %s13, %s11
  $region1: #{tpu_custom_call.1} parent=0
    #allocation2 [shape = 'u8[16384]{0}', space=vmem, size = 0x4000, scoped, tag = 'input window, operand 1, single buffered']
    #allocation3 [shape = 's32[2]{0}', space=sflag, size = 0x8, scoped, tag = 'scoped memory for tpu_custom_call.1']
    #allocation4 [shape = 's32[2]{0}', space=sflag, size = 0x8, scoped, tag = 'scoped memory for tpu_custom_call.1']
    #allocation5 [shape = 'u8[8192]{0}', space=vmem, size = 0x2000, scoped, tag = 'input window, operand 2, single buffered']
    #allocation6 [shape = 's32[1]{0}', space=sflag, size = 0x4, scoped, tag = 'scoped memory for tpu_custom_call.1']
    #allocation7 [shape = 'u8[8192]{0}', space=vmem, size = 0x2000, scoped, tag = 'input window, operand 3, single buffered']
    #allocation8 [shape = 'u8[16384]{0}', space=vmem, size = 0x4000, scoped, tag = 'input window, operand 4, single buffered']
    #allocation9 [shape = 's32[1]{0}', space=sflag, size = 0x4, scoped, tag = 'scoped memory for tpu_custom_call.1']
    #allocation10 [shape = 'u8[8192]{0}', space=vmem, size = 0x2000, scoped, tag = 'output window, operand 0']
    #allocation11 [shape = 'u8[8192]{0}', space=vmem, size = 0x2000, scoped, tag = 'output window, operand 1']
    #allocation12 [shape = 's32[2]{0}', space=sflag, size = 0x8, scoped, tag = 'scoped memory for tpu_custom_call.1']
    %15 = vsyncpa [#allocation3], 0
    %16 = vsyncpa [#allocation6], 0
    %17 = vsyncpa [#allocation9], 0
    %18 = vsyncpa [#allocation4], 0
    %s19 = scalar_lea.sflag [#allocation4], 1
    %20 = vsyncpa %s19, 0
    %21 = vsyncpa [#allocation12], 0
    %s22 = scalar_lea.sflag [#allocation12], 1
    %23 = vsyncpa %s22, 0
    loop: start=0, step=1, limit=4
    $region2: #{tpu_custom_call.1} parent=1 // loop_pre_header
      _
    $region3: #{tpu_custom_call.1} parent=1 // loop_header
      %s25 = sphi 0, %s29
      %p26 = scmp.ge.s32.totalorder %s25, 4
      %s32 = sphi 0, %s44
      %s33 = sphi 0, %s40
      %s34 = sphi 0, %s32
      %s35 = sphi 0, %s33
      %s36 = sphi 0, %s34
      %s37 = sphi 0, %s35
      %s49 = sphi 0, %s51
      %s52 = sphi 0, %s49
      %s53 = sphi 0, %s52
      %s69 = sphi 0, %s53
      %s73 = sphi 0, %s73
      %s75 = sphi 0, %s73
      %s76 = sphi 0, %s75
      %s90 = sphi 0, %s76
      %s94 = sphi 0, %s94
      %s96 = sphi 0, %s94
      %s97 = sphi 0, %s96
      %s111 = sphi 0, %s97
      %s115 = sphi 0, %s115
      %s117 = sphi 0, %s115
      %s118 = sphi 0, %s117
      %s132 = sphi 0, %s118
      %s136 = sphi 0, %s136
      %s138 = sphi 0, %s136
      %s139 = sphi 0, %s138
      %s153 = sphi 0, %s139
      %s159 = sphi 0, %s161
      %s162 = sphi 0, %s159
      %s163 = sphi 0, %s162
      %s179 = sphi 0, %s163
      %s185 = sphi 0, %s187
      %s188 = sphi 0, %s185
      %s189 = sphi 0, %s188
      %s205 = sphi 0, %s189
      %s209 = sphi 0, %s209
      %s211 = sphi 0, %s209
      %s212 = sphi 0, %s211
      %s226 = sphi 0, %s212
      %s234 = sphi 0, %s236
      %s237 = sphi 0, %s234
      %s238 = sphi 0, %s237
      %s254 = sphi 0, %s238
      %s262 = sphi 0, %s264
      %s265 = sphi 0, %s262
      %s266 = sphi 0, %s265
      %s282 = sphi 0, %s266
    $region4: #{tpu_custom_call.1} parent=1 // loop_header_branch
      %28 = sbr.rel (%p26) target = $region8
    $region5: #{tpu_custom_call.1} parent=1 // loop_body
      %s30 = ssub.s32 %s25, 1
      %s31 = ssub.s32 %s25, 2
      %s38 = sadd.s32 1, %s33
      %p39 = scmp.ge.s32.totalorder %s38, 1
      %s40 = scalar_select %p39, 0, %s38
      %s41 = sadd.s32 1, %s32
      %s42 = scalar_select %p39, %s41, %s32
      %p43 = scmp.ge.s32.totalorder %s42, 2
      %s44 = scalar_select %p43, 0, %s42
      %s45 = ssub.s32 %s32, %s44
      %s46 = ssub.s32 %s33, %s40
      %s47 = sor.u32 %s45, %s46
      %p48 = scmp.eq.s32.totalorder %s47, 0
      %s50 = sadd.s32 %s49, 1
      %s51 = scalar_select %p48, %s49, %s50
      %p54 = pneg %p48
      %p55 = scmp.eq.s32.totalorder %s25, 1
      %p56 = por %p54, %p55
      %p57 = scmp.ne.s32.totalorder %s49, %s52
      %p58 = scmp.eq.s32.totalorder %s25, 0
      %p59 = por %p57, %p58
      %p60 = scmp.ne.s32.totalorder %s49, %s52
      %p61 = scmp.eq.s32.totalorder %s30, 1
      %p62 = por %p60, %p61
      %p63 = scmp.ne.s32.totalorder %s52, %s53
      %p64 = scmp.eq.s32.totalorder %s30, 0
      %p65 = por %p63, %p64
      %p66 = scmp.ne.s32.totalorder %s52, %s53
      %p67 = scmp.eq.s32.totalorder %s31, 1
      %p68 = por %p66, %p67
      %p70 = scmp.ne.s32.totalorder %s53, %s69
      %p71 = scmp.eq.s32.totalorder %s31, 0
      %p72 = por %p70, %p71
      %s74 = sadd.s32 %s73, 1
      %p77 = scmp.eq.s32.totalorder %s25, 1
      %p78 = scmp.ne.s32.totalorder %s73, %s75
      %p79 = scmp.eq.s32.totalorder %s25, 0
      %p80 = por %p78, %p79
      %p81 = scmp.ne.s32.totalorder %s73, %s75
      %p82 = scmp.eq.s32.totalorder %s30, 1
      %p83 = por %p81, %p82
      %p84 = scmp.ne.s32.totalorder %s75, %s76
      %p85 = scmp.eq.s32.totalorder %s30, 0
      %p86 = por %p84, %p85
      %p87 = scmp.ne.s32.totalorder %s75, %s76
      %p88 = scmp.eq.s32.totalorder %s31, 1
      %p89 = por %p87, %p88
      %p91 = scmp.ne.s32.totalorder %s76, %s90
      %p92 = scmp.eq.s32.totalorder %s31, 0
      %p93 = por %p91, %p92
      %s95 = sadd.s32 %s94, 1
      %p98 = scmp.eq.s32.totalorder %s25, 1
      %p99 = scmp.ne.s32.totalorder %s94, %s96
      %p100 = scmp.eq.s32.totalorder %s25, 0
      %p101 = por %p99, %p100
      %p102 = scmp.ne.s32.totalorder %s94, %s96
      %p103 = scmp.eq.s32.totalorder %s30, 1
      %p104 = por %p102, %p103
      %p105 = scmp.ne.s32.totalorder %s96, %s97
      %p106 = scmp.eq.s32.totalorder %s30, 0
      %p107 = por %p105, %p106
      %p108 = scmp.ne.s32.totalorder %s96, %s97
      %p109 = scmp.eq.s32.totalorder %s31, 1
      %p110 = por %p108, %p109
      %p112 = scmp.ne.s32.totalorder %s97, %s111
      %p113 = scmp.eq.s32.totalorder %s31, 0
      %p114 = por %p112, %p113
      %s116 = sadd.s32 %s115, 1
      %p119 = scmp.eq.s32.totalorder %s25, 1
      %p120 = scmp.ne.s32.totalorder %s115, %s117
      %p121 = scmp.eq.s32.totalorder %s25, 0
      %p122 = por %p120, %p121
      %p123 = scmp.ne.s32.totalorder %s115, %s117
      %p124 = scmp.eq.s32.totalorder %s30, 1
      %p125 = por %p123, %p124
      %p126 = scmp.ne.s32.totalorder %s117, %s118
      %p127 = scmp.eq.s32.totalorder %s30, 0
      %p128 = por %p126, %p127
      %p129 = scmp.ne.s32.totalorder %s117, %s118
      %p130 = scmp.eq.s32.totalorder %s31, 1
      %p131 = por %p129, %p130
      %p133 = scmp.ne.s32.totalorder %s118, %s132
      %p134 = scmp.eq.s32.totalorder %s31, 0
      %p135 = por %p133, %p134
      %s137 = sadd.s32 %s136, 1
      %p140 = scmp.eq.s32.totalorder %s25, 1
      %p141 = scmp.ne.s32.totalorder %s136, %s138
      %p142 = scmp.eq.s32.totalorder %s25, 0
      %p143 = por %p141, %p142
      %p144 = scmp.ne.s32.totalorder %s136, %s138
      %p145 = scmp.eq.s32.totalorder %s30, 1
      %p146 = por %p144, %p145
      %p147 = scmp.ne.s32.totalorder %s138, %s139
      %p148 = scmp.eq.s32.totalorder %s30, 0
      %p149 = por %p147, %p148
      %p150 = scmp.ne.s32.totalorder %s138, %s139
      %p151 = scmp.eq.s32.totalorder %s31, 1
      %p152 = por %p150, %p151
      %p154 = scmp.ne.s32.totalorder %s139, %s153
      %p155 = scmp.eq.s32.totalorder %s31, 0
      %p156 = por %p154, %p155
      %s157 = ssub.s32 %s33, %s40
      %p158 = scmp.eq.s32.totalorder %s157, 0
      %s160 = sadd.s32 %s159, 1
      %s161 = scalar_select %p158, %s159, %s160
      %p164 = pneg %p158
      %p165 = scmp.eq.s32.totalorder %s25, 1
      %p166 = por %p164, %p165
      %p167 = scmp.ne.s32.totalorder %s159, %s162
      %p168 = scmp.eq.s32.totalorder %s25, 0
      %p169 = por %p167, %p168
      %p170 = scmp.ne.s32.totalorder %s159, %s162
      %p171 = scmp.eq.s32.totalorder %s30, 1
      %p172 = por %p170, %p171
      %p173 = scmp.ne.s32.totalorder %s162, %s163
      %p174 = scmp.eq.s32.totalorder %s30, 0
      %p175 = por %p173, %p174
      %p176 = scmp.ne.s32.totalorder %s162, %s163
      %p177 = scmp.eq.s32.totalorder %s31, 1
      %p178 = por %p176, %p177
      %p180 = scmp.ne.s32.totalorder %s163, %s179
      %p181 = scmp.eq.s32.totalorder %s31, 0
      %p182 = por %p180, %p181
      %s183 = ssub.s32 %s33, %s40
      %p184 = scmp.eq.s32.totalorder %s183, 0
      %s186 = sadd.s32 %s185, 1
      %s187 = scalar_select %p184, %s185, %s186
      %p190 = pneg %p184
      %p191 = scmp.eq.s32.totalorder %s25, 1
      %p192 = por %p190, %p191
      %p193 = scmp.ne.s32.totalorder %s185, %s188
      %p194 = scmp.eq.s32.totalorder %s25, 0
      %p195 = por %p193, %p194
      %p196 = scmp.ne.s32.totalorder %s185, %s188
      %p197 = scmp.eq.s32.totalorder %s30, 1
      %p198 = por %p196, %p197
      %p199 = scmp.ne.s32.totalorder %s188, %s189
      %p200 = scmp.eq.s32.totalorder %s30, 0
      %p201 = por %p199, %p200
      %p202 = scmp.ne.s32.totalorder %s188, %s189
      %p203 = scmp.eq.s32.totalorder %s31, 1
      %p204 = por %p202, %p203
      %p206 = scmp.ne.s32.totalorder %s189, %s205
      %p207 = scmp.eq.s32.totalorder %s31, 0
      %p208 = por %p206, %p207
      %s210 = sadd.s32 %s209, 1
      %p213 = scmp.eq.s32.totalorder %s25, 1
      %p214 = scmp.ne.s32.totalorder %s209, %s211
      %p215 = scmp.eq.s32.totalorder %s25, 0
      %p216 = por %p214, %p215
      %p217 = scmp.ne.s32.totalorder %s209, %s211
      %p218 = scmp.eq.s32.totalorder %s30, 1
      %p219 = por %p217, %p218
      %p220 = scmp.ne.s32.totalorder %s211, %s212
      %p221 = scmp.eq.s32.totalorder %s30, 0
      %p222 = por %p220, %p221
      %p223 = scmp.ne.s32.totalorder %s211, %s212
      %p224 = scmp.eq.s32.totalorder %s31, 1
      %p225 = por %p223, %p224
      %p227 = scmp.ne.s32.totalorder %s212, %s226
      %p228 = scmp.eq.s32.totalorder %s31, 0
      %p229 = por %p227, %p228
      %s230 = ssub.s32 %s32, %s44
      %s231 = ssub.s32 %s33, %s40
      %s232 = sor.u32 %s230, %s231
      %p233 = scmp.eq.s32.totalorder %s232, 0
      %s235 = sadd.s32 %s234, 1
      %s236 = scalar_select %p233, %s234, %s235
      %p239 = pneg %p233
      %p240 = scmp.eq.s32.totalorder %s25, 1
      %p241 = por %p239, %p240
      %p242 = scmp.ne.s32.totalorder %s234, %s237
      %p243 = scmp.eq.s32.totalorder %s25, 0
      %p244 = por %p242, %p243
      %p245 = scmp.ne.s32.totalorder %s234, %s237
      %p246 = scmp.eq.s32.totalorder %s30, 1
      %p247 = por %p245, %p246
      %p248 = scmp.ne.s32.totalorder %s237, %s238
      %p249 = scmp.eq.s32.totalorder %s30, 0
      %p250 = por %p248, %p249
      %p251 = scmp.ne.s32.totalorder %s237, %s238
      %p252 = scmp.eq.s32.totalorder %s31, 1
      %p253 = por %p251, %p252
      %p255 = scmp.ne.s32.totalorder %s238, %s254
      %p256 = scmp.eq.s32.totalorder %s31, 0
      %p257 = por %p255, %p256
      %s258 = ssub.s32 %s32, %s44
      %s259 = ssub.s32 %s33, %s40
      %s260 = sor.u32 %s258, %s259
      %p261 = scmp.eq.s32.totalorder %s260, 0
      %s263 = sadd.s32 %s262, 1
      %s264 = scalar_select %p261, %s262, %s263
      %p267 = pneg %p261
      %p268 = scmp.eq.s32.totalorder %s25, 1
      %p269 = por %p267, %p268
      %p270 = scmp.ne.s32.totalorder %s262, %s265
      %p271 = scmp.eq.s32.totalorder %s25, 0
      %p272 = por %p270, %p271
      %p273 = scmp.ne.s32.totalorder %s262, %s265
      %p274 = scmp.eq.s32.totalorder %s30, 1
      %p275 = por %p273, %p274
      %p276 = scmp.ne.s32.totalorder %s265, %s266
      %p277 = scmp.eq.s32.totalorder %s30, 0
      %p278 = por %p276, %p277
      %p279 = scmp.ne.s32.totalorder %s265, %s266
      %p280 = scmp.eq.s32.totalorder %s31, 1
      %p281 = por %p279, %p280
      %p283 = scmp.ne.s32.totalorder %s266, %s282
      %p284 = scmp.eq.s32.totalorder %s31, 0
      %p285 = por %p283, %p284
      %p286 = scmp.le.s32.totalorder 1, %s25
      %p287 = scmp.lt.s32.totalorder %s25, 3
      %p288 = pnand %p286, %p287
      %p289 = pneg %p288
      // Predicated region
      $region9: #{tpu_custom_call.1} parent=5 // pred_check
        _
      $region10: #{tpu_custom_call.1} parent=5 // pred_check_branch
        %291 = sbr.rel (%p288) target = $region12
      $region11: #{tpu_custom_call.1} parent=5 // pred_region
        %s292 = ssub.s32 %s25, 1
        // Predicated region
        $region13: #{tpu_custom_call.1} parent=11 // pred_check
          %p293 = pneg %p86
        $region14: #{tpu_custom_call.1} parent=11 // pred_check_branch
          %295 = sbr.rel (%p293) target = $region16
        $region15: #{tpu_custom_call.1} parent=11 // pred_region
          %297 = vsyncadd [#allocation3], 0
          %s298 = sshll.u32 %s1, 4
          %s299 = int_to_ptr.hbm [resolvable:$true] %s298
          %s300 = sshll.u32 [#allocation2], 4
          %s301 = int_to_ptr.vmem [resolvable:$true] %s300
          %306 = dma.hbm_to_vmem [thread:$0]  %s299, 512, %s301, [#allocation3], 128, 128, 8
        $region16: #{tpu_custom_call.1} parent=11 // pred_fallthru
          _
        // Predicated region
        $region17: #{tpu_custom_call.1} parent=11 // pred_check
          %p307 = pneg %p107
        $region18: #{tpu_custom_call.1} parent=11 // pred_check_branch
          %309 = sbr.rel (%p307) target = $region20
        $region19: #{tpu_custom_call.1} parent=11 // pred_region
          %311 = vsyncadd [#allocation6], 0
          %s312 = sshll.u32 %s2, 4
          %s313 = int_to_ptr.hbm [resolvable:$true] %s312
          %s314 = sshll.u32 [#allocation5], 4
          %s315 = int_to_ptr.vmem [resolvable:$true] %s314
          %320 = dma.hbm_to_vmem [thread:$0]  %s313, 256, %s315, [#allocation6], 128, 128, 8
        $region20: #{tpu_custom_call.1} parent=11 // pred_fallthru
          _
        // Predicated region
        $region21: #{tpu_custom_call.1} parent=11 // pred_check
          %p321 = pneg %p128
        $region22: #{tpu_custom_call.1} parent=11 // pred_check_branch
          %323 = sbr.rel (%p321) target = $region24
        $region23: #{tpu_custom_call.1} parent=11 // pred_region
          %325 = vsyncadd [#allocation6], 0
          %s326 = sshll.u32 %s3, 4
          %s327 = int_to_ptr.hbm [resolvable:$true] %s326
          %s328 = sshll.u32 [#allocation7], 4
          %s329 = int_to_ptr.vmem [resolvable:$true] %s328
          %334 = dma.hbm_to_vmem [thread:$0]  %s327, 256, %s329, [#allocation6], 128, 128, 8
        $region24: #{tpu_custom_call.1} parent=11 // pred_fallthru
          _
        // Predicated region
        $region25: #{tpu_custom_call.1} parent=11 // pred_check
          %p335 = pneg %p149
        $region26: #{tpu_custom_call.1} parent=11 // pred_check_branch
          %337 = sbr.rel (%p335) target = $region28
        $region27: #{tpu_custom_call.1} parent=11 // pred_region
          %339 = vsyncadd [#allocation9], 0
          %s340 = sshll.u32 %s4, 4
          %s341 = int_to_ptr.hbm [resolvable:$true] %s340
          %s342 = sshll.u32 [#allocation8], 4
          %s343 = int_to_ptr.vmem [resolvable:$true] %s342
          %348 = dma.hbm_to_vmem [thread:$0]  %s341, 512, %s343, [#allocation9], 128, 128, 8
        $region28: #{tpu_custom_call.1} parent=11 // pred_fallthru
          _
        // Predicated region
        $region29: #{tpu_custom_call.1} parent=11 // pred_check
          %p349 = pneg %p175
        $region30: #{tpu_custom_call.1} parent=11 // pred_check_branch
          %351 = sbr.rel (%p349) target = $region32
        $region31: #{tpu_custom_call.1} parent=11 // pred_region
          %p352 = scmp.lt.s32.totalorder %s35, 0
          %s353 = scalar_select %p352, %s35, 0
          %s354 = smul.addr %s353, 8
          %s355 = scalar_lea.vmem %s5, %s354
        $region32: #{tpu_custom_call.1} parent=11 // pred_fallthru
          _
        // Predicated region
        $region33: #{tpu_custom_call.1} parent=11 // pred_check
          %p356 = pneg %p201
        $region34: #{tpu_custom_call.1} parent=11 // pred_check_branch
          %358 = sbr.rel (%p356) target = $region36
        $region35: #{tpu_custom_call.1} parent=11 // pred_region
          %p359 = scmp.lt.s32.totalorder %s35, 0
          %s360 = scalar_select %p359, %s35, 0
          %s361 = smul.addr %s360, 8
          %s362 = scalar_lea.vmem %s6, %s361
        $region36: #{tpu_custom_call.1} parent=11 // pred_fallthru
          _
        // Predicated region
        $region37: #{tpu_custom_call.1} parent=11 // pred_check
          %p363 = pneg %p222
        $region38: #{tpu_custom_call.1} parent=11 // pred_check_branch
          %365 = sbr.rel (%p363) target = $region40
        $region39: #{tpu_custom_call.1} parent=11 // pred_region
          _
        $region40: #{tpu_custom_call.1} parent=11 // pred_fallthru
          _
      $region12: #{tpu_custom_call.1} parent=5 // pred_fallthru
        _
      %p366 = scmp.lt.s32.totalorder %s25, 2
      // Predicated region
      $region41: #{tpu_custom_call.1} parent=5 // pred_check
        %p367 = pneg %p366
      $region42: #{tpu_custom_call.1} parent=5 // pred_check_branch
        %369 = sbr.rel (%p367) target = $region44
      $region43: #{tpu_custom_call.1} parent=5 // pred_region
        // Predicated region
        $region45: #{tpu_custom_call.1} parent=43 // pred_check
          %p370 = pneg %p59
        $region46: #{tpu_custom_call.1} parent=43 // pred_check_branch
          %372 = sbr.rel (%p370) target = $region48
        $region47: #{tpu_custom_call.1} parent=43 // pred_region
          %p373 = scmp.lt.s32.totalorder %s32, 1
          %s374 = scalar_select %p373, %s32, 1
          %p375 = scmp.lt.s32.totalorder %s33, 0
          %s376 = scalar_select %p375, %s33, 0
          %s377 = sadd.s32 %s376, %s374
          %s378 = smul.addr %s377, 8
          %s379 = scalar_lea.vmem %s0, %s378
        $region48: #{tpu_custom_call.1} parent=43 // pred_fallthru
          _
      $region44: #{tpu_custom_call.1} parent=5 // pred_fallthru
        _
      %p380 = scmp.le.s32.totalorder 1, %s25
      %p381 = scmp.lt.s32.totalorder %s25, 3
      %p382 = pnand %p380, %p381
      %p383 = pneg %p382
      // Predicated region
      $region49: #{tpu_custom_call.1} parent=5 // pred_check
        _
      $region50: #{tpu_custom_call.1} parent=5 // pred_check_branch
        %385 = sbr.rel (%p382) target = $region52
      $region51: #{tpu_custom_call.1} parent=5 // pred_region
        %s386 = ssub.s32 %s25, 1
        // Predicated region
        $region53: #{tpu_custom_call.1} parent=51 // pred_check
          %p387 = pneg %p86
        $region54: #{tpu_custom_call.1} parent=51 // pred_check_branch
          %389 = sbr.rel (%p387) target = $region56
        $region55: #{tpu_custom_call.1} parent=51 // pred_region
          %391 = dma.done [#allocation3], 512
        $region56: #{tpu_custom_call.1} parent=51 // pred_fallthru
          _
        // Predicated region
        $region57: #{tpu_custom_call.1} parent=51 // pred_check
          %p392 = pneg %p107
        $region58: #{tpu_custom_call.1} parent=51 // pred_check_branch
          %394 = sbr.rel (%p392) target = $region60
        $region59: #{tpu_custom_call.1} parent=51 // pred_region
          %396 = dma.done [#allocation6], 256
        $region60: #{tpu_custom_call.1} parent=51 // pred_fallthru
          _
        // Predicated region
        $region61: #{tpu_custom_call.1} parent=51 // pred_check
          %p397 = pneg %p128
        $region62: #{tpu_custom_call.1} parent=51 // pred_check_branch
          %399 = sbr.rel (%p397) target = $region64
        $region63: #{tpu_custom_call.1} parent=51 // pred_region
          %401 = dma.done [#allocation6], 256
        $region64: #{tpu_custom_call.1} parent=51 // pred_fallthru
          _
        // Predicated region
        $region65: #{tpu_custom_call.1} parent=51 // pred_check
          %p402 = pneg %p149
        $region66: #{tpu_custom_call.1} parent=51 // pred_check_branch
          %404 = sbr.rel (%p402) target = $region68
        $region67: #{tpu_custom_call.1} parent=51 // pred_region
          %406 = dma.done [#allocation9], 512
        $region68: #{tpu_custom_call.1} parent=51 // pred_fallthru
          _
        %p407 = scmp.lt.s32.totalorder %s34, 1
        %s408 = scalar_select %p407, %s34, 1
        %p409 = scmp.lt.s32.totalorder %s35, 0
        %s410 = scalar_select %p409, %s35, 0
        %s411 = sadd.s32 %s410, %s408
        %s412 = smul.addr %s411, 8
        %s413 = scalar_lea.vmem %s0, %s412
        %p414 = pneg %p65
        %p415 = pneg %p62
        %p416 = pneg %p86
        %p417 = pneg %p83
        %p418 = pneg %p107
        %p419 = pneg %p104
        %p420 = pneg %p128
        %p421 = pneg %p125
        %p422 = pneg %p149
        %p423 = pneg %p146
        %p424 = scmp.lt.s32.totalorder %s35, 0
        %s425 = scalar_select %p424, %s35, 0
        %s426 = smul.addr %s425, 8
        %s427 = scalar_lea.vmem %s5, %s426
        %p428 = pneg %p175
        %p429 = pneg %p172
        %p430 = scmp.lt.s32.totalorder %s35, 0
        %s431 = scalar_select %p430, %s35, 0
        %s432 = smul.addr %s431, 8
        %s433 = scalar_lea.vmem %s6, %s432
        %p434 = pneg %p201
        %p435 = pneg %p198
        %p436 = pneg %p222
        %p437 = pneg %p219
        %p438 = pneg %p250
        %p439 = pneg %p247
        %s440 = sand.u32 %s237, 1
        %s441 = scalar_lea.sflag [#allocation4], %s440
        %s442 = sand.u32 %s237, 1
        %s443 = smul.addr %s442, 8
        %s444 = scalar_lea.vmem [#allocation10], %s443
        %p445 = pneg %p278
        %p446 = pneg %p275
        %s447 = sand.u32 %s265, 1
        %s448 = scalar_lea.sflag [#allocation12], %s447
        %s449 = sand.u32 %s265, 1
        %s450 = smul.addr %s449, 8
        %s451 = scalar_lea.vmem [#allocation11], %s450
        %p452 = scmp.lt.s32.totalorder %s34, 1
        %s453 = scalar_select %p452, %s34, 1
        %p454 = scmp.lt.s32.totalorder %s35, 0
        %s455 = scalar_select %p454, %s35, 0
        %s456 = sadd.s32 %s455, %s453
        %s457 = smul.addr %s456, 8
        %s458 = scalar_lea.vmem %s0, %s457
        %p459 = scmp.lt.s32.totalorder %s35, 0
        %s460 = scalar_select %p459, %s35, 0
        %s461 = smul.addr %s460, 8
        %s462 = scalar_lea.vmem %s5, %s461
        %p463 = scmp.lt.s32.totalorder %s35, 0
        %s464 = scalar_select %p463, %s35, 0
        %s465 = smul.addr %s464, 8
        %s466 = scalar_lea.vmem %s6, %s465
        %v467 = vld [vmem:[%s458] sm:$0xff]
        %v468 = vld [vmem:[#allocation2] sm:$0xff]
        %v469 = vld [vmem:[#allocation2 + $0x8] sm:$0xff]
        %v470 = vld [vmem:[#allocation2 + $0x10] sm:$0xff]
        %v471 = vld [vmem:[#allocation2 + $0x18] sm:$0xff]
        %vm472 = vcmask 261120
        %v474 = vsel %vm472, %v467, 0
        %476 = vmatpush.msra.mxu0 0.0
        %477 = vmatpush.msra.mxu0 0.0
        %478 = vmatpush.msra.mxu0 0.0
        %479 = vmatpush.msra.mxu0 0.0
        %480 = vmatpush.msra.mxu0 0.0
        %481 = vmatpush.msra.mxu0 0.0
        %482 = vmatpush.msra.mxu0 0.0
        %483 = vmatpush.msra.mxu0 0.0
        %484 = vmatpush.msra.mxu0 0.0
        %485 = vmatpush.msra.mxu0 0.0
        %486 = vmatpush.msra.mxu0 0.0
        %487 = vmatpush.msra.mxu0 0.0
        %488 = vmatpush.msra.mxu0 %v471
        %489 = vmatpush.msra.mxu0 %v470
        %490 = vmatpush.msra.mxu0 %v469
        %491 = vmatpush.msra.mxu0 %v468
        %492 = vmatmul.f32.gmra.mxu0 %v474
        %v493 = vpop.f32.mrf.mxu0
        %v494 = vadd.f32 0.0, %v493
        %495 = vdwg.mxu0
        %v496 = vld [vmem:[#allocation5] sm:$0xff]
        %v497 = vld [vmem:[#allocation5 + $0x8] sm:$0xff]
        %vm498 = vcmask 130048
        %v500 = vsel %vm498, %v494, 0
        %502 = vmatpush.msra.mxu0 0.0
        %503 = vmatpush.msra.mxu0 0.0
        %504 = vmatpush.msra.mxu0 0.0
        %505 = vmatpush.msra.mxu0 0.0
        %506 = vmatpush.msra.mxu0 0.0
        %507 = vmatpush.msra.mxu0 0.0
        %508 = vmatpush.msra.mxu0 0.0
        %509 = vmatpush.msra.mxu0 0.0
        %510 = vmatpush.msra.mxu0 0.0
        %511 = vmatpush.msra.mxu0 0.0
        %512 = vmatpush.msra.mxu0 0.0
        %513 = vmatpush.msra.mxu0 0.0
        %514 = vmatpush.msra.mxu0 0.0
        %515 = vmatpush.msra.mxu0 0.0
        %516 = vmatpush.msra.mxu0 %v497
        %517 = vmatpush.msra.mxu0 %v496
        %518 = vmatmul.f32.gmra.mxu0 %v500
        %v519 = vpop.f32.mrf.mxu0
        %v520 = vadd.f32 0.0, %v519
        %521 = vdwg.mxu0
        %v522 = vld [vmem:[#allocation7] sm:$0xff]
        %v523 = vld [vmem:[#allocation7 + $0x8] sm:$0xff]
        %524 = vrot.lane.b32.xlu0 %v494, 112
        %v525 = vpop.permute.xlu0 %524
        %v526 = vsel %vm498, %v525, 0
        %528 = vmatpush.msra.mxu0 0.0
        %529 = vmatpush.msra.mxu0 0.0
        %530 = vmatpush.msra.mxu0 0.0
        %531 = vmatpush.msra.mxu0 0.0
        %532 = vmatpush.msra.mxu0 0.0
        %533 = vmatpush.msra.mxu0 0.0
        %534 = vmatpush.msra.mxu0 0.0
        %535 = vmatpush.msra.mxu0 0.0
        %536 = vmatpush.msra.mxu0 0.0
        %537 = vmatpush.msra.mxu0 0.0
        %538 = vmatpush.msra.mxu0 0.0
        %539 = vmatpush.msra.mxu0 0.0
        %540 = vmatpush.msra.mxu0 0.0
        %541 = vmatpush.msra.mxu0 0.0
        %542 = vmatpush.msra.mxu0 %v523
        %543 = vmatpush.msra.mxu0 %v522
        %544 = vmatmul.f32.gmra.mxu0 %v526
        %v545 = vpop.f32.mrf.mxu0
        %v546 = vadd.f32 0.0, %v545
        %547 = vdwg.mxu0
        %v548 = vld [vmem:[%s462] sm:$0xff]
        %v550 = vrot.slane %v548, 1
        %v551 = vrot.slane %v548, 2
        %v552 = vrot.slane %v548, 3
        %v553 = vrot.slane %v548, 4
        %v554 = vrot.slane %v548, 5
        %v555 = vrot.slane %v548, 6
        %v556 = vrot.slane %v548, 7
        %v557 = vld [vmem:[%s466] sm:$0xff]
        %v559 = vrot.slane %v557, 1
        %v560 = vrot.slane %v557, 2
        %v561 = vrot.slane %v557, 3
        %v562 = vrot.slane %v557, 4
        %v563 = vrot.slane %v557, 5
        %v564 = vrot.slane %v557, 6
        %v565 = vrot.slane %v557, 7
        %566 = vrot.lane.b32.xlu0 %v494, 124
        %v567 = vpop.permute.xlu0 %566
        %568 = vrot.lane.b32.xlu0 %v494, 120
        %v569 = vpop.permute.xlu0 %568
        %570 = vrot.lane.b32.xlu0 %v494, 116
        %v571 = vpop.permute.xlu0 %570
        %572 = vrot.lane.b32.xlu0 %v494, 96
        %v573 = vpop.permute.xlu0 %572
        %574 = vrot.lane.b32.xlu0 %v567, 96
        %v575 = vpop.permute.xlu0 %574
        %576 = vrot.lane.b32.xlu0 %v569, 96
        %v577 = vpop.permute.xlu0 %576
        %578 = vrot.lane.b32.xlu0 %v571, 96
        %v579 = vpop.permute.xlu0 %578
        %v584 = vrot.slane %v577, 4
        %vm585 = vcmask 1047556
        %v586 = vsel %vm585, %v584, %v573
        %v587 = vrot.slane %v573, 4
        %v588 = vsel %vm585, %v577, %v587
        %v590 = vunpack.c.l.s4 1983009808
        %v591 = vunpack.c.0.s8 %v590
        %v592 = vperm.slane %v586, %v591
        %v594 = vunpack.c.l.s4 1983009808
        %v595 = vunpack.c.0.s8 %v594
        %v596 = vperm.slane %v588, %v595
        %v597 = vrot.slane %v579, 4
        %v598 = vsel %vm585, %v597, %v575
        %v599 = vrot.slane %v575, 4
        %v600 = vsel %vm585, %v579, %v599
        %v602 = vunpack.c.l.s4 1983009808
        %v603 = vunpack.c.0.s8 %v602
        %v604 = vperm.slane %v598, %v603
        %v606 = vunpack.c.l.s4 1983009808
        %v607 = vunpack.c.0.s8 %v606
        %v608 = vperm.slane %v600, %v607
        %v609 = vrot.slane %v604, 4
        %v610 = vsel %vm585, %v609, %v592
        %v611 = vrot.slane %v592, 4
        %v612 = vsel %vm585, %v604, %v611
        %v614 = vunpack.c.l.s4 1934713408
        %v615 = vunpack.c.0.s8 %v614
        %v616 = vperm.slane %v610, %v615
        %v618 = vunpack.c.l.s4 1934713408
        %v619 = vunpack.c.0.s8 %v618
        %v620 = vperm.slane %v612, %v619
        %v621 = vrot.slane %v608, 4
        %v622 = vsel %vm585, %v621, %v596
        %v623 = vrot.slane %v596, 4
        %v624 = vsel %vm585, %v608, %v623
        %v626 = vunpack.c.l.s4 1934713408
        %v627 = vunpack.c.0.s8 %v626
        %v628 = vperm.slane %v622, %v627
        %v630 = vunpack.c.l.s4 1934713408
        %v631 = vunpack.c.0.s8 %v630
        %v632 = vperm.slane %v624, %v631
        %v633 = vrot.slane %v616, 4
        %v634 = vsel %vm585, 0.0, %v633
        %v635 = vrot.slane %v620, 4
        %v636 = vsel %vm585, 0.0, %v635
        %v637 = vrot.slane %v628, 4
        %v638 = vsel %vm585, 0.0, %v637
        %v639 = vrot.slane %v632, 4
        %v640 = vsel %vm585, 0.0, %v639
        %v641 = vperm.slane %v548, 0
        %v642 = vperm.slane %v550, 0
        %v643 = vperm.slane %v551, 0
        %v644 = vperm.slane %v552, 0
        %v645 = vperm.slane %v553, 0
        %v646 = vperm.slane %v554, 0
        %v647 = vperm.slane %v555, 0
        %v648 = vperm.slane %v556, 0
        %v657 = vmul.f32 %v616, %v641
        %v658 = vmul.f32 %v634, %v642
        %v659 = vmul.f32 %v620, %v643
        %v660 = vmul.f32 %v636, %v644
        %v661 = vmul.f32 %v628, %v645
        %v662 = vmul.f32 %v638, %v646
        %v663 = vmul.f32 %v632, %v647
        %v664 = vmul.f32 %v640, %v648
        %v665 = vsub.f32 0.0, %v616
        %v666 = vsub.f32 0.0, %v634
        %v667 = vsub.f32 0.0, %v620
        %v668 = vsub.f32 0.0, %v636
        %v669 = vsub.f32 0.0, %v628
        %v670 = vsub.f32 0.0, %v638
        %v671 = vsub.f32 0.0, %v632
        %v672 = vsub.f32 0.0, %v640
        %681 = vrot.lane.b32.xlu0 %v665, 127
        %v682 = vpop.permute.xlu0 %681
        %683 = vrot.lane.b32.xlu0 %v666, 127
        %v684 = vpop.permute.xlu0 %683
        %685 = vrot.lane.b32.xlu0 %v667, 127
        %v686 = vpop.permute.xlu0 %685
        %687 = vrot.lane.b32.xlu0 %v668, 127
        %v688 = vpop.permute.xlu0 %687
        %689 = vrot.lane.b32.xlu0 %v669, 127
        %v690 = vpop.permute.xlu0 %689
        %691 = vrot.lane.b32.xlu0 %v670, 127
        %v692 = vpop.permute.xlu0 %691
        %693 = vrot.lane.b32.xlu0 %v671, 127
        %v694 = vpop.permute.xlu0 %693
        %695 = vrot.lane.b32.xlu0 %v672, 127
        %v696 = vpop.permute.xlu0 %695
        %713 = vrot.lane.b32.xlu0 %v616, 1
        %v714 = vpop.permute.xlu0 %713
        %715 = vrot.lane.b32.xlu0 %v634, 1
        %v716 = vpop.permute.xlu0 %715
        %717 = vrot.lane.b32.xlu0 %v620, 1
        %v718 = vpop.permute.xlu0 %717
        %719 = vrot.lane.b32.xlu0 %v636, 1
        %v720 = vpop.permute.xlu0 %719
        %721 = vrot.lane.b32.xlu0 %v628, 1
        %v722 = vpop.permute.xlu0 %721
        %723 = vrot.lane.b32.xlu0 %v638, 1
        %v724 = vpop.permute.xlu0 %723
        %725 = vrot.lane.b32.xlu0 %v632, 1
        %v726 = vpop.permute.xlu0 %725
        %727 = vrot.lane.b32.xlu0 %v640, 1
        %v728 = vpop.permute.xlu0 %727
        %vm737 = vcmask 7168
        %v738 = vsel %vm737, %v682, %v714
        %v739 = vsel %vm737, %v684, %v716
        %v740 = vsel %vm737, %v686, %v718
        %v741 = vsel %vm737, %v688, %v720
        %v742 = vsel %vm737, %v690, %v722
        %v743 = vsel %vm737, %v692, %v724
        %v744 = vsel %vm737, %v694, %v726
        %v745 = vsel %vm737, %v696, %v728
        %v746 = vperm.slane %v557, 0
        %v747 = vperm.slane %v559, 0
        %v748 = vperm.slane %v560, 0
        %v749 = vperm.slane %v561, 0
        %v750 = vperm.slane %v562, 0
        %v751 = vperm.slane %v563, 0
        %v752 = vperm.slane %v564, 0
        %v753 = vperm.slane %v565, 0
        %v762 = vmul.f32 %v738, %v746
        %v763 = vmul.f32 %v739, %v747
        %v764 = vmul.f32 %v740, %v748
        %v765 = vmul.f32 %v741, %v749
        %v766 = vmul.f32 %v742, %v750
        %v767 = vmul.f32 %v743, %v751
        %v768 = vmul.f32 %v744, %v752
        %v769 = vmul.f32 %v745, %v753
        %v770 = vadd.f32 %v657, %v762
        %v771 = vadd.f32 %v658, %v763
        %v772 = vadd.f32 %v659, %v764
        %v773 = vadd.f32 %v660, %v765
        %v774 = vadd.f32 %v661, %v766
        %v775 = vadd.f32 %v662, %v767
        %v776 = vadd.f32 %v663, %v768
        %v777 = vadd.f32 %v664, %v769
        %vm778 = vcmask 15360
        %v779 = vsel %vm778, %v770, %v616
        %v780 = vsel %vm778, %v771, %v634
        %v781 = vsel %vm778, %v772, %v620
        %v782 = vsel %vm778, %v773, %v636
        %v783 = vsel %vm778, %v774, %v628
        %v784 = vsel %vm778, %v775, %v638
        %v785 = vsel %vm778, %v776, %v632
        %v786 = vsel %vm778, %v777, %v640
        %788 = vrot.lane.b32.xlu0 %v546, 124
        %v789 = vpop.permute.xlu0 %788
        %790 = vrot.lane.b32.xlu0 %v546, 120
        %v791 = vpop.permute.xlu0 %790
        %792 = vrot.lane.b32.xlu0 %v546, 116
        %v793 = vpop.permute.xlu0 %792
        %794 = vrot.lane.b32.xlu0 %v546, 112
        %v795 = vpop.permute.xlu0 %794
        %796 = vrot.lane.b32.xlu0 %v789, 112
        %v797 = vpop.permute.xlu0 %796
        %798 = vrot.lane.b32.xlu0 %v791, 112
        %v799 = vpop.permute.xlu0 %798
        %800 = vrot.lane.b32.xlu0 %v793, 112
        %v801 = vpop.permute.xlu0 %800
        %v806 = vrot.slane %v799, 4
        %v807 = vsel %vm585, %v806, %v795
        %v808 = vrot.slane %v795, 4
        %v809 = vsel %vm585, %v799, %v808
        %v811 = vunpack.c.l.s4 1983009808
        %v812 = vunpack.c.0.s8 %v811
        %v813 = vperm.slane %v807, %v812
        %v815 = vunpack.c.l.s4 1983009808
        %v816 = vunpack.c.0.s8 %v815
        %v817 = vperm.slane %v809, %v816
        %v818 = vrot.slane %v801, 4
        %v819 = vsel %vm585, %v818, %v797
        %v820 = vrot.slane %v797, 4
        %v821 = vsel %vm585, %v801, %v820
        %v823 = vunpack.c.l.s4 1983009808
        %v824 = vunpack.c.0.s8 %v823
        %v825 = vperm.slane %v819, %v824
        %v827 = vunpack.c.l.s4 1983009808
        %v828 = vunpack.c.0.s8 %v827
        %v829 = vperm.slane %v821, %v828
        %v830 = vrot.slane %v825, 4
        %v831 = vsel %vm585, %v830, %v813
        %v832 = vrot.slane %v813, 4
        %v833 = vsel %vm585, %v825, %v832
        %v835 = vunpack.c.l.s4 1934713408
        %v836 = vunpack.c.0.s8 %v835
        %v837 = vperm.slane %v831, %v836
        %v839 = vunpack.c.l.s4 1934713408
        %v840 = vunpack.c.0.s8 %v839
        %v841 = vperm.slane %v833, %v840
        %v842 = vrot.slane %v829, 4
        %v843 = vsel %vm585, %v842, %v817
        %v844 = vrot.slane %v817, 4
        %v845 = vsel %vm585, %v829, %v844
        %v847 = vunpack.c.l.s4 1934713408
        %v848 = vunpack.c.0.s8 %v847
        %v849 = vperm.slane %v843, %v848
        %v851 = vunpack.c.l.s4 1934713408
        %v852 = vunpack.c.0.s8 %v851
        %v853 = vperm.slane %v845, %v852
        %v854 = vrot.slane %v837, 4
        %v855 = vsel %vm585, 0.0, %v854
        %v856 = vrot.slane %v841, 4
        %v857 = vsel %vm585, 0.0, %v856
        %v858 = vrot.slane %v849, 4
        %v859 = vsel %vm585, 0.0, %v858
        %v860 = vrot.slane %v853, 4
        %v861 = vsel %vm585, 0.0, %v860
        %v862 = vmul.f32 %v837, %v641
        %v863 = vmul.f32 %v855, %v642
        %v864 = vmul.f32 %v841, %v643
        %v865 = vmul.f32 %v857, %v644
        %v866 = vmul.f32 %v849, %v645
        %v867 = vmul.f32 %v859, %v646
        %v868 = vmul.f32 %v853, %v647
        %v869 = vmul.f32 %v861, %v648
        %v870 = vsub.f32 0.0, %v837
        %v871 = vsub.f32 0.0, %v855
        %v872 = vsub.f32 0.0, %v841
        %v873 = vsub.f32 0.0, %v857
        %v874 = vsub.f32 0.0, %v849
        %v875 = vsub.f32 0.0, %v859
        %v876 = vsub.f32 0.0, %v853
        %v877 = vsub.f32 0.0, %v861
        %886 = vrot.lane.b32.xlu0 %v870, 127
        %v887 = vpop.permute.xlu0 %886
        %888 = vrot.lane.b32.xlu0 %v871, 127
        %v889 = vpop.permute.xlu0 %888
        %890 = vrot.lane.b32.xlu0 %v872, 127
        %v891 = vpop.permute.xlu0 %890
        %892 = vrot.lane.b32.xlu0 %v873, 127
        %v893 = vpop.permute.xlu0 %892
        %894 = vrot.lane.b32.xlu0 %v874, 127
        %v895 = vpop.permute.xlu0 %894
        %896 = vrot.lane.b32.xlu0 %v875, 127
        %v897 = vpop.permute.xlu0 %896
        %898 = vrot.lane.b32.xlu0 %v876, 127
        %v899 = vpop.permute.xlu0 %898
        %900 = vrot.lane.b32.xlu0 %v877, 127
        %v901 = vpop.permute.xlu0 %900
        %918 = vrot.lane.b32.xlu0 %v837, 1
        %v919 = vpop.permute.xlu0 %918
        %920 = vrot.lane.b32.xlu0 %v855, 1
        %v921 = vpop.permute.xlu0 %920
        %922 = vrot.lane.b32.xlu0 %v841, 1
        %v923 = vpop.permute.xlu0 %922
        %924 = vrot.lane.b32.xlu0 %v857, 1
        %v925 = vpop.permute.xlu0 %924
        %926 = vrot.lane.b32.xlu0 %v849, 1
        %v927 = vpop.permute.xlu0 %926
        %928 = vrot.lane.b32.xlu0 %v859, 1
        %v929 = vpop.permute.xlu0 %928
        %930 = vrot.lane.b32.xlu0 %v853, 1
        %v931 = vpop.permute.xlu0 %930
        %932 = vrot.lane.b32.xlu0 %v861, 1
        %v933 = vpop.permute.xlu0 %932
        %v942 = vsel %vm737, %v887, %v919
        %v943 = vsel %vm737, %v889, %v921
        %v944 = vsel %vm737, %v891, %v923
        %v945 = vsel %vm737, %v893, %v925
        %v946 = vsel %vm737, %v895, %v927
        %v947 = vsel %vm737, %v897, %v929
        %v948 = vsel %vm737, %v899, %v931
        %v949 = vsel %vm737, %v901, %v933
        %v950 = vmul.f32 %v942, %v746
        %v951 = vmul.f32 %v943, %v747
        %v952 = vmul.f32 %v944, %v748
        %v953 = vmul.f32 %v945, %v749
        %v954 = vmul.f32 %v946, %v750
        %v955 = vmul.f32 %v947, %v751
        %v956 = vmul.f32 %v948, %v752
        %v957 = vmul.f32 %v949, %v753
        %v958 = vadd.f32 %v862, %v950
        %v959 = vadd.f32 %v863, %v951
        %v960 = vadd.f32 %v864, %v952
        %v961 = vadd.f32 %v865, %v953
        %v962 = vadd.f32 %v866, %v954
        %v963 = vadd.f32 %v867, %v955
        %v964 = vadd.f32 %v868, %v956
        %v965 = vadd.f32 %v869, %v957
        %v966 = vsel %vm778, %v958, %v837
        %v967 = vsel %vm778, %v959, %v855
        %v968 = vsel %vm778, %v960, %v841
        %v969 = vsel %vm778, %v961, %v857
        %v970 = vsel %vm778, %v962, %v849
        %v971 = vsel %vm778, %v963, %v859
        %v972 = vsel %vm778, %v964, %v853
        %v973 = vsel %vm778, %v965, %v861
        %v974 = vrot.slane %v781, 4
        %v975 = vsel %vm585, %v974, %v779
        %v977 = vunpack.c.l.s4 1983009808
        %v978 = vunpack.c.0.s8 %v977
        %v979 = vperm.slane %v975, %v978
        %v980 = vrot.slane %v782, 4
        %v981 = vsel %vm585, %v980, %v780
        %v983 = vunpack.c.l.s4 1983009808
        %v984 = vunpack.c.0.s8 %v983
        %v985 = vperm.slane %v981, %v984
        %v986 = vrot.slane %v785, 4
        %v987 = vsel %vm585, %v986, %v783
        %v989 = vunpack.c.l.s4 1983009808
        %v990 = vunpack.c.0.s8 %v989
        %v991 = vperm.slane %v987, %v990
        %v992 = vrot.slane %v786, 4
        %v993 = vsel %vm585, %v992, %v784
        %v995 = vunpack.c.l.s4 1983009808
        %v996 = vunpack.c.0.s8 %v995
        %v997 = vperm.slane %v993, %v996
        %v998 = vrot.slane %v985, 4
        %v999 = vsel %vm585, %v998, %v979
        %v1000 = vrot.slane %v979, 4
        %v1001 = vsel %vm585, %v985, %v1000
        %v1003 = vunpack.c.l.s4 1934713408
        %v1004 = vunpack.c.0.s8 %v1003
        %v1005 = vperm.slane %v999, %v1004
        %v1007 = vunpack.c.l.s4 1934713408
        %v1008 = vunpack.c.0.s8 %v1007
        %v1009 = vperm.slane %v1001, %v1008
        %v1010 = vrot.slane %v997, 4
        %v1011 = vsel %vm585, %v1010, %v991
        %v1012 = vrot.slane %v991, 4
        %v1013 = vsel %vm585, %v997, %v1012
        %v1015 = vunpack.c.l.s4 1934713408
        %v1016 = vunpack.c.0.s8 %v1015
        %v1017 = vperm.slane %v1011, %v1016
        %v1019 = vunpack.c.l.s4 1934713408
        %v1020 = vunpack.c.0.s8 %v1019
        %v1021 = vperm.slane %v1013, %v1020
        %v1022 = vrot.slane %v1017, 4
        %v1023 = vsel %vm585, %v1022, %v1005
        %v1024 = vrot.slane %v1005, 4
        %v1025 = vsel %vm585, %v1017, %v1024
        %v1026 = vrot.slane %v1021, 4
        %v1027 = vsel %vm585, %v1026, %v1009
        %v1028 = vrot.slane %v1009, 4
        %v1029 = vsel %vm585, %v1021, %v1028
        %1031 = vrot.lane.b32.xlu0 %v1025, 4
        %v1032 = vpop.permute.xlu0 %1031
        %1035 = vrot.lane.b32.xlu0 %v1027, 8
        %v1036 = vpop.permute.xlu0 %1035
        %1039 = vrot.lane.b32.xlu0 %v1029, 12
        %v1040 = vpop.permute.xlu0 %1039
        %vm1042 = vcmask 31744
        %v1043 = vsel %vm1042, %v1023, %v1032
        %vm1044 = vcmask 64512
        %v1045 = vsel %vm1044, %v1043, %v1036
        %vm1046 = vcmask 97280
        %v1047 = vsel %vm1046, %v1045, %v1040
        %1049 = vrot.lane.b32.xlu0 %v1047, 16
        %v1050 = vpop.permute.xlu0 %1049
        %v1052 = vsel %vm498, %v494, %v1050
        %1053 = vst.msk [vmem:[%s451] sm:$0xff] %vm472, %v1052
        %v1057 = vrot.slane %v791, 4
        %v1058 = vsel %vm585, %v1057, %v546
        %v1059 = vrot.slane %v546, 4
        %v1060 = vsel %vm585, %v791, %v1059
        %v1062 = vunpack.c.l.s4 1983009808
        %v1063 = vunpack.c.0.s8 %v1062
        %v1064 = vperm.slane %v1058, %v1063
        %v1066 = vunpack.c.l.s4 1983009808
        %v1067 = vunpack.c.0.s8 %v1066
        %v1068 = vperm.slane %v1060, %v1067
        %v1069 = vrot.slane %v793, 4
        %v1070 = vsel %vm585, %v1069, %v789
        %v1071 = vrot.slane %v789, 4
        %v1072 = vsel %vm585, %v793, %v1071
        %v1074 = vunpack.c.l.s4 1983009808
        %v1075 = vunpack.c.0.s8 %v1074
        %v1076 = vperm.slane %v1070, %v1075
        %v1078 = vunpack.c.l.s4 1983009808
        %v1079 = vunpack.c.0.s8 %v1078
        %v1080 = vperm.slane %v1072, %v1079
        %v1081 = vrot.slane %v1076, 4
        %v1082 = vsel %vm585, %v1081, %v1064
        %v1083 = vrot.slane %v1064, 4
        %v1084 = vsel %vm585, %v1076, %v1083
        %v1086 = vunpack.c.l.s4 1934713408
        %v1087 = vunpack.c.0.s8 %v1086
        %v1088 = vperm.slane %v1082, %v1087
        %v1090 = vunpack.c.l.s4 1934713408
        %v1091 = vunpack.c.0.s8 %v1090
        %v1092 = vperm.slane %v1084, %v1091
        %v1093 = vrot.slane %v1080, 4
        %v1094 = vsel %vm585, %v1093, %v1068
        %v1095 = vrot.slane %v1068, 4
        %v1096 = vsel %vm585, %v1080, %v1095
        %v1098 = vunpack.c.l.s4 1934713408
        %v1099 = vunpack.c.0.s8 %v1098
        %v1100 = vperm.slane %v1094, %v1099
        %v1102 = vunpack.c.l.s4 1934713408
        %v1103 = vunpack.c.0.s8 %v1102
        %v1104 = vperm.slane %v1096, %v1103
        %v1105 = vrot.slane %v1088, 4
        %v1106 = vsel %vm585, 0.0, %v1105
        %v1107 = vrot.slane %v1092, 4
        %v1108 = vsel %vm585, 0.0, %v1107
        %v1109 = vrot.slane %v1100, 4
        %v1110 = vsel %vm585, 0.0, %v1109
        %v1111 = vrot.slane %v1104, 4
        %v1112 = vsel %vm585, 0.0, %v1111
        %1121 = vrot.lane.b32.xlu0 %v966, 4
        %v1122 = vpop.permute.xlu0 %1121
        %1123 = vrot.lane.b32.xlu0 %v967, 4
        %v1124 = vpop.permute.xlu0 %1123
        %1125 = vrot.lane.b32.xlu0 %v968, 4
        %v1126 = vpop.permute.xlu0 %1125
        %1127 = vrot.lane.b32.xlu0 %v969, 4
        %v1128 = vpop.permute.xlu0 %1127
        %1129 = vrot.lane.b32.xlu0 %v970, 4
        %v1130 = vpop.permute.xlu0 %1129
        %1131 = vrot.lane.b32.xlu0 %v971, 4
        %v1132 = vpop.permute.xlu0 %1131
        %1133 = vrot.lane.b32.xlu0 %v972, 4
        %v1134 = vpop.permute.xlu0 %1133
        %1135 = vrot.lane.b32.xlu0 %v973, 4
        %v1136 = vpop.permute.xlu0 %1135
        %v1145 = vsel %vm1042, %v1088, %v1122
        %v1146 = vsel %vm1042, %v1106, %v1124
        %v1147 = vsel %vm1042, %v1092, %v1126
        %v1148 = vsel %vm1042, %v1108, %v1128
        %v1149 = vsel %vm1042, %v1100, %v1130
        %v1150 = vsel %vm1042, %v1110, %v1132
        %v1151 = vsel %vm1042, %v1104, %v1134
        %v1152 = vsel %vm1042, %v1112, %v1136
        %1154 = vrot.lane.b32.xlu0 %v520, 124
        %v1155 = vpop.permute.xlu0 %1154
        %1157 = vrot.lane.b32.xlu0 %v520, 120
        %v1158 = vpop.permute.xlu0 %1157
        %1160 = vrot.lane.b32.xlu0 %v520, 116
        %v1161 = vpop.permute.xlu0 %1160
        %v1163 = vrot.slane %v1158, 4
        %v1164 = vsel %vm585, %v1163, %v520
        %v1165 = vrot.slane %v520, 4
        %v1166 = vsel %vm585, %v1158, %v1165
        %v1168 = vunpack.c.l.s4 1983009808
        %v1169 = vunpack.c.0.s8 %v1168
        %v1170 = vperm.slane %v1164, %v1169
        %v1172 = vunpack.c.l.s4 1983009808
        %v1173 = vunpack.c.0.s8 %v1172
        %v1174 = vperm.slane %v1166, %v1173
        %v1175 = vrot.slane %v1161, 4
        %v1176 = vsel %vm585, %v1175, %v1155
        %v1177 = vrot.slane %v1155, 4
        %v1178 = vsel %vm585, %v1161, %v1177
        %v1180 = vunpack.c.l.s4 1983009808
        %v1181 = vunpack.c.0.s8 %v1180
        %v1182 = vperm.slane %v1176, %v1181
        %v1184 = vunpack.c.l.s4 1983009808
        %v1185 = vunpack.c.0.s8 %v1184
        %v1186 = vperm.slane %v1178, %v1185
        %v1187 = vrot.slane %v1182, 4
        %v1188 = vsel %vm585, %v1187, %v1170
        %v1189 = vrot.slane %v1170, 4
        %v1190 = vsel %vm585, %v1182, %v1189
        %v1192 = vunpack.c.l.s4 1934713408
        %v1193 = vunpack.c.0.s8 %v1192
        %v1194 = vperm.slane %v1188, %v1193
        %v1196 = vunpack.c.l.s4 1934713408
        %v1197 = vunpack.c.0.s8 %v1196
        %v1198 = vperm.slane %v1190, %v1197
        %v1199 = vrot.slane %v1186, 4
        %v1200 = vsel %vm585, %v1199, %v1174
        %v1201 = vrot.slane %v1174, 4
        %v1202 = vsel %vm585, %v1186, %v1201
        %v1204 = vunpack.c.l.s4 1934713408
        %v1205 = vunpack.c.0.s8 %v1204
        %v1206 = vperm.slane %v1200, %v1205
        %v1208 = vunpack.c.l.s4 1934713408
        %v1209 = vunpack.c.0.s8 %v1208
        %v1210 = vperm.slane %v1202, %v1209
        %v1211 = vrot.slane %v1194, 4
        %v1212 = vsel %vm585, 0.0, %v1211
        %v1213 = vrot.slane %v1198, 4
        %v1214 = vsel %vm585, 0.0, %v1213
        %v1215 = vrot.slane %v1206, 4
        %v1216 = vsel %vm585, 0.0, %v1215
        %v1217 = vrot.slane %v1210, 4
        %v1218 = vsel %vm585, 0.0, %v1217
        %1227 = vrot.lane.b32.xlu0 %v779, 4
        %v1228 = vpop.permute.xlu0 %1227
        %1229 = vrot.lane.b32.xlu0 %v780, 4
        %v1230 = vpop.permute.xlu0 %1229
        %1231 = vrot.lane.b32.xlu0 %v781, 4
        %v1232 = vpop.permute.xlu0 %1231
        %1233 = vrot.lane.b32.xlu0 %v782, 4
        %v1234 = vpop.permute.xlu0 %1233
        %1235 = vrot.lane.b32.xlu0 %v783, 4
        %v1236 = vpop.permute.xlu0 %1235
        %1237 = vrot.lane.b32.xlu0 %v784, 4
        %v1238 = vpop.permute.xlu0 %1237
        %1239 = vrot.lane.b32.xlu0 %v785, 4
        %v1240 = vpop.permute.xlu0 %1239
        %1241 = vrot.lane.b32.xlu0 %v786, 4
        %v1242 = vpop.permute.xlu0 %1241
        %v1251 = vsel %vm1042, %v1194, %v1228
        %v1252 = vsel %vm1042, %v1212, %v1230
        %v1253 = vsel %vm1042, %v1198, %v1232
        %v1254 = vsel %vm1042, %v1214, %v1234
        %v1255 = vsel %vm1042, %v1206, %v1236
        %v1256 = vsel %vm1042, %v1216, %v1238
        %v1257 = vsel %vm1042, %v1210, %v1240
        %v1258 = vsel %vm1042, %v1218, %v1242
        %1259 = vrot.lane.b32.xlu0 %v520, 112
        %v1260 = vpop.permute.xlu0 %1259
        %1261 = vrot.lane.b32.xlu0 %v520, 104
        %v1262 = vpop.permute.xlu0 %1261
        %1263 = vrot.lane.b32.xlu0 %v1158, 112
        %v1264 = vpop.permute.xlu0 %1263
        %1265 = vrot.lane.b32.xlu0 %v1260, 112
        %v1266 = vpop.permute.xlu0 %1265
        %1267 = vrot.lane.b32.xlu0 %v1262, 112
        %v1268 = vpop.permute.xlu0 %1267
        %v1273 = vrot.slane %v1266, 4
        %v1274 = vsel %vm585, %v1273, %v1260
        %v1275 = vrot.slane %v1260, 4
        %v1276 = vsel %vm585, %v1266, %v1275
        %v1278 = vunpack.c.l.s4 1983009808
        %v1279 = vunpack.c.0.s8 %v1278
        %v1280 = vperm.slane %v1274, %v1279
        %v1282 = vunpack.c.l.s4 1983009808
        %v1283 = vunpack.c.0.s8 %v1282
        %v1284 = vperm.slane %v1276, %v1283
        %v1285 = vrot.slane %v1268, 4
        %v1286 = vsel %vm585, %v1285, %v1264
        %v1287 = vrot.slane %v1264, 4
        %v1288 = vsel %vm585, %v1268, %v1287
        %v1290 = vunpack.c.l.s4 1983009808
        %v1291 = vunpack.c.0.s8 %v1290
        %v1292 = vperm.slane %v1286, %v1291
        %v1294 = vunpack.c.l.s4 1983009808
        %v1295 = vunpack.c.0.s8 %v1294
        %v1296 = vperm.slane %v1288, %v1295
        %v1297 = vrot.slane %v1292, 4
        %v1298 = vsel %vm585, %v1297, %v1280
        %v1299 = vrot.slane %v1280, 4
        %v1300 = vsel %vm585, %v1292, %v1299
        %v1302 = vunpack.c.l.s4 1934713408
        %v1303 = vunpack.c.0.s8 %v1302
        %v1304 = vperm.slane %v1298, %v1303
        %v1306 = vunpack.c.l.s4 1934713408
        %v1307 = vunpack.c.0.s8 %v1306
        %v1308 = vperm.slane %v1300, %v1307
        %v1309 = vrot.slane %v1296, 4
        %v1310 = vsel %vm585, %v1309, %v1284
        %v1311 = vrot.slane %v1284, 4
        %v1312 = vsel %vm585, %v1296, %v1311
        %v1314 = vunpack.c.l.s4 1934713408
        %v1315 = vunpack.c.0.s8 %v1314
        %v1316 = vperm.slane %v1310, %v1315
        %v1318 = vunpack.c.l.s4 1934713408
        %v1319 = vunpack.c.0.s8 %v1318
        %v1320 = vperm.slane %v1312, %v1319
        %v1321 = vrot.slane %v1304, 4
        %v1322 = vsel %vm585, 0.0, %v1321
        %v1323 = vrot.slane %v1308, 4
        %v1324 = vsel %vm585, 0.0, %v1323
        %v1325 = vrot.slane %v1316, 4
        %v1326 = vsel %vm585, 0.0, %v1325
        %v1327 = vrot.slane %v1320, 4
        %v1328 = vsel %vm585, 0.0, %v1327
        %v1329 = vld [vmem:[%s7] sm:$0xf]
        %v1331 = vsel %vm1044, %v1145, 0
        %v1334 = vsel %vm1044, %v1251, 0
        %1336 = vmatpush.xpose.msra.mxu0 0.0
        %1337 = vmatpush.xpose.msra.mxu0 0.0
        %1338 = vmatpush.xpose.msra.mxu0 0.0
        %1339 = vmatpush.xpose.msra.mxu0 0.0
        %1340 = vmatpush.xpose.msra.mxu0 0.0
        %1341 = vmatpush.xpose.msra.mxu0 0.0
        %1342 = vmatpush.xpose.msra.mxu0 0.0
        %1343 = vmatpush.xpose.msra.mxu0 0.0
        %1344 = vmatpush.xpose.msra.mxu0 0.0
        %1345 = vmatpush.xpose.msra.mxu0 0.0
        %1346 = vmatpush.xpose.msra.mxu0 0.0
        %1347 = vmatpush.xpose.msra.mxu0 0.0
        %1348 = vmatpush.xpose.msra.mxu0 0.0
        %1349 = vmatpush.xpose.msra.mxu0 0.0
        %1350 = vmatpush.xpose.msra.mxu0 0.0
        %1351 = vmatpush.xpose.msra.mxu0 %v1334
        %1352 = vmatmul.f32.gmra.mxu0 %v1331
        %v1353 = vpop.f32.mrf.mxu0
        %v1354 = vadd.f32 %v1329, %v1353
        %1355 = vdwg.mxu0
        %v1357 = vsel %vm1044, %v1146, 0
        %v1360 = vsel %vm1044, %v1252, 0
        %1362 = vmatpush.xpose.msra.mxu0 0.0
        %1363 = vmatpush.xpose.msra.mxu0 0.0
        %1364 = vmatpush.xpose.msra.mxu0 0.0
        %1365 = vmatpush.xpose.msra.mxu0 0.0
        %1366 = vmatpush.xpose.msra.mxu0 0.0
        %1367 = vmatpush.xpose.msra.mxu0 0.0
        %1368 = vmatpush.xpose.msra.mxu0 0.0
        %1369 = vmatpush.xpose.msra.mxu0 0.0
        %1370 = vmatpush.xpose.msra.mxu0 0.0
        %1371 = vmatpush.xpose.msra.mxu0 0.0
        %1372 = vmatpush.xpose.msra.mxu0 0.0
        %1373 = vmatpush.xpose.msra.mxu0 0.0
        %1374 = vmatpush.xpose.msra.mxu0 0.0
        %1375 = vmatpush.xpose.msra.mxu0 0.0
        %1376 = vmatpush.xpose.msra.mxu0 0.0
        %1377 = vmatpush.xpose.msra.mxu0 %v1360
        %1378 = vmatmul.f32.gmra.mxu0 %v1357
        %v1379 = vpop.f32.mrf.mxu0
        %v1380 = vadd.f32 %v1329, %v1379
        %1381 = vdwg.mxu0
        %v1383 = vsel %vm1044, %v1147, 0
        %v1386 = vsel %vm1044, %v1253, 0
        %1388 = vmatpush.xpose.msra.mxu0 0.0
        %1389 = vmatpush.xpose.msra.mxu0 0.0
        %1390 = vmatpush.xpose.msra.mxu0 0.0
        %1391 = vmatpush.xpose.msra.mxu0 0.0
        %1392 = vmatpush.xpose.msra.mxu0 0.0
        %1393 = vmatpush.xpose.msra.mxu0 0.0
        %1394 = vmatpush.xpose.msra.mxu0 0.0
        %1395 = vmatpush.xpose.msra.mxu0 0.0
        %1396 = vmatpush.xpose.msra.mxu0 0.0
        %1397 = vmatpush.xpose.msra.mxu0 0.0
        %1398 = vmatpush.xpose.msra.mxu0 0.0
        %1399 = vmatpush.xpose.msra.mxu0 0.0
        %1400 = vmatpush.xpose.msra.mxu0 0.0
        %1401 = vmatpush.xpose.msra.mxu0 0.0
        %1402 = vmatpush.xpose.msra.mxu0 0.0
        %1403 = vmatpush.xpose.msra.mxu0 %v1386
        %1404 = vmatmul.f32.gmra.mxu0 %v1383
        %v1405 = vpop.f32.mrf.mxu0
        %v1406 = vadd.f32 %v1329, %v1405
        %1407 = vdwg.mxu0
        %v1409 = vsel %vm1044, %v1148, 0
        %v1412 = vsel %vm1044, %v1254, 0
        %1414 = vmatpush.xpose.msra.mxu0 0.0
        %1415 = vmatpush.xpose.msra.mxu0 0.0
        %1416 = vmatpush.xpose.msra.mxu0 0.0
        %1417 = vmatpush.xpose.msra.mxu0 0.0
        %1418 = vmatpush.xpose.msra.mxu0 0.0
        %1419 = vmatpush.xpose.msra.mxu0 0.0
        %1420 = vmatpush.xpose.msra.mxu0 0.0
        %1421 = vmatpush.xpose.msra.mxu0 0.0
        %1422 = vmatpush.xpose.msra.mxu0 0.0
        %1423 = vmatpush.xpose.msra.mxu0 0.0
        %1424 = vmatpush.xpose.msra.mxu0 0.0
        %1425 = vmatpush.xpose.msra.mxu0 0.0
        %1426 = vmatpush.xpose.msra.mxu0 0.0
        %1427 = vmatpush.xpose.msra.mxu0 0.0
        %1428 = vmatpush.xpose.msra.mxu0 0.0
        %1429 = vmatpush.xpose.msra.mxu0 %v1412
        %1430 = vmatmul.f32.gmra.mxu0 %v1409
        %v1431 = vpop.f32.mrf.mxu0
        %v1432 = vadd.f32 %v1329, %v1431
        %1433 = vdwg.mxu0
        %v1435 = vsel %vm1044, %v1149, 0
        %v1438 = vsel %vm1044, %v1255, 0
        %1440 = vmatpush.xpose.msra.mxu0 0.0
        %1441 = vmatpush.xpose.msra.mxu0 0.0
        %1442 = vmatpush.xpose.msra.mxu0 0.0
        %1443 = vmatpush.xpose.msra.mxu0 0.0
        %1444 = vmatpush.xpose.msra.mxu0 0.0
        %1445 = vmatpush.xpose.msra.mxu0 0.0
        %1446 = vmatpush.xpose.msra.mxu0 0.0
        %1447 = vmatpush.xpose.msra.mxu0 0.0
        %1448 = vmatpush.xpose.msra.mxu0 0.0
        %1449 = vmatpush.xpose.msra.mxu0 0.0
        %1450 = vmatpush.xpose.msra.mxu0 0.0
        %1451 = vmatpush.xpose.msra.mxu0 0.0
        %1452 = vmatpush.xpose.msra.mxu0 0.0
        %1453 = vmatpush.xpose.msra.mxu0 0.0
        %1454 = vmatpush.xpose.msra.mxu0 0.0
        %1455 = vmatpush.xpose.msra.mxu0 %v1438
        %1456 = vmatmul.f32.gmra.mxu0 %v1435
        %v1457 = vpop.f32.mrf.mxu0
        %v1458 = vadd.f32 %v1329, %v1457
        %1459 = vdwg.mxu0
        %v1461 = vsel %vm1044, %v1150, 0
        %v1464 = vsel %vm1044, %v1256, 0
        %1466 = vmatpush.xpose.msra.mxu0 0.0
        %1467 = vmatpush.xpose.msra.mxu0 0.0
        %1468 = vmatpush.xpose.msra.mxu0 0.0
        %1469 = vmatpush.xpose.msra.mxu0 0.0
        %1470 = vmatpush.xpose.msra.mxu0 0.0
        %1471 = vmatpush.xpose.msra.mxu0 0.0
        %1472 = vmatpush.xpose.msra.mxu0 0.0
        %1473 = vmatpush.xpose.msra.mxu0 0.0
        %1474 = vmatpush.xpose.msra.mxu0 0.0
        %1475 = vmatpush.xpose.msra.mxu0 0.0
        %1476 = vmatpush.xpose.msra.mxu0 0.0
        %1477 = vmatpush.xpose.msra.mxu0 0.0
        %1478 = vmatpush.xpose.msra.mxu0 0.0
        %1479 = vmatpush.xpose.msra.mxu0 0.0
        %1480 = vmatpush.xpose.msra.mxu0 0.0
        %1481 = vmatpush.xpose.msra.mxu0 %v1464
        %1482 = vmatmul.f32.gmra.mxu0 %v1461
        %v1483 = vpop.f32.mrf.mxu0
        %v1484 = vadd.f32 %v1329, %v1483
        %1485 = vdwg.mxu0
        %v1487 = vsel %vm1044, %v1151, 0
        %v1490 = vsel %vm1044, %v1257, 0
        %1492 = vmatpush.xpose.msra.mxu0 0.0
        %1493 = vmatpush.xpose.msra.mxu0 0.0
        %1494 = vmatpush.xpose.msra.mxu0 0.0
        %1495 = vmatpush.xpose.msra.mxu0 0.0
        %1496 = vmatpush.xpose.msra.mxu0 0.0
        %1497 = vmatpush.xpose.msra.mxu0 0.0
        %1498 = vmatpush.xpose.msra.mxu0 0.0
        %1499 = vmatpush.xpose.msra.mxu0 0.0
        %1500 = vmatpush.xpose.msra.mxu0 0.0
        %1501 = vmatpush.xpose.msra.mxu0 0.0
        %1502 = vmatpush.xpose.msra.mxu0 0.0
        %1503 = vmatpush.xpose.msra.mxu0 0.0
        %1504 = vmatpush.xpose.msra.mxu0 0.0
        %1505 = vmatpush.xpose.msra.mxu0 0.0
        %1506 = vmatpush.xpose.msra.mxu0 0.0
        %1507 = vmatpush.xpose.msra.mxu0 %v1490
        %1508 = vmatmul.f32.gmra.mxu0 %v1487
        %v1509 = vpop.f32.mrf.mxu0
        %v1510 = vadd.f32 %v1329, %v1509
        %1511 = vdwg.mxu0
        %v1513 = vsel %vm1044, %v1152, 0
        %v1516 = vsel %vm1044, %v1258, 0
        %1518 = vmatpush.xpose.msra.mxu0 0.0
        %1519 = vmatpush.xpose.msra.mxu0 0.0
        %1520 = vmatpush.xpose.msra.mxu0 0.0
        %1521 = vmatpush.xpose.msra.mxu0 0.0
        %1522 = vmatpush.xpose.msra.mxu0 0.0
        %1523 = vmatpush.xpose.msra.mxu0 0.0
        %1524 = vmatpush.xpose.msra.mxu0 0.0
        %1525 = vmatpush.xpose.msra.mxu0 0.0
        %1526 = vmatpush.xpose.msra.mxu0 0.0
        %1527 = vmatpush.xpose.msra.mxu0 0.0
        %1528 = vmatpush.xpose.msra.mxu0 0.0
        %1529 = vmatpush.xpose.msra.mxu0 0.0
        %1530 = vmatpush.xpose.msra.mxu0 0.0
        %1531 = vmatpush.xpose.msra.mxu0 0.0
        %1532 = vmatpush.xpose.msra.mxu0 0.0
        %1533 = vmatpush.xpose.msra.mxu0 %v1516
        %1534 = vmatmul.f32.gmra.mxu0 %v1513
        %v1535 = vpop.f32.mrf.mxu0
        %v1536 = vadd.f32 %v1329, %v1535
        %1537 = vdwg.mxu0
        %vm1538 = vcmask 27648
        %v1539 = vsel %vm1538, %v1354, -inf
        %1540 = vmax.xlane.f32.xlu0 %v1539
        %v1541 = vpop.xlane.xlu0 %1540
        %v1542 = vsel %vm1538, %v1380, -inf
        %1543 = vmax.xlane.f32.xlu0 %v1542
        %v1544 = vpop.xlane.xlu0 %1543
        %v1545 = vsel %vm1538, %v1406, -inf
        %1546 = vmax.xlane.f32.xlu0 %v1545
        %v1547 = vpop.xlane.xlu0 %1546
        %v1548 = vsel %vm1538, %v1432, -inf
        %1549 = vmax.xlane.f32.xlu0 %v1548
        %v1550 = vpop.xlane.xlu0 %1549
        %v1551 = vsel %vm1538, %v1458, -inf
        %1552 = vmax.xlane.f32.xlu0 %v1551
        %v1553 = vpop.xlane.xlu0 %1552
        %v1554 = vsel %vm1538, %v1484, -inf
        %1555 = vmax.xlane.f32.xlu0 %v1554
        %v1556 = vpop.xlane.xlu0 %1555
        %v1557 = vsel %vm1538, %v1510, -inf
        %1558 = vmax.xlane.f32.xlu0 %v1557
        %v1559 = vpop.xlane.xlu0 %1558
        %v1560 = vsel %vm1538, %v1536, -inf
        %1561 = vmax.xlane.f32.xlu0 %v1560
        %v1562 = vpop.xlane.xlu0 %1561
        %v1563 = vsub.f32 %v1354, %v1541
        %v1564 = vsub.f32 %v1380, %v1544
        %v1565 = vsub.f32 %v1406, %v1547
        %v1566 = vsub.f32 %v1432, %v1550
        %v1567 = vsub.f32 %v1458, %v1553
        %v1568 = vsub.f32 %v1484, %v1556
        %v1569 = vsub.f32 %v1510, %v1559
        %v1570 = vsub.f32 %v1536, %v1562
        %v1571 = vmul.f32 %v1563, 1.442695
        %v1572 = vpow.pop %v1571
        %v1573 = vmul.f32 %v1564, 1.442695
        %v1574 = vpow.pop %v1573
        %v1575 = vmul.f32 %v1565, 1.442695
        %v1576 = vpow.pop %v1575
        %v1577 = vmul.f32 %v1566, 1.442695
        %v1578 = vpow.pop %v1577
        %v1579 = vmul.f32 %v1567, 1.442695
        %v1580 = vpow.pop %v1579
        %v1581 = vmul.f32 %v1568, 1.442695
        %v1582 = vpow.pop %v1581
        %v1583 = vmul.f32 %v1569, 1.442695
        %v1584 = vpow.pop %v1583
        %v1585 = vmul.f32 %v1570, 1.442695
        %v1586 = vpow.pop %v1585
        %v1587 = vsel %vm1538, %v1572, 0.0
        %1588 = vadd.xlane.f32.xlu0 %v1587
        %v1589 = vpop.xlane.xlu0 %1588
        %v1590 = vsel %vm1538, %v1574, 0.0
        %1591 = vadd.xlane.f32.xlu0 %v1590
        %v1592 = vpop.xlane.xlu0 %1591
        %v1593 = vsel %vm1538, %v1576, 0.0
        %1594 = vadd.xlane.f32.xlu0 %v1593
        %v1595 = vpop.xlane.xlu0 %1594
        %v1596 = vsel %vm1538, %v1578, 0.0
        %1597 = vadd.xlane.f32.xlu0 %v1596
        %v1598 = vpop.xlane.xlu0 %1597
        %v1599 = vsel %vm1538, %v1580, 0.0
        %1600 = vadd.xlane.f32.xlu0 %v1599
        %v1601 = vpop.xlane.xlu0 %1600
        %v1602 = vsel %vm1538, %v1582, 0.0
        %1603 = vadd.xlane.f32.xlu0 %v1602
        %v1604 = vpop.xlane.xlu0 %1603
        %v1605 = vsel %vm1538, %v1584, 0.0
        %1606 = vadd.xlane.f32.xlu0 %v1605
        %v1607 = vpop.xlane.xlu0 %1606
        %v1608 = vsel %vm1538, %v1586, 0.0
        %1609 = vadd.xlane.f32.xlu0 %v1608
        %v1610 = vpop.xlane.xlu0 %1609
        %v1611 = vrcp.pop %v1589
        %v1612 = vrcp.pop %v1592
        %v1613 = vrcp.pop %v1595
        %v1614 = vrcp.pop %v1598
        %v1615 = vrcp.pop %v1601
        %v1616 = vrcp.pop %v1604
        %v1617 = vrcp.pop %v1607
        %v1618 = vrcp.pop %v1610
        %v1619 = vmul.f32 %v1572, %v1611
        %v1620 = vmul.f32 %v1574, %v1612
        %v1621 = vmul.f32 %v1576, %v1613
        %v1622 = vmul.f32 %v1578, %v1614
        %v1623 = vmul.f32 %v1580, %v1615
        %v1624 = vmul.f32 %v1582, %v1616
        %v1625 = vmul.f32 %v1584, %v1617
        %v1626 = vmul.f32 %v1586, %v1618
        %v1628 = vsel %vm1042, %v1619, 0
        %vm1630 = vcmask 1043456
        %v1632 = vsel %vm1630, %v1304, 0
        %1634 = vmatpush.msra.mxu0 0.0
        %1635 = vmatpush.msra.mxu0 0.0
        %1636 = vmatpush.msra.mxu0 0.0
        %1637 = vmatpush.msra.mxu0 0.0
        %1638 = vmatpush.msra.mxu0 0.0
        %1639 = vmatpush.msra.mxu0 0.0
        %1640 = vmatpush.msra.mxu0 0.0
        %1641 = vmatpush.msra.mxu0 0.0
        %1642 = vmatpush.msra.mxu0 0.0
        %1643 = vmatpush.msra.mxu0 0.0
        %1644 = vmatpush.msra.mxu0 0.0
        %1645 = vmatpush.msra.mxu0 0.0
        %1646 = vmatpush.msra.mxu0 0.0
        %1647 = vmatpush.msra.mxu0 0.0
        %1648 = vmatpush.msra.mxu0 0.0
        %1649 = vmatpush.msra.mxu0 %v1632
        %1650 = vmatmul.f32.gmra.mxu0 %v1628
        %v1651 = vpop.f32.mrf.mxu0
        %v1652 = vadd.f32 0.0, %v1651
        %1653 = vdwg.mxu0
        %v1655 = vsel %vm1042, %v1620, 0
        %v1658 = vsel %vm1630, %v1322, 0
        %1660 = vmatpush.msra.mxu0 0.0
        %1661 = vmatpush.msra.mxu0 0.0
        %1662 = vmatpush.msra.mxu0 0.0
        %1663 = vmatpush.msra.mxu0 0.0
        %1664 = vmatpush.msra.mxu0 0.0
        %1665 = vmatpush.msra.mxu0 0.0
        %1666 = vmatpush.msra.mxu0 0.0
        %1667 = vmatpush.msra.mxu0 0.0
        %1668 = vmatpush.msra.mxu0 0.0
        %1669 = vmatpush.msra.mxu0 0.0
        %1670 = vmatpush.msra.mxu0 0.0
        %1671 = vmatpush.msra.mxu0 0.0
        %1672 = vmatpush.msra.mxu0 0.0
        %1673 = vmatpush.msra.mxu0 0.0
        %1674 = vmatpush.msra.mxu0 0.0
        %1675 = vmatpush.msra.mxu0 %v1658
        %1676 = vmatmul.f32.gmra.mxu0 %v1655
        %v1677 = vpop.f32.mrf.mxu0
        %v1678 = vadd.f32 0.0, %v1677
        %1679 = vdwg.mxu0
        %v1681 = vsel %vm1042, %v1621, 0
        %v1684 = vsel %vm1630, %v1308, 0
        %1686 = vmatpush.msra.mxu0 0.0
        %1687 = vmatpush.msra.mxu0 0.0
        %1688 = vmatpush.msra.mxu0 0.0
        %1689 = vmatpush.msra.mxu0 0.0
        %1690 = vmatpush.msra.mxu0 0.0
        %1691 = vmatpush.msra.mxu0 0.0
        %1692 = vmatpush.msra.mxu0 0.0
        %1693 = vmatpush.msra.mxu0 0.0
        %1694 = vmatpush.msra.mxu0 0.0
        %1695 = vmatpush.msra.mxu0 0.0
        %1696 = vmatpush.msra.mxu0 0.0
        %1697 = vmatpush.msra.mxu0 0.0
        %1698 = vmatpush.msra.mxu0 0.0
        %1699 = vmatpush.msra.mxu0 0.0
        %1700 = vmatpush.msra.mxu0 0.0
        %1701 = vmatpush.msra.mxu0 %v1684
        %1702 = vmatmul.f32.gmra.mxu0 %v1681
        %v1703 = vpop.f32.mrf.mxu0
        %v1704 = vadd.f32 0.0, %v1703
        %1705 = vdwg.mxu0
        %v1707 = vsel %vm1042, %v1622, 0
        %v1710 = vsel %vm1630, %v1324, 0
        %1712 = vmatpush.msra.mxu0 0.0
        %1713 = vmatpush.msra.mxu0 0.0
        %1714 = vmatpush.msra.mxu0 0.0
        %1715 = vmatpush.msra.mxu0 0.0
        %1716 = vmatpush.msra.mxu0 0.0
        %1717 = vmatpush.msra.mxu0 0.0
        %1718 = vmatpush.msra.mxu0 0.0
        %1719 = vmatpush.msra.mxu0 0.0
        %1720 = vmatpush.msra.mxu0 0.0
        %1721 = vmatpush.msra.mxu0 0.0
        %1722 = vmatpush.msra.mxu0 0.0
        %1723 = vmatpush.msra.mxu0 0.0
        %1724 = vmatpush.msra.mxu0 0.0
        %1725 = vmatpush.msra.mxu0 0.0
        %1726 = vmatpush.msra.mxu0 0.0
        %1727 = vmatpush.msra.mxu0 %v1710
        %1728 = vmatmul.f32.gmra.mxu0 %v1707
        %v1729 = vpop.f32.mrf.mxu0
        %v1730 = vadd.f32 0.0, %v1729
        %1731 = vdwg.mxu0
        %v1733 = vsel %vm1042, %v1623, 0
        %v1736 = vsel %vm1630, %v1316, 0
        %1738 = vmatpush.msra.mxu0 0.0
        %1739 = vmatpush.msra.mxu0 0.0
        %1740 = vmatpush.msra.mxu0 0.0
        %1741 = vmatpush.msra.mxu0 0.0
        %1742 = vmatpush.msra.mxu0 0.0
        %1743 = vmatpush.msra.mxu0 0.0
        %1744 = vmatpush.msra.mxu0 0.0
        %1745 = vmatpush.msra.mxu0 0.0
        %1746 = vmatpush.msra.mxu0 0.0
        %1747 = vmatpush.msra.mxu0 0.0
        %1748 = vmatpush.msra.mxu0 0.0
        %1749 = vmatpush.msra.mxu0 0.0
        %1750 = vmatpush.msra.mxu0 0.0
        %1751 = vmatpush.msra.mxu0 0.0
        %1752 = vmatpush.msra.mxu0 0.0
        %1753 = vmatpush.msra.mxu0 %v1736
        %1754 = vmatmul.f32.gmra.mxu0 %v1733
        %v1755 = vpop.f32.mrf.mxu0
        %v1756 = vadd.f32 0.0, %v1755
        %1757 = vdwg.mxu0
        %v1759 = vsel %vm1042, %v1624, 0
        %v1762 = vsel %vm1630, %v1326, 0
        %1764 = vmatpush.msra.mxu0 0.0
        %1765 = vmatpush.msra.mxu0 0.0
        %1766 = vmatpush.msra.mxu0 0.0
        %1767 = vmatpush.msra.mxu0 0.0
        %1768 = vmatpush.msra.mxu0 0.0
        %1769 = vmatpush.msra.mxu0 0.0
        %1770 = vmatpush.msra.mxu0 0.0
        %1771 = vmatpush.msra.mxu0 0.0
        %1772 = vmatpush.msra.mxu0 0.0
        %1773 = vmatpush.msra.mxu0 0.0
        %1774 = vmatpush.msra.mxu0 0.0
        %1775 = vmatpush.msra.mxu0 0.0
        %1776 = vmatpush.msra.mxu0 0.0
        %1777 = vmatpush.msra.mxu0 0.0
        %1778 = vmatpush.msra.mxu0 0.0
        %1779 = vmatpush.msra.mxu0 %v1762
        %1780 = vmatmul.f32.gmra.mxu0 %v1759
        %v1781 = vpop.f32.mrf.mxu0
        %v1782 = vadd.f32 0.0, %v1781
        %1783 = vdwg.mxu0
        %v1785 = vsel %vm1042, %v1625, 0
        %v1788 = vsel %vm1630, %v1320, 0
        %1790 = vmatpush.msra.mxu0 0.0
        %1791 = vmatpush.msra.mxu0 0.0
        %1792 = vmatpush.msra.mxu0 0.0
        %1793 = vmatpush.msra.mxu0 0.0
        %1794 = vmatpush.msra.mxu0 0.0
        %1795 = vmatpush.msra.mxu0 0.0
        %1796 = vmatpush.msra.mxu0 0.0
        %1797 = vmatpush.msra.mxu0 0.0
        %1798 = vmatpush.msra.mxu0 0.0
        %1799 = vmatpush.msra.mxu0 0.0
        %1800 = vmatpush.msra.mxu0 0.0
        %1801 = vmatpush.msra.mxu0 0.0
        %1802 = vmatpush.msra.mxu0 0.0
        %1803 = vmatpush.msra.mxu0 0.0
        %1804 = vmatpush.msra.mxu0 0.0
        %1805 = vmatpush.msra.mxu0 %v1788
        %1806 = vmatmul.f32.gmra.mxu0 %v1785
        %v1807 = vpop.f32.mrf.mxu0
        %v1808 = vadd.f32 0.0, %v1807
        %1809 = vdwg.mxu0
        %v1811 = vsel %vm1042, %v1626, 0
        %v1814 = vsel %vm1630, %v1328, 0
        %1816 = vmatpush.msra.mxu0 0.0
        %1817 = vmatpush.msra.mxu0 0.0
        %1818 = vmatpush.msra.mxu0 0.0
        %1819 = vmatpush.msra.mxu0 0.0
        %1820 = vmatpush.msra.mxu0 0.0
        %1821 = vmatpush.msra.mxu0 0.0
        %1822 = vmatpush.msra.mxu0 0.0
        %1823 = vmatpush.msra.mxu0 0.0
        %1824 = vmatpush.msra.mxu0 0.0
        %1825 = vmatpush.msra.mxu0 0.0
        %1826 = vmatpush.msra.mxu0 0.0
        %1827 = vmatpush.msra.mxu0 0.0
        %1828 = vmatpush.msra.mxu0 0.0
        %1829 = vmatpush.msra.mxu0 0.0
        %1830 = vmatpush.msra.mxu0 0.0
        %1831 = vmatpush.msra.mxu0 %v1814
        %1832 = vmatmul.f32.gmra.mxu0 %v1811
        %v1833 = vpop.f32.mrf.mxu0
        %v1834 = vadd.f32 0.0, %v1833
        %1835 = vdwg.mxu0
        %v1836 = vrot.slane %v1704, 4
        %v1837 = vsel %vm585, %v1836, %v1652
        %v1839 = vunpack.c.l.s4 1983009808
        %v1840 = vunpack.c.0.s8 %v1839
        %v1841 = vperm.slane %v1837, %v1840
        %v1842 = vrot.slane %v1730, 4
        %v1843 = vsel %vm585, %v1842, %v1678
        %v1845 = vunpack.c.l.s4 1983009808
        %v1846 = vunpack.c.0.s8 %v1845
        %v1847 = vperm.slane %v1843, %v1846
        %v1848 = vrot.slane %v1808, 4
        %v1849 = vsel %vm585, %v1848, %v1756
        %v1851 = vunpack.c.l.s4 1983009808
        %v1852 = vunpack.c.0.s8 %v1851
        %v1853 = vperm.slane %v1849, %v1852
        %v1854 = vrot.slane %v1834, 4
        %v1855 = vsel %vm585, %v1854, %v1782
        %v1857 = vunpack.c.l.s4 1983009808
        %v1858 = vunpack.c.0.s8 %v1857
        %v1859 = vperm.slane %v1855, %v1858
        %v1860 = vrot.slane %v1847, 4
        %v1861 = vsel %vm585, %v1860, %v1841
        %v1862 = vrot.slane %v1841, 4
        %v1863 = vsel %vm585, %v1847, %v1862
        %v1865 = vunpack.c.l.s4 1934713408
        %v1866 = vunpack.c.0.s8 %v1865
        %v1867 = vperm.slane %v1861, %v1866
        %v1869 = vunpack.c.l.s4 1934713408
        %v1870 = vunpack.c.0.s8 %v1869
        %v1871 = vperm.slane %v1863, %v1870
        %v1872 = vrot.slane %v1859, 4
        %v1873 = vsel %vm585, %v1872, %v1853
        %v1874 = vrot.slane %v1853, 4
        %v1875 = vsel %vm585, %v1859, %v1874
        %v1877 = vunpack.c.l.s4 1934713408
        %v1878 = vunpack.c.0.s8 %v1877
        %v1879 = vperm.slane %v1873, %v1878
        %v1881 = vunpack.c.l.s4 1934713408
        %v1882 = vunpack.c.0.s8 %v1881
        %v1883 = vperm.slane %v1875, %v1882
        %v1884 = vrot.slane %v1879, 4
        %v1885 = vsel %vm585, %v1884, %v1867
        %v1886 = vrot.slane %v1867, 4
        %v1887 = vsel %vm585, %v1879, %v1886
        %v1888 = vrot.slane %v1883, 4
        %v1889 = vsel %vm585, %v1888, %v1871
        %v1890 = vrot.slane %v1871, 4
        %v1891 = vsel %vm585, %v1883, %v1890
        %1893 = vrot.lane.b32.xlu0 %v1887, 8
        %v1894 = vpop.permute.xlu0 %1893
        %1897 = vrot.lane.b32.xlu0 %v1889, 16
        %v1898 = vpop.permute.xlu0 %1897
        %1901 = vrot.lane.b32.xlu0 %v1891, 24
        %v1902 = vpop.permute.xlu0 %1901
        %v1904 = vsel %vm1044, %v1885, %v1894
        %v1905 = vsel %vm498, %v1904, %v1898
        %vm1906 = vcmask 195584
        %v1907 = vsel %vm1906, %v1905, %v1902
        %v1908 = vld [vmem:[#allocation8] sm:$0xff]
        %v1909 = vld [vmem:[#allocation8 + $0x8] sm:$0xff]
        %v1910 = vld [vmem:[#allocation8 + $0x10] sm:$0xff]
        %v1911 = vld [vmem:[#allocation8 + $0x18] sm:$0xff]
        %v1913 = vsel %vm472, %v1907, 0
        %1915 = vmatpush.msra.mxu0 0.0
        %1916 = vmatpush.msra.mxu0 0.0
        %1917 = vmatpush.msra.mxu0 0.0
        %1918 = vmatpush.msra.mxu0 0.0
        %1919 = vmatpush.msra.mxu0 0.0
        %1920 = vmatpush.msra.mxu0 0.0
        %1921 = vmatpush.msra.mxu0 0.0
        %1922 = vmatpush.msra.mxu0 0.0
        %1923 = vmatpush.msra.mxu0 0.0
        %1924 = vmatpush.msra.mxu0 0.0
        %1925 = vmatpush.msra.mxu0 0.0
        %1926 = vmatpush.msra.mxu0 0.0
        %1927 = vmatpush.msra.mxu0 %v1911
        %1928 = vmatpush.msra.mxu0 %v1910
        %1929 = vmatpush.msra.mxu0 %v1909
        %1930 = vmatpush.msra.mxu0 %v1908
        %1931 = vmatmul.f32.gmra.mxu0 %v1913
        %v1932 = vpop.f32.mrf.mxu0
        %v1933 = vadd.f32 0.0, %v1932
        %1934 = vdwg.mxu0
        %1935 = vst.msk [vmem:[%s444] sm:$0xff] %vm472, %v1933
        %s1936 = sand.u32 %s237, 1
        %s1937 = scalar_lea.sflag [#allocation4], %s1936
        %s1938 = sand.u32 %s237, 1
        %s1939 = smul.addr %s1938, 8
        %s1940 = scalar_lea.vmem [#allocation10], %s1939
        %s1941 = sand.u32 %s265, 1
        %s1942 = scalar_lea.sflag [#allocation12], %s1941
        %s1943 = sand.u32 %s265, 1
        %s1944 = smul.addr %s1943, 8
        %s1945 = scalar_lea.vmem [#allocation11], %s1944
        // Predicated region
        $region69: #{tpu_custom_call.1} parent=51 // pred_check
          %p1946 = pneg %p247
        $region70: #{tpu_custom_call.1} parent=51 // pred_check_branch
          %1948 = sbr.rel (%p1946) target = $region72
        $region71: #{tpu_custom_call.1} parent=51 // pred_region
          %1950 = vsyncadd %s1937, 0
          %s1951 = sadd.s32 %s35, %s34
          %s1952 = smul.addr %s1951, 8
          %s1953 = scalar_lea.hbm %s8, %s1952
          %s1955 = sshll.u32 %s1940, 4
          %s1956 = int_to_ptr.vmem [resolvable:$true] %s1955
          %s1957 = sshll.u32 %s1953, 4
          %s1958 = int_to_ptr.hbm [resolvable:$true] %s1957
          %1960 = dma.vmem_to_hbm [thread:$0]  %s1956, 128, %s1958, %s1937
        $region72: #{tpu_custom_call.1} parent=51 // pred_fallthru
          _
        // Predicated region
        $region73: #{tpu_custom_call.1} parent=51 // pred_check
          %p1961 = pneg %p275
        $region74: #{tpu_custom_call.1} parent=51 // pred_check_branch
          %1963 = sbr.rel (%p1961) target = $region76
        $region75: #{tpu_custom_call.1} parent=51 // pred_region
          %1965 = vsyncadd %s1942, 0
          %s1966 = sadd.s32 %s35, %s34
          %s1967 = smul.addr %s1966, 8
          %s1968 = scalar_lea.hbm %s9, %s1967
          %s1970 = sshll.u32 %s1945, 4
          %s1971 = int_to_ptr.vmem [resolvable:$true] %s1970
          %s1972 = sshll.u32 %s1968, 4
          %s1973 = int_to_ptr.hbm [resolvable:$true] %s1972
          %1975 = dma.vmem_to_hbm [thread:$0]  %s1971, 128, %s1973, %s1942
        $region76: #{tpu_custom_call.1} parent=51 // pred_fallthru
          _
      $region52: #{tpu_custom_call.1} parent=5 // pred_fallthru
        _
      %p1976 = scmp.le.s32.totalorder 2, %s25
      // Predicated region
      $region77: #{tpu_custom_call.1} parent=5 // pred_check
        %p1977 = pneg %p1976
      $region78: #{tpu_custom_call.1} parent=5 // pred_check_branch
        %1979 = sbr.rel (%p1977) target = $region80
      $region79: #{tpu_custom_call.1} parent=5 // pred_region
        %s1980 = ssub.s32 %s25, 2
        // Predicated region
        $region81: #{tpu_custom_call.1} parent=79 // pred_check
          %p1981 = pneg %p253
        $region82: #{tpu_custom_call.1} parent=79 // pred_check_branch
          %1983 = sbr.rel (%p1981) target = $region84
        $region83: #{tpu_custom_call.1} parent=79 // pred_region
          %s1984 = sand.u32 %s238, 1
          %s1985 = scalar_lea.sflag [#allocation4], %s1984
          %s1986 = sand.u32 %s238, 1
          %s1987 = smul.addr %s1986, 8
          %s1988 = scalar_lea.vmem [#allocation10], %s1987
          %1990 = dma.done %s1985, 128
        $region84: #{tpu_custom_call.1} parent=79 // pred_fallthru
          _
        // Predicated region
        $region85: #{tpu_custom_call.1} parent=79 // pred_check
          %p1991 = pneg %p281
        $region86: #{tpu_custom_call.1} parent=79 // pred_check_branch
          %1993 = sbr.rel (%p1991) target = $region88
        $region87: #{tpu_custom_call.1} parent=79 // pred_region
          %s1994 = sand.u32 %s266, 1
          %s1995 = scalar_lea.sflag [#allocation12], %s1994
          %s1996 = sand.u32 %s266, 1
          %s1997 = smul.addr %s1996, 8
          %s1998 = scalar_lea.vmem [#allocation11], %s1997
          %2000 = dma.done %s1995, 128
        $region88: #{tpu_custom_call.1} parent=79 // pred_fallthru
          _
      $region80: #{tpu_custom_call.1} parent=5 // pred_fallthru
        _
    $region6: #{tpu_custom_call.1} parent=1 // loop_footer
      %s29 = sadd.s32 1, %s25
    $region7: #{tpu_custom_call.1} parent=1 // loop_footer_branch
      %24 = sbr.rel target = $region3
    $region8: #{tpu_custom_call.1} parent=1 // loop_exit
      _
    %2001 = vsyncpa [#allocation3], 1
    %s2002 = scalar_lea.sflag [#allocation3], 1
    %2003 = vsyncpa %s2002, 1
    %2004 = vsyncpa [#allocation6], 1
    %2005 = vsyncpa [#allocation9], 1
    %2006 = vsyncpa [#allocation4], 1
    %s2007 = scalar_lea.sflag [#allocation4], 1
    %2008 = vsyncpa %s2007, 1
    %2009 = vsyncpa [#allocation12], 1
    %s2010 = scalar_lea.sflag [#allocation12], 1
    %2011 = vsyncpa %s2010, 1

</llo_original>
